<compile_context>
chip_gen: v5e
topology: v5e:2x2
jax: 0.10.0
libtpu: 0.0.40
codegen_flags: <defaults>
</compile_context>

<pallas_src>
import functools

import jax
import jax.numpy as jnp
from jax import lax
from jax.experimental import pallas as pl
from jax.experimental.pallas import tpu as pltpu

D = 12          # LSTM input/hidden size
NUM_LAYERS = 3
K = 6           # number of WI matrices
H1, H2 = 64, 128
BN_EPS = 1e-5
LANE = 128      # WI_k blocks padded to 128-lane boundaries


def idr_kernel(x_ref,                     # (T*B, D) time-major rows (row n = t*B + b)
               wih_ref, whh_ref, b_ref,   # (L,D,4D), (L,D,4D), (L,1,4D); gate cols [i,f,o,g]
               w1_ref, b1_ref, g1_ref, be1_ref,
               w2_ref, b2_ref, g2_ref, be2_ref,
               w3_ref, b3_ref,
               wi_ref,                    # (D, K*LANE) fused + lane-padded identity-removal weights
               p_ref,                     # (T*B, T*B) per-timestep batch-averaging matrix
               out_ref,                   # (T*B, D)
               hs_ref,                    # (T*B, D) scratch: final-layer hidden states
               *, T, B):
    d = x_ref.shape[1]
    f32 = jnp.float32

    x = x_ref[...].astype(f32)                                   # (TB, D)

    # ---- LSTM weights as vreg-resident values -------------------------------
    whh0 = whh_ref[0]
    wih1, whh1, bias1 = wih_ref[1], whh_ref[1], b_ref[1]
    wih2, whh2, bias2 = wih_ref[2], whh_ref[2], b_ref[2]

    # Layer-0 input projection hoisted out of the recurrence (one batched matmul),
    # kept as a loop-invariant value and sliced per step.
    gx0 = jnp.dot(x, wih_ref[0], preferred_element_type=f32) + b_ref[0]   # (TB, 4D)

    def cell(gates, c_prev):
        # gate columns are permuted to [i, f, o, g]: one sigmoid pass + one tanh.
        sig = jax.nn.sigmoid(gates[:, :3 * d])
        g_g = jnp.tanh(gates[:, 3 * d:])
        i_g = sig[:, :d]
        f_g = sig[:, d:2 * d]
        o_g = sig[:, 2 * d:3 * d]
        c_new = f_g * c_prev + i_g * g_g
        h_new = o_g * jnp.tanh(c_new)
        return h_new, c_new

    zeros = jnp.zeros((B, d), f32)
    h = [zeros, zeros, zeros]
    c = [zeros, zeros, zeros]
    h0_pipe = zeros    # layer-0 output waiting to be consumed by layer 1
    h1_pipe = zeros    # layer-1 output waiting to be consumed by layer 2

    # ---- Wavefront over the 3 layers: at step s, layer l handles t = s - l ---
    # h/c stay in vregs; only the final layer's per-step output touches VMEM.
    for s in range(T + NUM_LAYERS - 1):
        nh = list(h)
        nc = list(c)
        nxt_h0 = h0_pipe
        nxt_h1 = h1_pipe

        if s < T:                                          # layer 0 @ t = s
            gates = (gx0[s * B:(s + 1) * B, :]
                     + jnp.dot(h[0], whh0, preferred_element_type=f32))
            nh[0], nc[0] = cell(gates, c[0])
            nxt_h0 = nh[0]

        t1 = s - 1
        if 0 <= t1 < T:                                    # layer 1 @ t = s-1
            gates = (jnp.dot(h0_pipe, wih1, preferred_element_type=f32)
                     + jnp.dot(h[1], whh1, preferred_element_type=f32)
                     + bias1)
            nh[1], nc[1] = cell(gates, c[1])
            nxt_h1 = nh[1]

        t2 = s - 2
        if 0 <= t2 < T:                                    # layer 2 @ t = s-2
            gates = (jnp.dot(h1_pipe, wih2, preferred_element_type=f32)
                     + jnp.dot(h[2], whh2, preferred_element_type=f32)
                     + bias2)
            nh[2], nc[2] = cell(gates, c[2])
            hs_ref[pl.ds(t2 * B, B), :] = nh[2]

        h, c = nh, nc
        h0_pipe, h1_pipe = nxt_h0, nxt_h1

    lstm_out = hs_ref[...]                                  # (TB, D)

    # ---- MLP: (Linear -> BN -> ReLU) x2 -> Linear, fully batched over T*B ----
    # BatchNorm (training mode) stats are per-timestep over the batch axis only
    # (PyTorch applies BatchNorm1d to each (B, H) slice).  mean/var per group are
    # computed with a (TB, TB) block-averaging matmul to keep everything 2D.
    # TODO(synk): running_mean/running_var updates (momentum=0.5) are stateful
    # side effects with no impact on this forward output and are not tracked.
    P = p_ref[...]

    def bn_relu(y, gamma, beta):
        mean = jnp.dot(P, y, preferred_element_type=f32)
        cen = y - mean
        var = jnp.dot(P, cen * cen, preferred_element_type=f32)   # biased variance
        yhat = cen * lax.rsqrt(var + BN_EPS)
        return jnp.maximum(yhat * gamma + beta, 0.0)

    a1 = jnp.dot(lstm_out, w1_ref[...], preferred_element_type=f32) + b1_ref[...]
    a1 = bn_relu(a1, g1_ref[...], be1_ref[...])
    a2 = jnp.dot(a1, w2_ref[...], preferred_element_type=f32) + b2_ref[...]
    a2 = bn_relu(a2, g2_ref[...], be2_ref[...])
    lambs = jnp.dot(a2, w3_ref[...], preferred_element_type=f32) + b3_ref[...]   # (TB, K)

    # ---- identity removal: out = x @ (I + sum_k lamb_k WI_k) -----------------
    #   = x + sum_k lamb_k * (x @ WI_k); one fused matmul against the padded
    # (D, K*LANE) weight so each WI_k product block starts on a lane boundary.
    xw = jnp.dot(x, wi_ref[...], preferred_element_type=f32)     # (TB, K*LANE)
    acc = x
    for k in range(K):
        acc = acc + lambs[:, k:k + 1] * xw[:, k * LANE:k * LANE + d]

    out_ref[...] = acc.astype(out_ref.dtype)


def idr_net_forward(mfcc, params):
    B, T, d = mfcc.shape
    TB = T * B

    # Time-major flat layout (row n = t*B + b): wrapper-side transpose is cheap.
    x2d = jnp.transpose(mfcc, (1, 0, 2)).reshape(TB, d).astype(jnp.float32)

    # Permute LSTM gate columns from PyTorch order (i, f, g, o) -> (i, f, o, g)
    # so the kernel applies a single sigmoid over the first 3D columns.
    perm = jnp.concatenate([jnp.arange(0, d), jnp.arange(d, 2 * d),
                            jnp.arange(3 * d, 4 * d), jnp.arange(2 * d, 3 * d)])
    wih = params['wih'][:, :, perm]
    whh = params['whh'][:, :, perm]
    blstm = params['blstm'][:, perm].reshape(NUM_LAYERS, 1, 4 * d)

    # Fuse + lane-pad WI: wi_pad[:, k*LANE:k*LANE+d] == WI[k].
    wi_pad = jnp.pad(params['WI'], ((0, 0), (0, 0), (0, LANE - d)))   # (K, D, LANE)
    wi_pad = jnp.transpose(wi_pad, (1, 0, 2)).reshape(d, K * LANE)

    # Per-timestep batch-averaging matrix for the BatchNorm statistics.
    gid = jnp.arange(TB) // B
    P = (gid[:, None] == gid[None, :]).astype(jnp.float32) / B

    inputs = [
        x2d, wih, whh, blstm,
        params['w1'], params['b1'], params['g1'], params['be1'],
        params['w2'], params['b2'], params['g2'], params['be2'],
        params['w3'], params['b3'],
        wi_pad, P,
    ]
    vmem = pl.BlockSpec(memory_space=pltpu.MemorySpace.VMEM)
    kernel = functools.partial(idr_kernel, T=T, B=B)
    out2d = pl.pallas_call(
        kernel,
        out_shape=jax.ShapeDtypeStruct((TB, d), jnp.float32),
        in_specs=[vmem] * len(inputs),
        out_specs=vmem,
        scratch_shapes=[pltpu.VMEM((TB, d), jnp.float32)],   # final-layer hidden states
    )(*inputs)

    # (TB, D) -> (B, 1, T, D) outside the kernel (metadata-only ops).
    return jnp.transpose(out2d.reshape(T, B, d), (1, 0, 2))[:, None, :, :]


def init_params(key):
    ks = jax.random.split(key, 16)

    def nrm(k, shape, std):
        return (jax.random.normal(k, shape, jnp.float32) * std).astype(jnp.float32)

    params = {
        # LSTM weights stored transposed for x @ W, gate order (i, f, g, o)
        # as in PyTorch; the wrapper permutes to (i, f, o, g).
        'wih': nrm(ks[0], (NUM_LAYERS, D, 4 * D), 0.2),
        'whh': nrm(ks[1], (NUM_LAYERS, D, 4 * D), 0.2),
        'blstm': nrm(ks[2], (NUM_LAYERS, 4 * D), 0.1),   # b_ih + b_hh combined
        # lstm_fc: Linear(12,64)->BN->ReLU->Linear(64,128)->BN->ReLU->Linear(128,K)
        'w1': nrm(ks[3], (D, H1), 0.2),
        'b1': nrm(ks[4], (1, H1), 0.1),
        'g1': jnp.ones((1, H1), jnp.float32),
        'be1': jnp.zeros((1, H1), jnp.float32),
        'w2': nrm(ks[5], (H1, H2), 0.1),
        'b2': nrm(ks[6], (1, H2), 0.1),
        'g2': jnp.ones((1, H2), jnp.float32),
        'be2': jnp.zeros((1, H2), jnp.float32),
        'w3': nrm(ks[7], (H2, K), 0.1),
        'b3': nrm(ks[8], (1, K), 0.1),
        # WI ~ Normal(0, 0.01), exactly as the PyTorch module's init
        'WI': nrm(ks[9], (K, D, D), 0.01),
    }
    return params


if __name__ == "__main__":
    B, T = 2, 8
    key = jax.random.PRNGKey(0)
    k_in, k_par = jax.random.split(key)
    mfcc = jax.random.normal(k_in, (B, T, D), jnp.float32)
    params = init_params(k_par)

    out = idr_net_forward(mfcc, params)
    out = jax.block_until_ready(out)
    assert out.shape == (B, 1, T, D), out.shape
    assert jnp.all(jnp.isfinite(out))
    print("KERNEL_OK")
</pallas_src>

<mosaic_0001>
module attributes {stable_mosaic.version = 11 : i64} {
  func.func @idr_kernel(%arg0: memref<16x12xf32, #tpu.memory_space<vmem>>, %arg1: memref<3x12x48xf32, #tpu.memory_space<vmem>>, %arg2: memref<3x12x48xf32, #tpu.memory_space<vmem>>, %arg3: memref<3x1x48xf32, #tpu.memory_space<vmem>>, %arg4: memref<12x64xf32, #tpu.memory_space<vmem>>, %arg5: memref<1x64xf32, #tpu.memory_space<vmem>>, %arg6: memref<1x64xf32, #tpu.memory_space<vmem>>, %arg7: memref<1x64xf32, #tpu.memory_space<vmem>>, %arg8: memref<64x128xf32, #tpu.memory_space<vmem>>, %arg9: memref<1x128xf32, #tpu.memory_space<vmem>>, %arg10: memref<1x128xf32, #tpu.memory_space<vmem>>, %arg11: memref<1x128xf32, #tpu.memory_space<vmem>>, %arg12: memref<128x6xf32, #tpu.memory_space<vmem>>, %arg13: memref<1x6xf32, #tpu.memory_space<vmem>>, %arg14: memref<12x768xf32, #tpu.memory_space<vmem>>, %arg15: memref<16x16xf32, #tpu.memory_space<vmem>>, %arg16: memref<16x12xf32, #tpu.memory_space<vmem>>, %arg17: memref<16x12xf32, #tpu.memory_space<vmem>>) attributes {dimension_semantics = [], scalar_prefetch = 0 : i64, scratch_operands = 1 : i64, tpu.core_type = #tpu.core_type<tc>} {
    %c0 = arith.constant 0 : index
    %c0_0 = arith.constant 0 : index
    %0 = vector.load %arg0[%c0, %c0_0] : memref<16x12xf32, #tpu.memory_space<vmem>>, vector<16x12xf32>
    %c0_1 = arith.constant 0 : index
    %c0_2 = arith.constant 0 : index
    %c0_3 = arith.constant 0 : index
    %1 = vector.load %arg2[%c0_1, %c0_2, %c0_3] : memref<3x12x48xf32, #tpu.memory_space<vmem>>, vector<1x12x48xf32>
    %2 = vector.shape_cast %1 : vector<1x12x48xf32> to vector<12x48xf32>
    %c1 = arith.constant 1 : index
    %c0_4 = arith.constant 0 : index
    %c0_5 = arith.constant 0 : index
    %3 = vector.load %arg1[%c1, %c0_4, %c0_5] : memref<3x12x48xf32, #tpu.memory_space<vmem>>, vector<1x12x48xf32>
    %4 = vector.shape_cast %3 : vector<1x12x48xf32> to vector<12x48xf32>
    %c1_6 = arith.constant 1 : index
    %c0_7 = arith.constant 0 : index
    %c0_8 = arith.constant 0 : index
    %5 = vector.load %arg2[%c1_6, %c0_7, %c0_8] : memref<3x12x48xf32, #tpu.memory_space<vmem>>, vector<1x12x48xf32>
    %6 = vector.shape_cast %5 : vector<1x12x48xf32> to vector<12x48xf32>
    %c1_9 = arith.constant 1 : index
    %c0_10 = arith.constant 0 : index
    %c0_11 = arith.constant 0 : index
    %7 = vector.load %arg3[%c1_9, %c0_10, %c0_11] : memref<3x1x48xf32, #tpu.memory_space<vmem>>, vector<1x1x48xf32>
    %8 = vector.shape_cast %7 : vector<1x1x48xf32> to vector<1x48xf32>
    %c2 = arith.constant 2 : index
    %c0_12 = arith.constant 0 : index
    %c0_13 = arith.constant 0 : index
    %9 = vector.load %arg1[%c2, %c0_12, %c0_13] : memref<3x12x48xf32, #tpu.memory_space<vmem>>, vector<1x12x48xf32>
    %10 = vector.shape_cast %9 : vector<1x12x48xf32> to vector<12x48xf32>
    %c2_14 = arith.constant 2 : index
    %c0_15 = arith.constant 0 : index
    %c0_16 = arith.constant 0 : index
    %11 = vector.load %arg2[%c2_14, %c0_15, %c0_16] : memref<3x12x48xf32, #tpu.memory_space<vmem>>, vector<1x12x48xf32>
    %12 = vector.shape_cast %11 : vector<1x12x48xf32> to vector<12x48xf32>
    %c2_17 = arith.constant 2 : index
    %c0_18 = arith.constant 0 : index
    %c0_19 = arith.constant 0 : index
    %13 = vector.load %arg3[%c2_17, %c0_18, %c0_19] : memref<3x1x48xf32, #tpu.memory_space<vmem>>, vector<1x1x48xf32>
    %14 = vector.shape_cast %13 : vector<1x1x48xf32> to vector<1x48xf32>
    %c0_20 = arith.constant 0 : index
    %c0_21 = arith.constant 0 : index
    %c0_22 = arith.constant 0 : index
    %15 = vector.load %arg1[%c0_20, %c0_21, %c0_22] : memref<3x12x48xf32, #tpu.memory_space<vmem>>, vector<1x12x48xf32>
    %16 = vector.shape_cast %15 : vector<1x12x48xf32> to vector<12x48xf32>
    %cst = arith.constant dense<0.000000e+00> : vector<16x48xf32>
    %17 = tpu.matmul %0, %16, %cst {dimension_numbers = #tpu.dot_dimension_numbers<[1], [0], [0], [1], [0, 0, 1, 1], [], []>} : vector<16x12xf32>, vector<12x48xf32>, vector<16x48xf32> -> vector<16x48xf32>
    %c0_23 = arith.constant 0 : index
    %c0_24 = arith.constant 0 : index
    %c0_25 = arith.constant 0 : index
    %18 = vector.load %arg3[%c0_23, %c0_24, %c0_25] : memref<3x1x48xf32, #tpu.memory_space<vmem>>, vector<1x1x48xf32>
    %19 = vector.shape_cast %18 : vector<1x1x48xf32> to vector<1x48xf32>
    %20 = vector.broadcast %19 : vector<1x48xf32> to vector<16x48xf32>
    %21 = arith.addf %17, %20 : vector<16x48xf32>
    %cst_26 = arith.constant 0.000000e+00 : f32
    %22 = vector.broadcast %cst_26 : f32 to vector<2x12xf32>
    %23 = vector.extract_strided_slice %21 {offsets = [0, 0], sizes = [2, 48], strides = [1, 1]} : vector<16x48xf32> to vector<2x48xf32>
    %cst_27 = arith.constant dense<0.000000e+00> : vector<2x48xf32>
    %24 = tpu.matmul %22, %2, %cst_27 {dimension_numbers = #tpu.dot_dimension_numbers<[1], [0], [0], [1], [0, 0, 1, 1], [], []>} : vector<2x12xf32>, vector<12x48xf32>, vector<2x48xf32> -> vector<2x48xf32>
    %25 = arith.addf %23, %24 : vector<2x48xf32>
    %26 = vector.extract_strided_slice %25 {offsets = [0, 0], sizes = [2, 36], strides = [1, 1]} : vector<2x48xf32> to vector<2x36xf32>
    %27 = arith.negf %26 : vector<2x36xf32>
    %28 = math.exp %27 : vector<2x36xf32>
    %cst_28 = arith.constant 1.000000e+00 : f32
    %29 = vector.broadcast %cst_28 : f32 to vector<2x36xf32>
    %30 = arith.addf %29, %28 : vector<2x36xf32>
    %31 = arith.divf %29, %30 : vector<2x36xf32>
    %32 = vector.extract_strided_slice %25 {offsets = [0, 36], sizes = [2, 12], strides = [1, 1]} : vector<2x48xf32> to vector<2x12xf32>
    %33 = math.tanh %32 : vector<2x12xf32>
    %34 = vector.extract_strided_slice %31 {offsets = [0, 0], sizes = [2, 12], strides = [1, 1]} : vector<2x36xf32> to vector<2x12xf32>
    %35 = vector.extract_strided_slice %31 {offsets = [0, 12], sizes = [2, 12], strides = [1, 1]} : vector<2x36xf32> to vector<2x12xf32>
    %36 = vector.extract_strided_slice %31 {offsets = [0, 24], sizes = [2, 12], strides = [1, 1]} : vector<2x36xf32> to vector<2x12xf32>
    %37 = arith.mulf %35, %22 : vector<2x12xf32>
    %38 = arith.mulf %34, %33 : vector<2x12xf32>
    %39 = arith.addf %37, %38 : vector<2x12xf32>
    %40 = math.tanh %39 : vector<2x12xf32>
    %41 = arith.mulf %36, %40 : vector<2x12xf32>
    %42 = vector.extract_strided_slice %21 {offsets = [2, 0], sizes = [2, 48], strides = [1, 1]} : vector<16x48xf32> to vector<2x48xf32>
    %cst_29 = arith.constant dense<0.000000e+00> : vector<2x48xf32>
    %43 = tpu.matmul %41, %2, %cst_29 {dimension_numbers = #tpu.dot_dimension_numbers<[1], [0], [0], [1], [0, 0, 1, 1], [], []>} : vector<2x12xf32>, vector<12x48xf32>, vector<2x48xf32> -> vector<2x48xf32>
    %44 = arith.addf %42, %43 : vector<2x48xf32>
    %45 = vector.extract_strided_slice %44 {offsets = [0, 0], sizes = [2, 36], strides = [1, 1]} : vector<2x48xf32> to vector<2x36xf32>
    %46 = arith.negf %45 : vector<2x36xf32>
    %47 = math.exp %46 : vector<2x36xf32>
    %cst_30 = arith.constant 1.000000e+00 : f32
    %48 = vector.broadcast %cst_30 : f32 to vector<2x36xf32>
    %49 = arith.addf %48, %47 : vector<2x36xf32>
    %50 = arith.divf %48, %49 : vector<2x36xf32>
    %51 = vector.extract_strided_slice %44 {offsets = [0, 36], sizes = [2, 12], strides = [1, 1]} : vector<2x48xf32> to vector<2x12xf32>
    %52 = math.tanh %51 : vector<2x12xf32>
    %53 = vector.extract_strided_slice %50 {offsets = [0, 0], sizes = [2, 12], strides = [1, 1]} : vector<2x36xf32> to vector<2x12xf32>
    %54 = vector.extract_strided_slice %50 {offsets = [0, 12], sizes = [2, 12], strides = [1, 1]} : vector<2x36xf32> to vector<2x12xf32>
    %55 = vector.extract_strided_slice %50 {offsets = [0, 24], sizes = [2, 12], strides = [1, 1]} : vector<2x36xf32> to vector<2x12xf32>
    %56 = arith.mulf %54, %39 : vector<2x12xf32>
    %57 = arith.mulf %53, %52 : vector<2x12xf32>
    %58 = arith.addf %56, %57 : vector<2x12xf32>
    %59 = math.tanh %58 : vector<2x12xf32>
    %60 = arith.mulf %55, %59 : vector<2x12xf32>
    %cst_31 = arith.constant dense<0.000000e+00> : vector<2x48xf32>
    %61 = tpu.matmul %41, %4, %cst_31 {dimension_numbers = #tpu.dot_dimension_numbers<[1], [0], [0], [1], [0, 0, 1, 1], [], []>} : vector<2x12xf32>, vector<12x48xf32>, vector<2x48xf32> -> vector<2x48xf32>
    %cst_32 = arith.constant dense<0.000000e+00> : vector<2x48xf32>
    %62 = tpu.matmul %22, %6, %cst_32 {dimension_numbers = #tpu.dot_dimension_numbers<[1], [0], [0], [1], [0, 0, 1, 1], [], []>} : vector<2x12xf32>, vector<12x48xf32>, vector<2x48xf32> -> vector<2x48xf32>
    %63 = arith.addf %61, %62 : vector<2x48xf32>
    %64 = vector.broadcast %8 : vector<1x48xf32> to vector<2x48xf32>
    %65 = arith.addf %63, %64 : vector<2x48xf32>
    %66 = vector.extract_strided_slice %65 {offsets = [0, 0], sizes = [2, 36], strides = [1, 1]} : vector<2x48xf32> to vector<2x36xf32>
    %67 = arith.negf %66 : vector<2x36xf32>
    %68 = math.exp %67 : vector<2x36xf32>
    %cst_33 = arith.constant 1.000000e+00 : f32
    %69 = vector.broadcast %cst_33 : f32 to vector<2x36xf32>
    %70 = arith.addf %69, %68 : vector<2x36xf32>
    %71 = arith.divf %69, %70 : vector<2x36xf32>
    %72 = vector.extract_strided_slice %65 {offsets = [0, 36], sizes = [2, 12], strides = [1, 1]} : vector<2x48xf32> to vector<2x12xf32>
    %73 = math.tanh %72 : vector<2x12xf32>
    %74 = vector.extract_strided_slice %71 {offsets = [0, 0], sizes = [2, 12], strides = [1, 1]} : vector<2x36xf32> to vector<2x12xf32>
    %75 = vector.extract_strided_slice %71 {offsets = [0, 12], sizes = [2, 12], strides = [1, 1]} : vector<2x36xf32> to vector<2x12xf32>
    %76 = vector.extract_strided_slice %71 {offsets = [0, 24], sizes = [2, 12], strides = [1, 1]} : vector<2x36xf32> to vector<2x12xf32>
    %77 = arith.mulf %75, %22 : vector<2x12xf32>
    %78 = arith.mulf %74, %73 : vector<2x12xf32>
    %79 = arith.addf %77, %78 : vector<2x12xf32>
    %80 = math.tanh %79 : vector<2x12xf32>
    %81 = arith.mulf %76, %80 : vector<2x12xf32>
    %82 = vector.extract_strided_slice %21 {offsets = [4, 0], sizes = [2, 48], strides = [1, 1]} : vector<16x48xf32> to vector<2x48xf32>
    %cst_34 = arith.constant dense<0.000000e+00> : vector<2x48xf32>
    %83 = tpu.matmul %60, %2, %cst_34 {dimension_numbers = #tpu.dot_dimension_numbers<[1], [0], [0], [1], [0, 0, 1, 1], [], []>} : vector<2x12xf32>, vector<12x48xf32>, vector<2x48xf32> -> vector<2x48xf32>
    %84 = arith.addf %82, %83 : vector<2x48xf32>
    %85 = vector.extract_strided_slice %84 {offsets = [0, 0], sizes = [2, 36], strides = [1, 1]} : vector<2x48xf32> to vector<2x36xf32>
    %86 = arith.negf %85 : vector<2x36xf32>
    %87 = math.exp %86 : vector<2x36xf32>
    %cst_35 = arith.constant 1.000000e+00 : f32
    %88 = vector.broadcast %cst_35 : f32 to vector<2x36xf32>
    %89 = arith.addf %88, %87 : vector<2x36xf32>
    %90 = arith.divf %88, %89 : vector<2x36xf32>
    %91 = vector.extract_strided_slice %84 {offsets = [0, 36], sizes = [2, 12], strides = [1, 1]} : vector<2x48xf32> to vector<2x12xf32>
    %92 = math.tanh %91 : vector<2x12xf32>
    %93 = vector.extract_strided_slice %90 {offsets = [0, 0], sizes = [2, 12], strides = [1, 1]} : vector<2x36xf32> to vector<2x12xf32>
    %94 = vector.extract_strided_slice %90 {offsets = [0, 12], sizes = [2, 12], strides = [1, 1]} : vector<2x36xf32> to vector<2x12xf32>
    %95 = vector.extract_strided_slice %90 {offsets = [0, 24], sizes = [2, 12], strides = [1, 1]} : vector<2x36xf32> to vector<2x12xf32>
    %96 = arith.mulf %94, %58 : vector<2x12xf32>
    %97 = arith.mulf %93, %92 : vector<2x12xf32>
    %98 = arith.addf %96, %97 : vector<2x12xf32>
    %99 = math.tanh %98 : vector<2x12xf32>
    %100 = arith.mulf %95, %99 : vector<2x12xf32>
    %cst_36 = arith.constant dense<0.000000e+00> : vector<2x48xf32>
    %101 = tpu.matmul %60, %4, %cst_36 {dimension_numbers = #tpu.dot_dimension_numbers<[1], [0], [0], [1], [0, 0, 1, 1], [], []>} : vector<2x12xf32>, vector<12x48xf32>, vector<2x48xf32> -> vector<2x48xf32>
    %cst_37 = arith.constant dense<0.000000e+00> : vector<2x48xf32>
    %102 = tpu.matmul %81, %6, %cst_37 {dimension_numbers = #tpu.dot_dimension_numbers<[1], [0], [0], [1], [0, 0, 1, 1], [], []>} : vector<2x12xf32>, vector<12x48xf32>, vector<2x48xf32> -> vector<2x48xf32>
    %103 = arith.addf %101, %102 : vector<2x48xf32>
    %104 = vector.broadcast %8 : vector<1x48xf32> to vector<2x48xf32>
    %105 = arith.addf %103, %104 : vector<2x48xf32>
    %106 = vector.extract_strided_slice %105 {offsets = [0, 0], sizes = [2, 36], strides = [1, 1]} : vector<2x48xf32> to vector<2x36xf32>
    %107 = arith.negf %106 : vector<2x36xf32>
    %108 = math.exp %107 : vector<2x36xf32>
    %cst_38 = arith.constant 1.000000e+00 : f32
    %109 = vector.broadcast %cst_38 : f32 to vector<2x36xf32>
    %110 = arith.addf %109, %108 : vector<2x36xf32>
    %111 = arith.divf %109, %110 : vector<2x36xf32>
    %112 = vector.extract_strided_slice %105 {offsets = [0, 36], sizes = [2, 12], strides = [1, 1]} : vector<2x48xf32> to vector<2x12xf32>
    %113 = math.tanh %112 : vector<2x12xf32>
    %114 = vector.extract_strided_slice %111 {offsets = [0, 0], sizes = [2, 12], strides = [1, 1]} : vector<2x36xf32> to vector<2x12xf32>
    %115 = vector.extract_strided_slice %111 {offsets = [0, 12], sizes = [2, 12], strides = [1, 1]} : vector<2x36xf32> to vector<2x12xf32>
    %116 = vector.extract_strided_slice %111 {offsets = [0, 24], sizes = [2, 12], strides = [1, 1]} : vector<2x36xf32> to vector<2x12xf32>
    %117 = arith.mulf %115, %79 : vector<2x12xf32>
    %118 = arith.mulf %114, %113 : vector<2x12xf32>
    %119 = arith.addf %117, %118 : vector<2x12xf32>
    %120 = math.tanh %119 : vector<2x12xf32>
    %121 = arith.mulf %116, %120 : vector<2x12xf32>
    %cst_39 = arith.constant dense<0.000000e+00> : vector<2x48xf32>
    %122 = tpu.matmul %81, %10, %cst_39 {dimension_numbers = #tpu.dot_dimension_numbers<[1], [0], [0], [1], [0, 0, 1, 1], [], []>} : vector<2x12xf32>, vector<12x48xf32>, vector<2x48xf32> -> vector<2x48xf32>
    %cst_40 = arith.constant dense<0.000000e+00> : vector<2x48xf32>
    %123 = tpu.matmul %22, %12, %cst_40 {dimension_numbers = #tpu.dot_dimension_numbers<[1], [0], [0], [1], [0, 0, 1, 1], [], []>} : vector<2x12xf32>, vector<12x48xf32>, vector<2x48xf32> -> vector<2x48xf32>
    %124 = arith.addf %122, %123 : vector<2x48xf32>
    %125 = vector.broadcast %14 : vector<1x48xf32> to vector<2x48xf32>
    %126 = arith.addf %124, %125 : vector<2x48xf32>
    %127 = vector.extract_strided_slice %126 {offsets = [0, 0], sizes = [2, 36], strides = [1, 1]} : vector<2x48xf32> to vector<2x36xf32>
    %128 = arith.negf %127 : vector<2x36xf32>
    %129 = math.exp %128 : vector<2x36xf32>
    %cst_41 = arith.constant 1.000000e+00 : f32
    %130 = vector.broadcast %cst_41 : f32 to vector<2x36xf32>
    %131 = arith.addf %130, %129 : vector<2x36xf32>
    %132 = arith.divf %130, %131 : vector<2x36xf32>
    %133 = vector.extract_strided_slice %126 {offsets = [0, 36], sizes = [2, 12], strides = [1, 1]} : vector<2x48xf32> to vector<2x12xf32>
    %134 = math.tanh %133 : vector<2x12xf32>
    %135 = vector.extract_strided_slice %132 {offsets = [0, 0], sizes = [2, 12], strides = [1, 1]} : vector<2x36xf32> to vector<2x12xf32>
    %136 = vector.extract_strided_slice %132 {offsets = [0, 12], sizes = [2, 12], strides = [1, 1]} : vector<2x36xf32> to vector<2x12xf32>
    %137 = vector.extract_strided_slice %132 {offsets = [0, 24], sizes = [2, 12], strides = [1, 1]} : vector<2x36xf32> to vector<2x12xf32>
    %138 = arith.mulf %136, %22 : vector<2x12xf32>
    %139 = arith.mulf %135, %134 : vector<2x12xf32>
    %140 = arith.addf %138, %139 : vector<2x12xf32>
    %141 = math.tanh %140 : vector<2x12xf32>
    %142 = arith.mulf %137, %141 : vector<2x12xf32>
    %c0_42 = arith.constant 0 : index
    %c0_43 = arith.constant 0 : index
    %143 = vector.load %arg17[%c0_42, %c0_43] : memref<16x12xf32, #tpu.memory_space<vmem>>, vector<2x12xf32>
    tpu.vector_store %arg17[%c0_42, %c0_43], %142 {strides = array<i32>} : memref<16x12xf32, #tpu.memory_space<vmem>>, vector<2x12xf32>,
    %144 = vector.extract_strided_slice %21 {offsets = [6, 0], sizes = [2, 48], strides = [1, 1]} : vector<16x48xf32> to vector<2x48xf32>
    %cst_44 = arith.constant dense<0.000000e+00> : vector<2x48xf32>
    %145 = tpu.matmul %100, %2, %cst_44 {dimension_numbers = #tpu.dot_dimension_numbers<[1], [0], [0], [1], [0, 0, 1, 1], [], []>} : vector<2x12xf32>, vector<12x48xf32>, vector<2x48xf32> -> vector<2x48xf32>
    %146 = arith.addf %144, %145 : vector<2x48xf32>
    %147 = vector.extract_strided_slice %146 {offsets = [0, 0], sizes = [2, 36], strides = [1, 1]} : vector<2x48xf32> to vector<2x36xf32>
    %148 = arith.negf %147 : vector<2x36xf32>
    %149 = math.exp %148 : vector<2x36xf32>
    %cst_45 = arith.constant 1.000000e+00 : f32
    %150 = vector.broadcast %cst_45 : f32 to vector<2x36xf32>
    %151 = arith.addf %150, %149 : vector<2x36xf32>
    %152 = arith.divf %150, %151 : vector<2x36xf32>
    %153 = vector.extract_strided_slice %146 {offsets = [0, 36], sizes = [2, 12], strides = [1, 1]} : vector<2x48xf32> to vector<2x12xf32>
    %154 = math.tanh %153 : vector<2x12xf32>
    %155 = vector.extract_strided_slice %152 {offsets = [0, 0], sizes = [2, 12], strides = [1, 1]} : vector<2x36xf32> to vector<2x12xf32>
    %156 = vector.extract_strided_slice %152 {offsets = [0, 12], sizes = [2, 12], strides = [1, 1]} : vector<2x36xf32> to vector<2x12xf32>
    %157 = vector.extract_strided_slice %152 {offsets = [0, 24], sizes = [2, 12], strides = [1, 1]} : vector<2x36xf32> to vector<2x12xf32>
    %158 = arith.mulf %156, %98 : vector<2x12xf32>
    %159 = arith.mulf %155, %154 : vector<2x12xf32>
    %160 = arith.addf %158, %159 : vector<2x12xf32>
    %161 = math.tanh %160 : vector<2x12xf32>
    %162 = arith.mulf %157, %161 : vector<2x12xf32>
    %cst_46 = arith.constant dense<0.000000e+00> : vector<2x48xf32>
    %163 = tpu.matmul %100, %4, %cst_46 {dimension_numbers = #tpu.dot_dimension_numbers<[1], [0], [0], [1], [0, 0, 1, 1], [], []>} : vector<2x12xf32>, vector<12x48xf32>, vector<2x48xf32> -> vector<2x48xf32>
    %cst_47 = arith.constant dense<0.000000e+00> : vector<2x48xf32>
    %164 = tpu.matmul %121, %6, %cst_47 {dimension_numbers = #tpu.dot_dimension_numbers<[1], [0], [0], [1], [0, 0, 1, 1], [], []>} : vector<2x12xf32>, vector<12x48xf32>, vector<2x48xf32> -> vector<2x48xf32>
    %165 = arith.addf %163, %164 : vector<2x48xf32>
    %166 = vector.broadcast %8 : vector<1x48xf32> to vector<2x48xf32>
    %167 = arith.addf %165, %166 : vector<2x48xf32>
    %168 = vector.extract_strided_slice %167 {offsets = [0, 0], sizes = [2, 36], strides = [1, 1]} : vector<2x48xf32> to vector<2x36xf32>
    %169 = arith.negf %168 : vector<2x36xf32>
    %170 = math.exp %169 : vector<2x36xf32>
    %cst_48 = arith.constant 1.000000e+00 : f32
    %171 = vector.broadcast %cst_48 : f32 to vector<2x36xf32>
    %172 = arith.addf %171, %170 : vector<2x36xf32>
    %173 = arith.divf %171, %172 : vector<2x36xf32>
    %174 = vector.extract_strided_slice %167 {offsets = [0, 36], sizes = [2, 12], strides = [1, 1]} : vector<2x48xf32> to vector<2x12xf32>
    %175 = math.tanh %174 : vector<2x12xf32>
    %176 = vector.extract_strided_slice %173 {offsets = [0, 0], sizes = [2, 12], strides = [1, 1]} : vector<2x36xf32> to vector<2x12xf32>
    %177 = vector.extract_strided_slice %173 {offsets = [0, 12], sizes = [2, 12], strides = [1, 1]} : vector<2x36xf32> to vector<2x12xf32>
    %178 = vector.extract_strided_slice %173 {offsets = [0, 24], sizes = [2, 12], strides = [1, 1]} : vector<2x36xf32> to vector<2x12xf32>
    %179 = arith.mulf %177, %119 : vector<2x12xf32>
    %180 = arith.mulf %176, %175 : vector<2x12xf32>
    %181 = arith.addf %179, %180 : vector<2x12xf32>
    %182 = math.tanh %181 : vector<2x12xf32>
    %183 = arith.mulf %178, %182 : vector<2x12xf32>
    %cst_49 = arith.constant dense<0.000000e+00> : vector<2x48xf32>
    %184 = tpu.matmul %121, %10, %cst_49 {dimension_numbers = #tpu.dot_dimension_numbers<[1], [0], [0], [1], [0, 0, 1, 1], [], []>} : vector<2x12xf32>, vector<12x48xf32>, vector<2x48xf32> -> vector<2x48xf32>
    %cst_50 = arith.constant dense<0.000000e+00> : vector<2x48xf32>
    %185 = tpu.matmul %142, %12, %cst_50 {dimension_numbers = #tpu.dot_dimension_numbers<[1], [0], [0], [1], [0, 0, 1, 1], [], []>} : vector<2x12xf32>, vector<12x48xf32>, vector<2x48xf32> -> vector<2x48xf32>
    %186 = arith.addf %184, %185 : vector<2x48xf32>
    %187 = vector.broadcast %14 : vector<1x48xf32> to vector<2x48xf32>
    %188 = arith.addf %186, %187 : vector<2x48xf32>
    %189 = vector.extract_strided_slice %188 {offsets = [0, 0], sizes = [2, 36], strides = [1, 1]} : vector<2x48xf32> to vector<2x36xf32>
    %190 = arith.negf %189 : vector<2x36xf32>
    %191 = math.exp %190 : vector<2x36xf32>
    %cst_51 = arith.constant 1.000000e+00 : f32
    %192 = vector.broadcast %cst_51 : f32 to vector<2x36xf32>
    %193 = arith.addf %192, %191 : vector<2x36xf32>
    %194 = arith.divf %192, %193 : vector<2x36xf32>
    %195 = vector.extract_strided_slice %188 {offsets = [0, 36], sizes = [2, 12], strides = [1, 1]} : vector<2x48xf32> to vector<2x12xf32>
    %196 = math.tanh %195 : vector<2x12xf32>
    %197 = vector.extract_strided_slice %194 {offsets = [0, 0], sizes = [2, 12], strides = [1, 1]} : vector<2x36xf32> to vector<2x12xf32>
    %198 = vector.extract_strided_slice %194 {offsets = [0, 12], sizes = [2, 12], strides = [1, 1]} : vector<2x36xf32> to vector<2x12xf32>
    %199 = vector.extract_strided_slice %194 {offsets = [0, 24], sizes = [2, 12], strides = [1, 1]} : vector<2x36xf32> to vector<2x12xf32>
    %200 = arith.mulf %198, %140 : vector<2x12xf32>
    %201 = arith.mulf %197, %196 : vector<2x12xf32>
    %202 = arith.addf %200, %201 : vector<2x12xf32>
    %203 = math.tanh %202 : vector<2x12xf32>
    %204 = arith.mulf %199, %203 : vector<2x12xf32>
    %c2_52 = arith.constant 2 : index
    %c0_53 = arith.constant 0 : index
    %205 = vector.load %arg17[%c2_52, %c0_53] : memref<16x12xf32, #tpu.memory_space<vmem>>, vector<2x12xf32>
    tpu.vector_store %arg17[%c2_52, %c0_53], %204 {strides = array<i32>} : memref<16x12xf32, #tpu.memory_space<vmem>>, vector<2x12xf32>,
    %206 = vector.extract_strided_slice %21 {offsets = [8, 0], sizes = [2, 48], strides = [1, 1]} : vector<16x48xf32> to vector<2x48xf32>
    %cst_54 = arith.constant dense<0.000000e+00> : vector<2x48xf32>
    %207 = tpu.matmul %162, %2, %cst_54 {dimension_numbers = #tpu.dot_dimension_numbers<[1], [0], [0], [1], [0, 0, 1, 1], [], []>} : vector<2x12xf32>, vector<12x48xf32>, vector<2x48xf32> -> vector<2x48xf32>
    %208 = arith.addf %206, %207 : vector<2x48xf32>
    %209 = vector.extract_strided_slice %208 {offsets = [0, 0], sizes = [2, 36], strides = [1, 1]} : vector<2x48xf32> to vector<2x36xf32>
    %210 = arith.negf %209 : vector<2x36xf32>
    %211 = math.exp %210 : vector<2x36xf32>
    %cst_55 = arith.constant 1.000000e+00 : f32
    %212 = vector.broadcast %cst_55 : f32 to vector<2x36xf32>
    %213 = arith.addf %212, %211 : vector<2x36xf32>
    %214 = arith.divf %212, %213 : vector<2x36xf32>
    %215 = vector.extract_strided_slice %208 {offsets = [0, 36], sizes = [2, 12], strides = [1, 1]} : vector<2x48xf32> to vector<2x12xf32>
    %216 = math.tanh %215 : vector<2x12xf32>
    %217 = vector.extract_strided_slice %214 {offsets = [0, 0], sizes = [2, 12], strides = [1, 1]} : vector<2x36xf32> to vector<2x12xf32>
    %218 = vector.extract_strided_slice %214 {offsets = [0, 12], sizes = [2, 12], strides = [1, 1]} : vector<2x36xf32> to vector<2x12xf32>
    %219 = vector.extract_strided_slice %214 {offsets = [0, 24], sizes = [2, 12], strides = [1, 1]} : vector<2x36xf32> to vector<2x12xf32>
    %220 = arith.mulf %218, %160 : vector<2x12xf32>
    %221 = arith.mulf %217, %216 : vector<2x12xf32>
    %222 = arith.addf %220, %221 : vector<2x12xf32>
    %223 = math.tanh %222 : vector<2x12xf32>
    %224 = arith.mulf %219, %223 : vector<2x12xf32>
    %cst_56 = arith.constant dense<0.000000e+00> : vector<2x48xf32>
    %225 = tpu.matmul %162, %4, %cst_56 {dimension_numbers = #tpu.dot_dimension_numbers<[1], [0], [0], [1], [0, 0, 1, 1], [], []>} : vector<2x12xf32>, vector<12x48xf32>, vector<2x48xf32> -> vector<2x48xf32>
    %cst_57 = arith.constant dense<0.000000e+00> : vector<2x48xf32>
    %226 = tpu.matmul %183, %6, %cst_57 {dimension_numbers = #tpu.dot_dimension_numbers<[1], [0], [0], [1], [0, 0, 1, 1], [], []>} : vector<2x12xf32>, vector<12x48xf32>, vector<2x48xf32> -> vector<2x48xf32>
    %227 = arith.addf %225, %226 : vector<2x48xf32>
    %228 = vector.broadcast %8 : vector<1x48xf32> to vector<2x48xf32>
    %229 = arith.addf %227, %228 : vector<2x48xf32>
    %230 = vector.extract_strided_slice %229 {offsets = [0, 0], sizes = [2, 36], strides = [1, 1]} : vector<2x48xf32> to vector<2x36xf32>
    %231 = arith.negf %230 : vector<2x36xf32>
    %232 = math.exp %231 : vector<2x36xf32>
    %cst_58 = arith.constant 1.000000e+00 : f32
    %233 = vector.broadcast %cst_58 : f32 to vector<2x36xf32>
    %234 = arith.addf %233, %232 : vector<2x36xf32>
    %235 = arith.divf %233, %234 : vector<2x36xf32>
    %236 = vector.extract_strided_slice %229 {offsets = [0, 36], sizes = [2, 12], strides = [1, 1]} : vector<2x48xf32> to vector<2x12xf32>
    %237 = math.tanh %236 : vector<2x12xf32>
    %238 = vector.extract_strided_slice %235 {offsets = [0, 0], sizes = [2, 12], strides = [1, 1]} : vector<2x36xf32> to vector<2x12xf32>
    %239 = vector.extract_strided_slice %235 {offsets = [0, 12], sizes = [2, 12], strides = [1, 1]} : vector<2x36xf32> to vector<2x12xf32>
    %240 = vector.extract_strided_slice %235 {offsets = [0, 24], sizes = [2, 12], strides = [1, 1]} : vector<2x36xf32> to vector<2x12xf32>
    %241 = arith.mulf %239, %181 : vector<2x12xf32>
    %242 = arith.mulf %238, %237 : vector<2x12xf32>
    %243 = arith.addf %241, %242 : vector<2x12xf32>
    %244 = math.tanh %243 : vector<2x12xf32>
    %245 = arith.mulf %240, %244 : vector<2x12xf32>
    %cst_59 = arith.constant dense<0.000000e+00> : vector<2x48xf32>
    %246 = tpu.matmul %183, %10, %cst_59 {dimension_numbers = #tpu.dot_dimension_numbers<[1], [0], [0], [1], [0, 0, 1, 1], [], []>} : vector<2x12xf32>, vector<12x48xf32>, vector<2x48xf32> -> vector<2x48xf32>
    %cst_60 = arith.constant dense<0.000000e+00> : vector<2x48xf32>
    %247 = tpu.matmul %204, %12, %cst_60 {dimension_numbers = #tpu.dot_dimension_numbers<[1], [0], [0], [1], [0, 0, 1, 1], [], []>} : vector<2x12xf32>, vector<12x48xf32>, vector<2x48xf32> -> vector<2x48xf32>
    %248 = arith.addf %246, %247 : vector<2x48xf32>
    %249 = vector.broadcast %14 : vector<1x48xf32> to vector<2x48xf32>
    %250 = arith.addf %248, %249 : vector<2x48xf32>
    %251 = vector.extract_strided_slice %250 {offsets = [0, 0], sizes = [2, 36], strides = [1, 1]} : vector<2x48xf32> to vector<2x36xf32>
    %252 = arith.negf %251 : vector<2x36xf32>
    %253 = math.exp %252 : vector<2x36xf32>
    %cst_61 = arith.constant 1.000000e+00 : f32
    %254 = vector.broadcast %cst_61 : f32 to vector<2x36xf32>
    %255 = arith.addf %254, %253 : vector<2x36xf32>
    %256 = arith.divf %254, %255 : vector<2x36xf32>
    %257 = vector.extract_strided_slice %250 {offsets = [0, 36], sizes = [2, 12], strides = [1, 1]} : vector<2x48xf32> to vector<2x12xf32>
    %258 = math.tanh %257 : vector<2x12xf32>
    %259 = vector.extract_strided_slice %256 {offsets = [0, 0], sizes = [2, 12], strides = [1, 1]} : vector<2x36xf32> to vector<2x12xf32>
    %260 = vector.extract_strided_slice %256 {offsets = [0, 12], sizes = [2, 12], strides = [1, 1]} : vector<2x36xf32> to vector<2x12xf32>
    %261 = vector.extract_strided_slice %256 {offsets = [0, 24], sizes = [2, 12], strides = [1, 1]} : vector<2x36xf32> to vector<2x12xf32>
    %262 = arith.mulf %260, %202 : vector<2x12xf32>
    %263 = arith.mulf %259, %258 : vector<2x12xf32>
    %264 = arith.addf %262, %263 : vector<2x12xf32>
    %265 = math.tanh %264 : vector<2x12xf32>
    %266 = arith.mulf %261, %265 : vector<2x12xf32>
    %c4 = arith.constant 4 : index
    %c0_62 = arith.constant 0 : index
    %267 = vector.load %arg17[%c4, %c0_62] : memref<16x12xf32, #tpu.memory_space<vmem>>, vector<2x12xf32>
    tpu.vector_store %arg17[%c4, %c0_62], %266 {strides = array<i32>} : memref<16x12xf32, #tpu.memory_space<vmem>>, vector<2x12xf32>,
    %268 = vector.extract_strided_slice %21 {offsets = [10, 0], sizes = [2, 48], strides = [1, 1]} : vector<16x48xf32> to vector<2x48xf32>
    %cst_63 = arith.constant dense<0.000000e+00> : vector<2x48xf32>
    %269 = tpu.matmul %224, %2, %cst_63 {dimension_numbers = #tpu.dot_dimension_numbers<[1], [0], [0], [1], [0, 0, 1, 1], [], []>} : vector<2x12xf32>, vector<12x48xf32>, vector<2x48xf32> -> vector<2x48xf32>
    %270 = arith.addf %268, %269 : vector<2x48xf32>
    %271 = vector.extract_strided_slice %270 {offsets = [0, 0], sizes = [2, 36], strides = [1, 1]} : vector<2x48xf32> to vector<2x36xf32>
    %272 = arith.negf %271 : vector<2x36xf32>
    %273 = math.exp %272 : vector<2x36xf32>
    %cst_64 = arith.constant 1.000000e+00 : f32
    %274 = vector.broadcast %cst_64 : f32 to vector<2x36xf32>
    %275 = arith.addf %274, %273 : vector<2x36xf32>
    %276 = arith.divf %274, %275 : vector<2x36xf32>
    %277 = vector.extract_strided_slice %270 {offsets = [0, 36], sizes = [2, 12], strides = [1, 1]} : vector<2x48xf32> to vector<2x12xf32>
    %278 = math.tanh %277 : vector<2x12xf32>
    %279 = vector.extract_strided_slice %276 {offsets = [0, 0], sizes = [2, 12], strides = [1, 1]} : vector<2x36xf32> to vector<2x12xf32>
    %280 = vector.extract_strided_slice %276 {offsets = [0, 12], sizes = [2, 12], strides = [1, 1]} : vector<2x36xf32> to vector<2x12xf32>
    %281 = vector.extract_strided_slice %276 {offsets = [0, 24], sizes = [2, 12], strides = [1, 1]} : vector<2x36xf32> to vector<2x12xf32>
    %282 = arith.mulf %280, %222 : vector<2x12xf32>
    %283 = arith.mulf %279, %278 : vector<2x12xf32>
    %284 = arith.addf %282, %283 : vector<2x12xf32>
    %285 = math.tanh %284 : vector<2x12xf32>
    %286 = arith.mulf %281, %285 : vector<2x12xf32>
    %cst_65 = arith.constant dense<0.000000e+00> : vector<2x48xf32>
    %287 = tpu.matmul %224, %4, %cst_65 {dimension_numbers = #tpu.dot_dimension_numbers<[1], [0], [0], [1], [0, 0, 1, 1], [], []>} : vector<2x12xf32>, vector<12x48xf32>, vector<2x48xf32> -> vector<2x48xf32>
    %cst_66 = arith.constant dense<0.000000e+00> : vector<2x48xf32>
    %288 = tpu.matmul %245, %6, %cst_66 {dimension_numbers = #tpu.dot_dimension_numbers<[1], [0], [0], [1], [0, 0, 1, 1], [], []>} : vector<2x12xf32>, vector<12x48xf32>, vector<2x48xf32> -> vector<2x48xf32>
    %289 = arith.addf %287, %288 : vector<2x48xf32>
    %290 = vector.broadcast %8 : vector<1x48xf32> to vector<2x48xf32>
    %291 = arith.addf %289, %290 : vector<2x48xf32>
    %292 = vector.extract_strided_slice %291 {offsets = [0, 0], sizes = [2, 36], strides = [1, 1]} : vector<2x48xf32> to vector<2x36xf32>
    %293 = arith.negf %292 : vector<2x36xf32>
    %294 = math.exp %293 : vector<2x36xf32>
    %cst_67 = arith.constant 1.000000e+00 : f32
    %295 = vector.broadcast %cst_67 : f32 to vector<2x36xf32>
    %296 = arith.addf %295, %294 : vector<2x36xf32>
    %297 = arith.divf %295, %296 : vector<2x36xf32>
    %298 = vector.extract_strided_slice %291 {offsets = [0, 36], sizes = [2, 12], strides = [1, 1]} : vector<2x48xf32> to vector<2x12xf32>
    %299 = math.tanh %298 : vector<2x12xf32>
    %300 = vector.extract_strided_slice %297 {offsets = [0, 0], sizes = [2, 12], strides = [1, 1]} : vector<2x36xf32> to vector<2x12xf32>
    %301 = vector.extract_strided_slice %297 {offsets = [0, 12], sizes = [2, 12], strides = [1, 1]} : vector<2x36xf32> to vector<2x12xf32>
    %302 = vector.extract_strided_slice %297 {offsets = [0, 24], sizes = [2, 12], strides = [1, 1]} : vector<2x36xf32> to vector<2x12xf32>
    %303 = arith.mulf %301, %243 : vector<2x12xf32>
    %304 = arith.mulf %300, %299 : vector<2x12xf32>
    %305 = arith.addf %303, %304 : vector<2x12xf32>
    %306 = math.tanh %305 : vector<2x12xf32>
    %307 = arith.mulf %302, %306 : vector<2x12xf32>
    %cst_68 = arith.constant dense<0.000000e+00> : vector<2x48xf32>
    %308 = tpu.matmul %245, %10, %cst_68 {dimension_numbers = #tpu.dot_dimension_numbers<[1], [0], [0], [1], [0, 0, 1, 1], [], []>} : vector<2x12xf32>, vector<12x48xf32>, vector<2x48xf32> -> vector<2x48xf32>
    %cst_69 = arith.constant dense<0.000000e+00> : vector<2x48xf32>
    %309 = tpu.matmul %266, %12, %cst_69 {dimension_numbers = #tpu.dot_dimension_numbers<[1], [0], [0], [1], [0, 0, 1, 1], [], []>} : vector<2x12xf32>, vector<12x48xf32>, vector<2x48xf32> -> vector<2x48xf32>
    %310 = arith.addf %308, %309 : vector<2x48xf32>
    %311 = vector.broadcast %14 : vector<1x48xf32> to vector<2x48xf32>
    %312 = arith.addf %310, %311 : vector<2x48xf32>
    %313 = vector.extract_strided_slice %312 {offsets = [0, 0], sizes = [2, 36], strides = [1, 1]} : vector<2x48xf32> to vector<2x36xf32>
    %314 = arith.negf %313 : vector<2x36xf32>
    %315 = math.exp %314 : vector<2x36xf32>
    %cst_70 = arith.constant 1.000000e+00 : f32
    %316 = vector.broadcast %cst_70 : f32 to vector<2x36xf32>
    %317 = arith.addf %316, %315 : vector<2x36xf32>
    %318 = arith.divf %316, %317 : vector<2x36xf32>
    %319 = vector.extract_strided_slice %312 {offsets = [0, 36], sizes = [2, 12], strides = [1, 1]} : vector<2x48xf32> to vector<2x12xf32>
    %320 = math.tanh %319 : vector<2x12xf32>
    %321 = vector.extract_strided_slice %318 {offsets = [0, 0], sizes = [2, 12], strides = [1, 1]} : vector<2x36xf32> to vector<2x12xf32>
    %322 = vector.extract_strided_slice %318 {offsets = [0, 12], sizes = [2, 12], strides = [1, 1]} : vector<2x36xf32> to vector<2x12xf32>
    %323 = vector.extract_strided_slice %318 {offsets = [0, 24], sizes = [2, 12], strides = [1, 1]} : vector<2x36xf32> to vector<2x12xf32>
    %324 = arith.mulf %322, %264 : vector<2x12xf32>
    %325 = arith.mulf %321, %320 : vector<2x12xf32>
    %326 = arith.addf %324, %325 : vector<2x12xf32>
    %327 = math.tanh %326 : vector<2x12xf32>
    %328 = arith.mulf %323, %327 : vector<2x12xf32>
    %c6 = arith.constant 6 : index
    %c0_71 = arith.constant 0 : index
    %329 = vector.load %arg17[%c6, %c0_71] : memref<16x12xf32, #tpu.memory_space<vmem>>, vector<2x12xf32>
    tpu.vector_store %arg17[%c6, %c0_71], %328 {strides = array<i32>} : memref<16x12xf32, #tpu.memory_space<vmem>>, vector<2x12xf32>,
    %330 = vector.extract_strided_slice %21 {offsets = [12, 0], sizes = [2, 48], strides = [1, 1]} : vector<16x48xf32> to vector<2x48xf32>
    %cst_72 = arith.constant dense<0.000000e+00> : vector<2x48xf32>
    %331 = tpu.matmul %286, %2, %cst_72 {dimension_numbers = #tpu.dot_dimension_numbers<[1], [0], [0], [1], [0, 0, 1, 1], [], []>} : vector<2x12xf32>, vector<12x48xf32>, vector<2x48xf32> -> vector<2x48xf32>
    %332 = arith.addf %330, %331 : vector<2x48xf32>
    %333 = vector.extract_strided_slice %332 {offsets = [0, 0], sizes = [2, 36], strides = [1, 1]} : vector<2x48xf32> to vector<2x36xf32>
    %334 = arith.negf %333 : vector<2x36xf32>
    %335 = math.exp %334 : vector<2x36xf32>
    %cst_73 = arith.constant 1.000000e+00 : f32
    %336 = vector.broadcast %cst_73 : f32 to vector<2x36xf32>
    %337 = arith.addf %336, %335 : vector<2x36xf32>
    %338 = arith.divf %336, %337 : vector<2x36xf32>
    %339 = vector.extract_strided_slice %332 {offsets = [0, 36], sizes = [2, 12], strides = [1, 1]} : vector<2x48xf32> to vector<2x12xf32>
    %340 = math.tanh %339 : vector<2x12xf32>
    %341 = vector.extract_strided_slice %338 {offsets = [0, 0], sizes = [2, 12], strides = [1, 1]} : vector<2x36xf32> to vector<2x12xf32>
    %342 = vector.extract_strided_slice %338 {offsets = [0, 12], sizes = [2, 12], strides = [1, 1]} : vector<2x36xf32> to vector<2x12xf32>
    %343 = vector.extract_strided_slice %338 {offsets = [0, 24], sizes = [2, 12], strides = [1, 1]} : vector<2x36xf32> to vector<2x12xf32>
    %344 = arith.mulf %342, %284 : vector<2x12xf32>
    %345 = arith.mulf %341, %340 : vector<2x12xf32>
    %346 = arith.addf %344, %345 : vector<2x12xf32>
    %347 = math.tanh %346 : vector<2x12xf32>
    %348 = arith.mulf %343, %347 : vector<2x12xf32>
    %cst_74 = arith.constant dense<0.000000e+00> : vector<2x48xf32>
    %349 = tpu.matmul %286, %4, %cst_74 {dimension_numbers = #tpu.dot_dimension_numbers<[1], [0], [0], [1], [0, 0, 1, 1], [], []>} : vector<2x12xf32>, vector<12x48xf32>, vector<2x48xf32> -> vector<2x48xf32>
    %cst_75 = arith.constant dense<0.000000e+00> : vector<2x48xf32>
    %350 = tpu.matmul %307, %6, %cst_75 {dimension_numbers = #tpu.dot_dimension_numbers<[1], [0], [0], [1], [0, 0, 1, 1], [], []>} : vector<2x12xf32>, vector<12x48xf32>, vector<2x48xf32> -> vector<2x48xf32>
    %351 = arith.addf %349, %350 : vector<2x48xf32>
    %352 = vector.broadcast %8 : vector<1x48xf32> to vector<2x48xf32>
    %353 = arith.addf %351, %352 : vector<2x48xf32>
    %354 = vector.extract_strided_slice %353 {offsets = [0, 0], sizes = [2, 36], strides = [1, 1]} : vector<2x48xf32> to vector<2x36xf32>
    %355 = arith.negf %354 : vector<2x36xf32>
    %356 = math.exp %355 : vector<2x36xf32>
    %cst_76 = arith.constant 1.000000e+00 : f32
    %357 = vector.broadcast %cst_76 : f32 to vector<2x36xf32>
    %358 = arith.addf %357, %356 : vector<2x36xf32>
    %359 = arith.divf %357, %358 : vector<2x36xf32>
    %360 = vector.extract_strided_slice %353 {offsets = [0, 36], sizes = [2, 12], strides = [1, 1]} : vector<2x48xf32> to vector<2x12xf32>
    %361 = math.tanh %360 : vector<2x12xf32>
    %362 = vector.extract_strided_slice %359 {offsets = [0, 0], sizes = [2, 12], strides = [1, 1]} : vector<2x36xf32> to vector<2x12xf32>
    %363 = vector.extract_strided_slice %359 {offsets = [0, 12], sizes = [2, 12], strides = [1, 1]} : vector<2x36xf32> to vector<2x12xf32>
    %364 = vector.extract_strided_slice %359 {offsets = [0, 24], sizes = [2, 12], strides = [1, 1]} : vector<2x36xf32> to vector<2x12xf32>
    %365 = arith.mulf %363, %305 : vector<2x12xf32>
    %366 = arith.mulf %362, %361 : vector<2x12xf32>
    %367 = arith.addf %365, %366 : vector<2x12xf32>
    %368 = math.tanh %367 : vector<2x12xf32>
    %369 = arith.mulf %364, %368 : vector<2x12xf32>
    %cst_77 = arith.constant dense<0.000000e+00> : vector<2x48xf32>
    %370 = tpu.matmul %307, %10, %cst_77 {dimension_numbers = #tpu.dot_dimension_numbers<[1], [0], [0], [1], [0, 0, 1, 1], [], []>} : vector<2x12xf32>, vector<12x48xf32>, vector<2x48xf32> -> vector<2x48xf32>
    %cst_78 = arith.constant dense<0.000000e+00> : vector<2x48xf32>
    %371 = tpu.matmul %328, %12, %cst_78 {dimension_numbers = #tpu.dot_dimension_numbers<[1], [0], [0], [1], [0, 0, 1, 1], [], []>} : vector<2x12xf32>, vector<12x48xf32>, vector<2x48xf32> -> vector<2x48xf32>
    %372 = arith.addf %370, %371 : vector<2x48xf32>
    %373 = vector.broadcast %14 : vector<1x48xf32> to vector<2x48xf32>
    %374 = arith.addf %372, %373 : vector<2x48xf32>
    %375 = vector.extract_strided_slice %374 {offsets = [0, 0], sizes = [2, 36], strides = [1, 1]} : vector<2x48xf32> to vector<2x36xf32>
    %376 = arith.negf %375 : vector<2x36xf32>
    %377 = math.exp %376 : vector<2x36xf32>
    %cst_79 = arith.constant 1.000000e+00 : f32
    %378 = vector.broadcast %cst_79 : f32 to vector<2x36xf32>
    %379 = arith.addf %378, %377 : vector<2x36xf32>
    %380 = arith.divf %378, %379 : vector<2x36xf32>
    %381 = vector.extract_strided_slice %374 {offsets = [0, 36], sizes = [2, 12], strides = [1, 1]} : vector<2x48xf32> to vector<2x12xf32>
    %382 = math.tanh %381 : vector<2x12xf32>
    %383 = vector.extract_strided_slice %380 {offsets = [0, 0], sizes = [2, 12], strides = [1, 1]} : vector<2x36xf32> to vector<2x12xf32>
    %384 = vector.extract_strided_slice %380 {offsets = [0, 12], sizes = [2, 12], strides = [1, 1]} : vector<2x36xf32> to vector<2x12xf32>
    %385 = vector.extract_strided_slice %380 {offsets = [0, 24], sizes = [2, 12], strides = [1, 1]} : vector<2x36xf32> to vector<2x12xf32>
    %386 = arith.mulf %384, %326 : vector<2x12xf32>
    %387 = arith.mulf %383, %382 : vector<2x12xf32>
    %388 = arith.addf %386, %387 : vector<2x12xf32>
    %389 = math.tanh %388 : vector<2x12xf32>
    %390 = arith.mulf %385, %389 : vector<2x12xf32>
    %c8 = arith.constant 8 : index
    %c0_80 = arith.constant 0 : index
    %391 = vector.load %arg17[%c8, %c0_80] : memref<16x12xf32, #tpu.memory_space<vmem>>, vector<2x12xf32>
    tpu.vector_store %arg17[%c8, %c0_80], %390 {strides = array<i32>} : memref<16x12xf32, #tpu.memory_space<vmem>>, vector<2x12xf32>,
    %392 = vector.extract_strided_slice %21 {offsets = [14, 0], sizes = [2, 48], strides = [1, 1]} : vector<16x48xf32> to vector<2x48xf32>
    %cst_81 = arith.constant dense<0.000000e+00> : vector<2x48xf32>
    %393 = tpu.matmul %348, %2, %cst_81 {dimension_numbers = #tpu.dot_dimension_numbers<[1], [0], [0], [1], [0, 0, 1, 1], [], []>} : vector<2x12xf32>, vector<12x48xf32>, vector<2x48xf32> -> vector<2x48xf32>
    %394 = arith.addf %392, %393 : vector<2x48xf32>
    %395 = vector.extract_strided_slice %394 {offsets = [0, 0], sizes = [2, 36], strides = [1, 1]} : vector<2x48xf32> to vector<2x36xf32>
    %396 = arith.negf %395 : vector<2x36xf32>
    %397 = math.exp %396 : vector<2x36xf32>
    %cst_82 = arith.constant 1.000000e+00 : f32
    %398 = vector.broadcast %cst_82 : f32 to vector<2x36xf32>
    %399 = arith.addf %398, %397 : vector<2x36xf32>
    %400 = arith.divf %398, %399 : vector<2x36xf32>
    %401 = vector.extract_strided_slice %394 {offsets = [0, 36], sizes = [2, 12], strides = [1, 1]} : vector<2x48xf32> to vector<2x12xf32>
    %402 = math.tanh %401 : vector<2x12xf32>
    %403 = vector.extract_strided_slice %400 {offsets = [0, 0], sizes = [2, 12], strides = [1, 1]} : vector<2x36xf32> to vector<2x12xf32>
    %404 = vector.extract_strided_slice %400 {offsets = [0, 12], sizes = [2, 12], strides = [1, 1]} : vector<2x36xf32> to vector<2x12xf32>
    %405 = vector.extract_strided_slice %400 {offsets = [0, 24], sizes = [2, 12], strides = [1, 1]} : vector<2x36xf32> to vector<2x12xf32>
    %406 = arith.mulf %404, %346 : vector<2x12xf32>
    %407 = arith.mulf %403, %402 : vector<2x12xf32>
    %408 = arith.addf %406, %407 : vector<2x12xf32>
    %409 = math.tanh %408 : vector<2x12xf32>
    %410 = arith.mulf %405, %409 : vector<2x12xf32>
    %cst_83 = arith.constant dense<0.000000e+00> : vector<2x48xf32>
    %411 = tpu.matmul %348, %4, %cst_83 {dimension_numbers = #tpu.dot_dimension_numbers<[1], [0], [0], [1], [0, 0, 1, 1], [], []>} : vector<2x12xf32>, vector<12x48xf32>, vector<2x48xf32> -> vector<2x48xf32>
    %cst_84 = arith.constant dense<0.000000e+00> : vector<2x48xf32>
    %412 = tpu.matmul %369, %6, %cst_84 {dimension_numbers = #tpu.dot_dimension_numbers<[1], [0], [0], [1], [0, 0, 1, 1], [], []>} : vector<2x12xf32>, vector<12x48xf32>, vector<2x48xf32> -> vector<2x48xf32>
    %413 = arith.addf %411, %412 : vector<2x48xf32>
    %414 = vector.broadcast %8 : vector<1x48xf32> to vector<2x48xf32>
    %415 = arith.addf %413, %414 : vector<2x48xf32>
    %416 = vector.extract_strided_slice %415 {offsets = [0, 0], sizes = [2, 36], strides = [1, 1]} : vector<2x48xf32> to vector<2x36xf32>
    %417 = arith.negf %416 : vector<2x36xf32>
    %418 = math.exp %417 : vector<2x36xf32>
    %cst_85 = arith.constant 1.000000e+00 : f32
    %419 = vector.broadcast %cst_85 : f32 to vector<2x36xf32>
    %420 = arith.addf %419, %418 : vector<2x36xf32>
    %421 = arith.divf %419, %420 : vector<2x36xf32>
    %422 = vector.extract_strided_slice %415 {offsets = [0, 36], sizes = [2, 12], strides = [1, 1]} : vector<2x48xf32> to vector<2x12xf32>
    %423 = math.tanh %422 : vector<2x12xf32>
    %424 = vector.extract_strided_slice %421 {offsets = [0, 0], sizes = [2, 12], strides = [1, 1]} : vector<2x36xf32> to vector<2x12xf32>
    %425 = vector.extract_strided_slice %421 {offsets = [0, 12], sizes = [2, 12], strides = [1, 1]} : vector<2x36xf32> to vector<2x12xf32>
    %426 = vector.extract_strided_slice %421 {offsets = [0, 24], sizes = [2, 12], strides = [1, 1]} : vector<2x36xf32> to vector<2x12xf32>
    %427 = arith.mulf %425, %367 : vector<2x12xf32>
    %428 = arith.mulf %424, %423 : vector<2x12xf32>
    %429 = arith.addf %427, %428 : vector<2x12xf32>
    %430 = math.tanh %429 : vector<2x12xf32>
    %431 = arith.mulf %426, %430 : vector<2x12xf32>
    %cst_86 = arith.constant dense<0.000000e+00> : vector<2x48xf32>
    %432 = tpu.matmul %369, %10, %cst_86 {dimension_numbers = #tpu.dot_dimension_numbers<[1], [0], [0], [1], [0, 0, 1, 1], [], []>} : vector<2x12xf32>, vector<12x48xf32>, vector<2x48xf32> -> vector<2x48xf32>
    %cst_87 = arith.constant dense<0.000000e+00> : vector<2x48xf32>
    %433 = tpu.matmul %390, %12, %cst_87 {dimension_numbers = #tpu.dot_dimension_numbers<[1], [0], [0], [1], [0, 0, 1, 1], [], []>} : vector<2x12xf32>, vector<12x48xf32>, vector<2x48xf32> -> vector<2x48xf32>
    %434 = arith.addf %432, %433 : vector<2x48xf32>
    %435 = vector.broadcast %14 : vector<1x48xf32> to vector<2x48xf32>
    %436 = arith.addf %434, %435 : vector<2x48xf32>
    %437 = vector.extract_strided_slice %436 {offsets = [0, 0], sizes = [2, 36], strides = [1, 1]} : vector<2x48xf32> to vector<2x36xf32>
    %438 = arith.negf %437 : vector<2x36xf32>
    %439 = math.exp %438 : vector<2x36xf32>
    %cst_88 = arith.constant 1.000000e+00 : f32
    %440 = vector.broadcast %cst_88 : f32 to vector<2x36xf32>
    %441 = arith.addf %440, %439 : vector<2x36xf32>
    %442 = arith.divf %440, %441 : vector<2x36xf32>
    %443 = vector.extract_strided_slice %436 {offsets = [0, 36], sizes = [2, 12], strides = [1, 1]} : vector<2x48xf32> to vector<2x12xf32>
    %444 = math.tanh %443 : vector<2x12xf32>
    %445 = vector.extract_strided_slice %442 {offsets = [0, 0], sizes = [2, 12], strides = [1, 1]} : vector<2x36xf32> to vector<2x12xf32>
    %446 = vector.extract_strided_slice %442 {offsets = [0, 12], sizes = [2, 12], strides = [1, 1]} : vector<2x36xf32> to vector<2x12xf32>
    %447 = vector.extract_strided_slice %442 {offsets = [0, 24], sizes = [2, 12], strides = [1, 1]} : vector<2x36xf32> to vector<2x12xf32>
    %448 = arith.mulf %446, %388 : vector<2x12xf32>
    %449 = arith.mulf %445, %444 : vector<2x12xf32>
    %450 = arith.addf %448, %449 : vector<2x12xf32>
    %451 = math.tanh %450 : vector<2x12xf32>
    %452 = arith.mulf %447, %451 : vector<2x12xf32>
    %c10 = arith.constant 10 : index
    %c0_89 = arith.constant 0 : index
    %453 = vector.load %arg17[%c10, %c0_89] : memref<16x12xf32, #tpu.memory_space<vmem>>, vector<2x12xf32>
    tpu.vector_store %arg17[%c10, %c0_89], %452 {strides = array<i32>} : memref<16x12xf32, #tpu.memory_space<vmem>>, vector<2x12xf32>,
    %cst_90 = arith.constant dense<0.000000e+00> : vector<2x48xf32>
    %454 = tpu.matmul %410, %4, %cst_90 {dimension_numbers = #tpu.dot_dimension_numbers<[1], [0], [0], [1], [0, 0, 1, 1], [], []>} : vector<2x12xf32>, vector<12x48xf32>, vector<2x48xf32> -> vector<2x48xf32>
    %cst_91 = arith.constant dense<0.000000e+00> : vector<2x48xf32>
    %455 = tpu.matmul %431, %6, %cst_91 {dimension_numbers = #tpu.dot_dimension_numbers<[1], [0], [0], [1], [0, 0, 1, 1], [], []>} : vector<2x12xf32>, vector<12x48xf32>, vector<2x48xf32> -> vector<2x48xf32>
    %456 = arith.addf %454, %455 : vector<2x48xf32>
    %457 = vector.broadcast %8 : vector<1x48xf32> to vector<2x48xf32>
    %458 = arith.addf %456, %457 : vector<2x48xf32>
    %459 = vector.extract_strided_slice %458 {offsets = [0, 0], sizes = [2, 36], strides = [1, 1]} : vector<2x48xf32> to vector<2x36xf32>
    %460 = arith.negf %459 : vector<2x36xf32>
    %461 = math.exp %460 : vector<2x36xf32>
    %cst_92 = arith.constant 1.000000e+00 : f32
    %462 = vector.broadcast %cst_92 : f32 to vector<2x36xf32>
    %463 = arith.addf %462, %461 : vector<2x36xf32>
    %464 = arith.divf %462, %463 : vector<2x36xf32>
    %465 = vector.extract_strided_slice %458 {offsets = [0, 36], sizes = [2, 12], strides = [1, 1]} : vector<2x48xf32> to vector<2x12xf32>
    %466 = math.tanh %465 : vector<2x12xf32>
    %467 = vector.extract_strided_slice %464 {offsets = [0, 0], sizes = [2, 12], strides = [1, 1]} : vector<2x36xf32> to vector<2x12xf32>
    %468 = vector.extract_strided_slice %464 {offsets = [0, 12], sizes = [2, 12], strides = [1, 1]} : vector<2x36xf32> to vector<2x12xf32>
    %469 = vector.extract_strided_slice %464 {offsets = [0, 24], sizes = [2, 12], strides = [1, 1]} : vector<2x36xf32> to vector<2x12xf32>
    %470 = arith.mulf %468, %429 : vector<2x12xf32>
    %471 = arith.mulf %467, %466 : vector<2x12xf32>
    %472 = arith.addf %470, %471 : vector<2x12xf32>
    %473 = math.tanh %472 : vector<2x12xf32>
    %474 = arith.mulf %469, %473 : vector<2x12xf32>
    %cst_93 = arith.constant dense<0.000000e+00> : vector<2x48xf32>
    %475 = tpu.matmul %431, %10, %cst_93 {dimension_numbers = #tpu.dot_dimension_numbers<[1], [0], [0], [1], [0, 0, 1, 1], [], []>} : vector<2x12xf32>, vector<12x48xf32>, vector<2x48xf32> -> vector<2x48xf32>
    %cst_94 = arith.constant dense<0.000000e+00> : vector<2x48xf32>
    %476 = tpu.matmul %452, %12, %cst_94 {dimension_numbers = #tpu.dot_dimension_numbers<[1], [0], [0], [1], [0, 0, 1, 1], [], []>} : vector<2x12xf32>, vector<12x48xf32>, vector<2x48xf32> -> vector<2x48xf32>
    %477 = arith.addf %475, %476 : vector<2x48xf32>
    %478 = vector.broadcast %14 : vector<1x48xf32> to vector<2x48xf32>
    %479 = arith.addf %477, %478 : vector<2x48xf32>
    %480 = vector.extract_strided_slice %479 {offsets = [0, 0], sizes = [2, 36], strides = [1, 1]} : vector<2x48xf32> to vector<2x36xf32>
    %481 = arith.negf %480 : vector<2x36xf32>
    %482 = math.exp %481 : vector<2x36xf32>
    %cst_95 = arith.constant 1.000000e+00 : f32
    %483 = vector.broadcast %cst_95 : f32 to vector<2x36xf32>
    %484 = arith.addf %483, %482 : vector<2x36xf32>
    %485 = arith.divf %483, %484 : vector<2x36xf32>
    %486 = vector.extract_strided_slice %479 {offsets = [0, 36], sizes = [2, 12], strides = [1, 1]} : vector<2x48xf32> to vector<2x12xf32>
    %487 = math.tanh %486 : vector<2x12xf32>
    %488 = vector.extract_strided_slice %485 {offsets = [0, 0], sizes = [2, 12], strides = [1, 1]} : vector<2x36xf32> to vector<2x12xf32>
    %489 = vector.extract_strided_slice %485 {offsets = [0, 12], sizes = [2, 12], strides = [1, 1]} : vector<2x36xf32> to vector<2x12xf32>
    %490 = vector.extract_strided_slice %485 {offsets = [0, 24], sizes = [2, 12], strides = [1, 1]} : vector<2x36xf32> to vector<2x12xf32>
    %491 = arith.mulf %489, %450 : vector<2x12xf32>
    %492 = arith.mulf %488, %487 : vector<2x12xf32>
    %493 = arith.addf %491, %492 : vector<2x12xf32>
    %494 = math.tanh %493 : vector<2x12xf32>
    %495 = arith.mulf %490, %494 : vector<2x12xf32>
    %c12 = arith.constant 12 : index
    %c0_96 = arith.constant 0 : index
    %496 = vector.load %arg17[%c12, %c0_96] : memref<16x12xf32, #tpu.memory_space<vmem>>, vector<2x12xf32>
    tpu.vector_store %arg17[%c12, %c0_96], %495 {strides = array<i32>} : memref<16x12xf32, #tpu.memory_space<vmem>>, vector<2x12xf32>,
    %cst_97 = arith.constant dense<0.000000e+00> : vector<2x48xf32>
    %497 = tpu.matmul %474, %10, %cst_97 {dimension_numbers = #tpu.dot_dimension_numbers<[1], [0], [0], [1], [0, 0, 1, 1], [], []>} : vector<2x12xf32>, vector<12x48xf32>, vector<2x48xf32> -> vector<2x48xf32>
    %cst_98 = arith.constant dense<0.000000e+00> : vector<2x48xf32>
    %498 = tpu.matmul %495, %12, %cst_98 {dimension_numbers = #tpu.dot_dimension_numbers<[1], [0], [0], [1], [0, 0, 1, 1], [], []>} : vector<2x12xf32>, vector<12x48xf32>, vector<2x48xf32> -> vector<2x48xf32>
    %499 = arith.addf %497, %498 : vector<2x48xf32>
    %500 = vector.broadcast %14 : vector<1x48xf32> to vector<2x48xf32>
    %501 = arith.addf %499, %500 : vector<2x48xf32>
    %502 = vector.extract_strided_slice %501 {offsets = [0, 0], sizes = [2, 36], strides = [1, 1]} : vector<2x48xf32> to vector<2x36xf32>
    %503 = arith.negf %502 : vector<2x36xf32>
    %504 = math.exp %503 : vector<2x36xf32>
    %cst_99 = arith.constant 1.000000e+00 : f32
    %505 = vector.broadcast %cst_99 : f32 to vector<2x36xf32>
    %506 = arith.addf %505, %504 : vector<2x36xf32>
    %507 = arith.divf %505, %506 : vector<2x36xf32>
    %508 = vector.extract_strided_slice %501 {offsets = [0, 36], sizes = [2, 12], strides = [1, 1]} : vector<2x48xf32> to vector<2x12xf32>
    %509 = math.tanh %508 : vector<2x12xf32>
    %510 = vector.extract_strided_slice %507 {offsets = [0, 0], sizes = [2, 12], strides = [1, 1]} : vector<2x36xf32> to vector<2x12xf32>
    %511 = vector.extract_strided_slice %507 {offsets = [0, 12], sizes = [2, 12], strides = [1, 1]} : vector<2x36xf32> to vector<2x12xf32>
    %512 = vector.extract_strided_slice %507 {offsets = [0, 24], sizes = [2, 12], strides = [1, 1]} : vector<2x36xf32> to vector<2x12xf32>
    %513 = arith.mulf %511, %493 : vector<2x12xf32>
    %514 = arith.mulf %510, %509 : vector<2x12xf32>
    %515 = arith.addf %513, %514 : vector<2x12xf32>
    %516 = math.tanh %515 : vector<2x12xf32>
    %517 = arith.mulf %512, %516 : vector<2x12xf32>
    %c14 = arith.constant 14 : index
    %c0_100 = arith.constant 0 : index
    %518 = vector.load %arg17[%c14, %c0_100] : memref<16x12xf32, #tpu.memory_space<vmem>>, vector<2x12xf32>
    tpu.vector_store %arg17[%c14, %c0_100], %517 {strides = array<i32>} : memref<16x12xf32, #tpu.memory_space<vmem>>, vector<2x12xf32>,
    %c0_101 = arith.constant 0 : index
    %c0_102 = arith.constant 0 : index
    %519 = vector.load %arg17[%c0_101, %c0_102] : memref<16x12xf32, #tpu.memory_space<vmem>>, vector<16x12xf32>
    %c0_103 = arith.constant 0 : index
    %c0_104 = arith.constant 0 : index
    %520 = vector.load %arg15[%c0_103, %c0_104] : memref<16x16xf32, #tpu.memory_space<vmem>>, vector<16x16xf32>
    %c0_105 = arith.constant 0 : index
    %c0_106 = arith.constant 0 : index
    %521 = vector.load %arg4[%c0_105, %c0_106] : memref<12x64xf32, #tpu.memory_space<vmem>>, vector<12x64xf32>
    %cst_107 = arith.constant dense<0.000000e+00> : vector<16x64xf32>
    %522 = tpu.matmul %519, %521, %cst_107 {dimension_numbers = #tpu.dot_dimension_numbers<[1], [0], [0], [1], [0, 0, 1, 1], [], []>} : vector<16x12xf32>, vector<12x64xf32>, vector<16x64xf32> -> vector<16x64xf32>
    %c0_108 = arith.constant 0 : index
    %c0_109 = arith.constant 0 : index
    %523 = vector.load %arg5[%c0_108, %c0_109] : memref<1x64xf32, #tpu.memory_space<vmem>>, vector<1x64xf32>
    %524 = vector.broadcast %523 : vector<1x64xf32> to vector<16x64xf32>
    %525 = arith.addf %522, %524 : vector<16x64xf32>
    %c0_110 = arith.constant 0 : index
    %c0_111 = arith.constant 0 : index
    %526 = vector.load %arg6[%c0_110, %c0_111] : memref<1x64xf32, #tpu.memory_space<vmem>>, vector<1x64xf32>
    %c0_112 = arith.constant 0 : index
    %c0_113 = arith.constant 0 : index
    %527 = vector.load %arg7[%c0_112, %c0_113] : memref<1x64xf32, #tpu.memory_space<vmem>>, vector<1x64xf32>
    %cst_114 = arith.constant dense<0.000000e+00> : vector<16x64xf32>
    %528 = tpu.matmul %520, %525, %cst_114 {dimension_numbers = #tpu.dot_dimension_numbers<[1], [0], [0], [1], [0, 0, 1, 1], [], []>} : vector<16x16xf32>, vector<16x64xf32>, vector<16x64xf32> -> vector<16x64xf32>
    %529 = arith.subf %525, %528 : vector<16x64xf32>
    %530 = arith.mulf %529, %529 : vector<16x64xf32>
    %cst_115 = arith.constant dense<0.000000e+00> : vector<16x64xf32>
    %531 = tpu.matmul %520, %530, %cst_115 {dimension_numbers = #tpu.dot_dimension_numbers<[1], [0], [0], [1], [0, 0, 1, 1], [], []>} : vector<16x16xf32>, vector<16x64xf32>, vector<16x64xf32> -> vector<16x64xf32>
    %cst_116 = arith.constant 9.99999974E-6 : f32
    %532 = vector.broadcast %cst_116 : f32 to vector<16x64xf32>
    %533 = arith.addf %531, %532 : vector<16x64xf32>
    %534 = math.rsqrt %533 : vector<16x64xf32>
    %535 = arith.mulf %529, %534 : vector<16x64xf32>
    %536 = vector.broadcast %526 : vector<1x64xf32> to vector<16x64xf32>
    %537 = arith.mulf %535, %536 : vector<16x64xf32>
    %538 = vector.broadcast %527 : vector<1x64xf32> to vector<16x64xf32>
    %539 = arith.addf %537, %538 : vector<16x64xf32>
    %cst_117 = arith.constant 0.000000e+00 : f32
    %540 = vector.broadcast %cst_117 : f32 to vector<16x64xf32>
    %541 = arith.maximumf %539, %540 : vector<16x64xf32>
    %c0_118 = arith.constant 0 : index
    %c0_119 = arith.constant 0 : index
    %542 = vector.load %arg8[%c0_118, %c0_119] : memref<64x128xf32, #tpu.memory_space<vmem>>, vector<64x128xf32>
    %cst_120 = arith.constant dense<0.000000e+00> : vector<16x128xf32>
    %543 = tpu.matmul %541, %542, %cst_120 {dimension_numbers = #tpu.dot_dimension_numbers<[1], [0], [0], [1], [0, 0, 1, 1], [], []>} : vector<16x64xf32>, vector<64x128xf32>, vector<16x128xf32> -> vector<16x128xf32>
    %c0_121 = arith.constant 0 : index
    %c0_122 = arith.constant 0 : index
    %544 = vector.load %arg9[%c0_121, %c0_122] : memref<1x128xf32, #tpu.memory_space<vmem>>, vector<1x128xf32>
    %545 = vector.broadcast %544 : vector<1x128xf32> to vector<16x128xf32>
    %546 = arith.addf %543, %545 : vector<16x128xf32>
    %c0_123 = arith.constant 0 : index
    %c0_124 = arith.constant 0 : index
    %547 = vector.load %arg10[%c0_123, %c0_124] : memref<1x128xf32, #tpu.memory_space<vmem>>, vector<1x128xf32>
    %c0_125 = arith.constant 0 : index
    %c0_126 = arith.constant 0 : index
    %548 = vector.load %arg11[%c0_125, %c0_126] : memref<1x128xf32, #tpu.memory_space<vmem>>, vector<1x128xf32>
    %cst_127 = arith.constant dense<0.000000e+00> : vector<16x128xf32>
    %549 = tpu.matmul %520, %546, %cst_127 {dimension_numbers = #tpu.dot_dimension_numbers<[1], [0], [0], [1], [0, 0, 1, 1], [], []>} : vector<16x16xf32>, vector<16x128xf32>, vector<16x128xf32> -> vector<16x128xf32>
    %550 = arith.subf %546, %549 : vector<16x128xf32>
    %551 = arith.mulf %550, %550 : vector<16x128xf32>
    %cst_128 = arith.constant dense<0.000000e+00> : vector<16x128xf32>
    %552 = tpu.matmul %520, %551, %cst_128 {dimension_numbers = #tpu.dot_dimension_numbers<[1], [0], [0], [1], [0, 0, 1, 1], [], []>} : vector<16x16xf32>, vector<16x128xf32>, vector<16x128xf32> -> vector<16x128xf32>
    %cst_129 = arith.constant 9.99999974E-6 : f32
    %553 = vector.broadcast %cst_129 : f32 to vector<16x128xf32>
    %554 = arith.addf %552, %553 : vector<16x128xf32>
    %555 = math.rsqrt %554 : vector<16x128xf32>
    %556 = arith.mulf %550, %555 : vector<16x128xf32>
    %557 = vector.broadcast %547 : vector<1x128xf32> to vector<16x128xf32>
    %558 = arith.mulf %556, %557 : vector<16x128xf32>
    %559 = vector.broadcast %548 : vector<1x128xf32> to vector<16x128xf32>
    %560 = arith.addf %558, %559 : vector<16x128xf32>
    %cst_130 = arith.constant 0.000000e+00 : f32
    %561 = vector.broadcast %cst_130 : f32 to vector<16x128xf32>
    %562 = arith.maximumf %560, %561 : vector<16x128xf32>
    %c0_131 = arith.constant 0 : index
    %c0_132 = arith.constant 0 : index
    %563 = vector.load %arg12[%c0_131, %c0_132] : memref<128x6xf32, #tpu.memory_space<vmem>>, vector<128x6xf32>
    %cst_133 = arith.constant dense<0.000000e+00> : vector<16x6xf32>
    %564 = tpu.matmul %562, %563, %cst_133 {dimension_numbers = #tpu.dot_dimension_numbers<[1], [0], [0], [1], [0, 0, 1, 1], [], []>} : vector<16x128xf32>, vector<128x6xf32>, vector<16x6xf32> -> vector<16x6xf32>
    %c0_134 = arith.constant 0 : index
    %c0_135 = arith.constant 0 : index
    %565 = vector.load %arg13[%c0_134, %c0_135] : memref<1x6xf32, #tpu.memory_space<vmem>>, vector<1x6xf32>
    %566 = vector.broadcast %565 : vector<1x6xf32> to vector<16x6xf32>
    %567 = arith.addf %564, %566 : vector<16x6xf32>
    %c0_136 = arith.constant 0 : index
    %c0_137 = arith.constant 0 : index
    %568 = vector.load %arg14[%c0_136, %c0_137] : memref<12x768xf32, #tpu.memory_space<vmem>>, vector<12x768xf32>
    %cst_138 = arith.constant dense<0.000000e+00> : vector<16x768xf32>
    %569 = tpu.matmul %0, %568, %cst_138 {dimension_numbers = #tpu.dot_dimension_numbers<[1], [0], [0], [1], [0, 0, 1, 1], [], []>} : vector<16x12xf32>, vector<12x768xf32>, vector<16x768xf32> -> vector<16x768xf32>
    %570 = vector.extract_strided_slice %567 {offsets = [0, 0], sizes = [16, 1], strides = [1, 1]} : vector<16x6xf32> to vector<16x1xf32>
    %571 = vector.extract_strided_slice %569 {offsets = [0, 0], sizes = [16, 12], strides = [1, 1]} : vector<16x768xf32> to vector<16x12xf32>
    %572 = vector.broadcast %570 : vector<16x1xf32> to vector<16x12xf32>
    %573 = arith.mulf %572, %571 : vector<16x12xf32>
    %574 = arith.addf %0, %573 : vector<16x12xf32>
    %575 = vector.extract_strided_slice %567 {offsets = [0, 1], sizes = [16, 1], strides = [1, 1]} : vector<16x6xf32> to vector<16x1xf32>
    %576 = vector.extract_strided_slice %569 {offsets = [0, 128], sizes = [16, 12], strides = [1, 1]} : vector<16x768xf32> to vector<16x12xf32>
    %577 = vector.broadcast %575 : vector<16x1xf32> to vector<16x12xf32>
    %578 = arith.mulf %577, %576 : vector<16x12xf32>
    %579 = arith.addf %574, %578 : vector<16x12xf32>
    %580 = vector.extract_strided_slice %567 {offsets = [0, 2], sizes = [16, 1], strides = [1, 1]} : vector<16x6xf32> to vector<16x1xf32>
    %581 = vector.extract_strided_slice %569 {offsets = [0, 256], sizes = [16, 12], strides = [1, 1]} : vector<16x768xf32> to vector<16x12xf32>
    %582 = vector.broadcast %580 : vector<16x1xf32> to vector<16x12xf32>
    %583 = arith.mulf %582, %581 : vector<16x12xf32>
    %584 = arith.addf %579, %583 : vector<16x12xf32>
    %585 = vector.extract_strided_slice %567 {offsets = [0, 3], sizes = [16, 1], strides = [1, 1]} : vector<16x6xf32> to vector<16x1xf32>
    %586 = vector.extract_strided_slice %569 {offsets = [0, 384], sizes = [16, 12], strides = [1, 1]} : vector<16x768xf32> to vector<16x12xf32>
    %587 = vector.broadcast %585 : vector<16x1xf32> to vector<16x12xf32>
    %588 = arith.mulf %587, %586 : vector<16x12xf32>
    %589 = arith.addf %584, %588 : vector<16x12xf32>
    %590 = vector.extract_strided_slice %567 {offsets = [0, 4], sizes = [16, 1], strides = [1, 1]} : vector<16x6xf32> to vector<16x1xf32>
    %591 = vector.extract_strided_slice %569 {offsets = [0, 512], sizes = [16, 12], strides = [1, 1]} : vector<16x768xf32> to vector<16x12xf32>
    %592 = vector.broadcast %590 : vector<16x1xf32> to vector<16x12xf32>
    %593 = arith.mulf %592, %591 : vector<16x12xf32>
    %594 = arith.addf %589, %593 : vector<16x12xf32>
    %595 = vector.extract_strided_slice %567 {offsets = [0, 5], sizes = [16, 1], strides = [1, 1]} : vector<16x6xf32> to vector<16x1xf32>
    %596 = vector.extract_strided_slice %569 {offsets = [0, 640], sizes = [16, 12], strides = [1, 1]} : vector<16x768xf32> to vector<16x12xf32>
    %597 = vector.broadcast %595 : vector<16x1xf32> to vector<16x12xf32>
    %598 = arith.mulf %597, %596 : vector<16x12xf32>
    %599 = arith.addf %594, %598 : vector<16x12xf32>
    %c0_139 = arith.constant 0 : index
    %c0_140 = arith.constant 0 : index
    %600 = vector.load %arg16[%c0_139, %c0_140] : memref<16x12xf32, #tpu.memory_space<vmem>>, vector<16x12xf32>
    tpu.vector_store %arg16[%c0_139, %c0_140], %599 {strides = array<i32>} : memref<16x12xf32, #tpu.memory_space<vmem>>, vector<16x12xf32>,
    return
  }
}

</mosaic_0001>

<llo_original>
// kernel: tpu_custom_call.1
$region0: #{tpu_custom_call.1}
  #allocation0 [shape = 'u32[]', space=smem, size = 0x4, offset = 0x4, fixed_abs, tag = 'smem constant byte address 0x4 - core index']
  #allocation1 [shape = 'u32[72,128]{1,0:T(1,128)}', space=vmem, size = 0x9000, scoped, tag = 'internal scratch']
  #allocation2 [shape = 'f32[16,12]{1,0:T(8,128)}', space=vmem, size = 0x2000, scoped, tag = 'scratch operand']
  %s0 = inlined_call_operand.vmem [shape: f32[16,12], index: 0, kind: input, shape index: {}]
  %s1 = inlined_call_operand.hbm [shape: f32[3,12,48], index: 1, kind: input, shape index: {}]
  %s2 = inlined_call_operand.hbm [shape: f32[3,12,48], index: 2, kind: input, shape index: {}]
  %s3 = inlined_call_operand.vmem [shape: f32[3,1,48], index: 3, kind: input, shape index: {}]
  %s4 = inlined_call_operand.vmem [shape: f32[12,64], index: 4, kind: input, shape index: {}]
  %s5 = inlined_call_operand.vmem [shape: f32[1,64], index: 5, kind: input, shape index: {}]
  %s6 = inlined_call_operand.vmem [shape: f32[1,64], index: 6, kind: input, shape index: {}]
  %s7 = inlined_call_operand.vmem [shape: f32[1,64], index: 7, kind: input, shape index: {}]
  %s8 = inlined_call_operand.hbm [shape: f32[64,128], index: 8, kind: input, shape index: {}]
  %s9 = inlined_call_operand.vmem [shape: f32[1,128], index: 9, kind: input, shape index: {}]
  %s10 = inlined_call_operand.vmem [shape: f32[1,128], index: 10, kind: input, shape index: {}]
  %s11 = inlined_call_operand.vmem [shape: f32[1,128], index: 11, kind: input, shape index: {}]
  %s12 = inlined_call_operand.vmem [shape: f32[128,6], index: 12, kind: input, shape index: {}]
  %s13 = inlined_call_operand.vmem [shape: f32[1,6], index: 13, kind: input, shape index: {}]
  %s14 = inlined_call_operand.vmem [shape: f32[12,768], index: 14, kind: input, shape index: {}]
  %s15 = inlined_call_operand.hbm [shape: f32[16,16], index: 15, kind: input, shape index: {}]
  %s16 = inlined_call_operand.hbm [shape: f32[16,12], index: 16, kind: output, shape index: {}]
  %s17 = sld [smem:[#allocation0]]
  $region90: #{tpu_custom_call.1} parent=0
    _
  %s19 = ssub.s32 1, %s17
  %s20 = scalar_select 0, %s19, %s17
  $region1: #{tpu_custom_call.1} parent=0
    #allocation3 [shape = 'u8[24576]{0}', space=vmem, size = 0x6000, scoped, tag = 'input window, operand 1, single buffered']
    #allocation4 [shape = 's32[1]{0}', space=sflag, size = 0x4, scoped, tag = 'scoped memory for tpu_custom_call.1']
    #allocation5 [shape = 's32[1]{0}', space=sflag, size = 0x4, scoped, tag = 'scoped memory for tpu_custom_call.1']
    #allocation6 [shape = 'u8[24576]{0}', space=vmem, size = 0x6000, scoped, tag = 'input window, operand 2, single buffered']
    #allocation7 [shape = 's32[1]{0}', space=sflag, size = 0x4, scoped, tag = 'scoped memory for tpu_custom_call.1']
    #allocation8 [shape = 'u8[32768]{0}', space=vmem, size = 0x8000, scoped, tag = 'input window, operand 8, single buffered']
    #allocation9 [shape = 'u8[8192]{0}', space=vmem, size = 0x2000, scoped, tag = 'input window, operand 15, single buffered']
    #allocation10 [shape = 's32[1]{0}', space=sflag, size = 0x4, scoped, tag = 'scoped memory for tpu_custom_call.1']
    #allocation11 [shape = 'u8[8192]{0}', space=vmem, size = 0x2000, scoped, tag = 'output window, operand 0, single buffered']
    %21 = vsyncpa [#allocation4], 0
    %22 = vsyncpa [#allocation7], 0
    %23 = vsyncpa [#allocation10], 0
    %24 = vsyncpa [#allocation5], 0
    // Predicated region
    $region2: #{tpu_custom_call.1} parent=1 // pred_check
      _
    $region3: #{tpu_custom_call.1} parent=1 // pred_check_branch
      %26 = sbr.rel (0) target = $region5
    $region4: #{tpu_custom_call.1} parent=1 // pred_region
      _
    $region5: #{tpu_custom_call.1} parent=1 // pred_fallthru
      _
    // Predicated region
    $region6: #{tpu_custom_call.1} parent=1 // pred_check
      _
    $region7: #{tpu_custom_call.1} parent=1 // pred_check_branch
      %28 = sbr.rel (0) target = $region9
    $region8: #{tpu_custom_call.1} parent=1 // pred_region
      %30 = vsyncadd [#allocation4], 0
      %s31 = sshll.u32 %s1, 4
      %s32 = int_to_ptr.hbm [resolvable:$true] %s31
      %s33 = sshll.u32 [#allocation3], 4
      %s34 = int_to_ptr.vmem [resolvable:$true] %s33
      %39 = dma.hbm_to_vmem [thread:$0]  %s32, 768, %s34, [#allocation4], 128, 128, 8
    $region9: #{tpu_custom_call.1} parent=1 // pred_fallthru
      _
    // Predicated region
    $region10: #{tpu_custom_call.1} parent=1 // pred_check
      _
    $region11: #{tpu_custom_call.1} parent=1 // pred_check_branch
      %41 = sbr.rel (0) target = $region13
    $region12: #{tpu_custom_call.1} parent=1 // pred_region
      %43 = vsyncadd [#allocation7], 0
      %s44 = sshll.u32 %s2, 4
      %s45 = int_to_ptr.hbm [resolvable:$true] %s44
      %s46 = sshll.u32 [#allocation6], 4
      %s47 = int_to_ptr.vmem [resolvable:$true] %s46
      %52 = dma.hbm_to_vmem [thread:$0]  %s45, 768, %s47, [#allocation7], 128, 128, 8
    $region13: #{tpu_custom_call.1} parent=1 // pred_fallthru
      _
    // Predicated region
    $region14: #{tpu_custom_call.1} parent=1 // pred_check
      _
    $region15: #{tpu_custom_call.1} parent=1 // pred_check_branch
      %54 = sbr.rel (0) target = $region17
    $region16: #{tpu_custom_call.1} parent=1 // pred_region
      _
    $region17: #{tpu_custom_call.1} parent=1 // pred_fallthru
      _
    // Predicated region
    $region18: #{tpu_custom_call.1} parent=1 // pred_check
      _
    $region19: #{tpu_custom_call.1} parent=1 // pred_check_branch
      %56 = sbr.rel (0) target = $region21
    $region20: #{tpu_custom_call.1} parent=1 // pred_region
      _
    $region21: #{tpu_custom_call.1} parent=1 // pred_fallthru
      _
    // Predicated region
    $region22: #{tpu_custom_call.1} parent=1 // pred_check
      _
    $region23: #{tpu_custom_call.1} parent=1 // pred_check_branch
      %58 = sbr.rel (0) target = $region25
    $region24: #{tpu_custom_call.1} parent=1 // pred_region
      _
    $region25: #{tpu_custom_call.1} parent=1 // pred_fallthru
      _
    // Predicated region
    $region26: #{tpu_custom_call.1} parent=1 // pred_check
      _
    $region27: #{tpu_custom_call.1} parent=1 // pred_check_branch
      %60 = sbr.rel (0) target = $region29
    $region28: #{tpu_custom_call.1} parent=1 // pred_region
      _
    $region29: #{tpu_custom_call.1} parent=1 // pred_fallthru
      _
    // Predicated region
    $region30: #{tpu_custom_call.1} parent=1 // pred_check
      _
    $region31: #{tpu_custom_call.1} parent=1 // pred_check_branch
      %62 = sbr.rel (0) target = $region33
    $region32: #{tpu_custom_call.1} parent=1 // pred_region
      _
    $region33: #{tpu_custom_call.1} parent=1 // pred_fallthru
      _
    // Predicated region
    $region34: #{tpu_custom_call.1} parent=1 // pred_check
      _
    $region35: #{tpu_custom_call.1} parent=1 // pred_check_branch
      %64 = sbr.rel (0) target = $region37
    $region36: #{tpu_custom_call.1} parent=1 // pred_region
      %66 = vsyncadd [#allocation7], 0
      %s67 = sshll.u32 %s8, 4
      %s68 = int_to_ptr.hbm [resolvable:$true] %s67
      %s69 = sshll.u32 [#allocation8], 4
      %s70 = int_to_ptr.vmem [resolvable:$true] %s69
      %75 = dma.hbm_to_vmem [thread:$0]  %s68, 1024, %s70, [#allocation7], 128, 128, 8
    $region37: #{tpu_custom_call.1} parent=1 // pred_fallthru
      _
    // Predicated region
    $region38: #{tpu_custom_call.1} parent=1 // pred_check
      _
    $region39: #{tpu_custom_call.1} parent=1 // pred_check_branch
      %77 = sbr.rel (0) target = $region41
    $region40: #{tpu_custom_call.1} parent=1 // pred_region
      _
    $region41: #{tpu_custom_call.1} parent=1 // pred_fallthru
      _
    // Predicated region
    $region42: #{tpu_custom_call.1} parent=1 // pred_check
      _
    $region43: #{tpu_custom_call.1} parent=1 // pred_check_branch
      %79 = sbr.rel (0) target = $region45
    $region44: #{tpu_custom_call.1} parent=1 // pred_region
      _
    $region45: #{tpu_custom_call.1} parent=1 // pred_fallthru
      _
    // Predicated region
    $region46: #{tpu_custom_call.1} parent=1 // pred_check
      _
    $region47: #{tpu_custom_call.1} parent=1 // pred_check_branch
      %81 = sbr.rel (0) target = $region49
    $region48: #{tpu_custom_call.1} parent=1 // pred_region
      _
    $region49: #{tpu_custom_call.1} parent=1 // pred_fallthru
      _
    // Predicated region
    $region50: #{tpu_custom_call.1} parent=1 // pred_check
      _
    $region51: #{tpu_custom_call.1} parent=1 // pred_check_branch
      %83 = sbr.rel (0) target = $region53
    $region52: #{tpu_custom_call.1} parent=1 // pred_region
      _
    $region53: #{tpu_custom_call.1} parent=1 // pred_fallthru
      _
    // Predicated region
    $region54: #{tpu_custom_call.1} parent=1 // pred_check
      _
    $region55: #{tpu_custom_call.1} parent=1 // pred_check_branch
      %85 = sbr.rel (0) target = $region57
    $region56: #{tpu_custom_call.1} parent=1 // pred_region
      _
    $region57: #{tpu_custom_call.1} parent=1 // pred_fallthru
      _
    // Predicated region
    $region58: #{tpu_custom_call.1} parent=1 // pred_check
      _
    $region59: #{tpu_custom_call.1} parent=1 // pred_check_branch
      %87 = sbr.rel (0) target = $region61
    $region60: #{tpu_custom_call.1} parent=1 // pred_region
      _
    $region61: #{tpu_custom_call.1} parent=1 // pred_fallthru
      _
    // Predicated region
    $region62: #{tpu_custom_call.1} parent=1 // pred_check
      _
    $region63: #{tpu_custom_call.1} parent=1 // pred_check_branch
      %89 = sbr.rel (0) target = $region65
    $region64: #{tpu_custom_call.1} parent=1 // pred_region
      %91 = vsyncadd [#allocation10], 0
      %s92 = sshll.u32 %s15, 4
      %s93 = int_to_ptr.hbm [resolvable:$true] %s92
      %s94 = sshll.u32 [#allocation9], 4
      %s95 = int_to_ptr.vmem [resolvable:$true] %s94
      %100 = dma.hbm_to_vmem [thread:$0]  %s93, 256, %s95, [#allocation10], 128, 128, 8
    $region65: #{tpu_custom_call.1} parent=1 // pred_fallthru
      _
    // Predicated region
    $region66: #{tpu_custom_call.1} parent=1 // pred_check
      _
    $region67: #{tpu_custom_call.1} parent=1 // pred_check_branch
      %102 = sbr.rel (0) target = $region69
    $region68: #{tpu_custom_call.1} parent=1 // pred_region
      %104 = dma.done [#allocation4], 768
    $region69: #{tpu_custom_call.1} parent=1 // pred_fallthru
      _
    // Predicated region
    $region70: #{tpu_custom_call.1} parent=1 // pred_check
      _
    $region71: #{tpu_custom_call.1} parent=1 // pred_check_branch
      %106 = sbr.rel (0) target = $region73
    $region72: #{tpu_custom_call.1} parent=1 // pred_region
      %108 = dma.done [#allocation7], 768
    $region73: #{tpu_custom_call.1} parent=1 // pred_fallthru
      _
    // Predicated region
    $region74: #{tpu_custom_call.1} parent=1 // pred_check
      _
    $region75: #{tpu_custom_call.1} parent=1 // pred_check_branch
      %110 = sbr.rel (0) target = $region77
    $region76: #{tpu_custom_call.1} parent=1 // pred_region
      %112 = dma.done [#allocation7], 1024
    $region77: #{tpu_custom_call.1} parent=1 // pred_fallthru
      _
    // Predicated region
    $region78: #{tpu_custom_call.1} parent=1 // pred_check
      _
    $region79: #{tpu_custom_call.1} parent=1 // pred_check_branch
      %114 = sbr.rel (0) target = $region81
    $region80: #{tpu_custom_call.1} parent=1 // pred_region
      %116 = dma.done [#allocation10], 256
    $region81: #{tpu_custom_call.1} parent=1 // pred_fallthru
      _
    %v117 = vld [vmem:[%s0] sm:$0xff]
    %v118 = vld [vmem:[%s0 + $0x8] sm:$0xff]
    %v119 = vld [vmem:[#allocation6] sm:$0xff]
    %v120 = vld [vmem:[#allocation6 + $0x8] sm:$0xf]
    %s121 = scalar_lea.vmem [#allocation3], 16
    %v122 = vld [vmem:[%s121] sm:$0xff]
    %v123 = vld [vmem:[%s121 + $0x8] sm:$0xf]
    %s124 = scalar_lea.vmem [#allocation6], 16
    %v125 = vld [vmem:[%s124] sm:$0xff]
    %v126 = vld [vmem:[%s124 + $0x8] sm:$0xf]
    %s127 = scalar_lea.vmem %s3, 1
    %v128 = vld [vmem:[%s127] sm:$0x1]
    %s129 = scalar_lea.vmem [#allocation3], 32
    %v130 = vld [vmem:[%s129] sm:$0xff]
    %v131 = vld [vmem:[%s129 + $0x8] sm:$0xf]
    %s132 = scalar_lea.vmem [#allocation6], 32
    %v133 = vld [vmem:[%s132] sm:$0xff]
    %v134 = vld [vmem:[%s132 + $0x8] sm:$0xf]
    %s135 = scalar_lea.vmem %s3, 2
    %v136 = vld [vmem:[%s135] sm:$0x1]
    %v137 = vld [vmem:[#allocation3] sm:$0xff]
    %v138 = vld [vmem:[#allocation3 + $0x8] sm:$0xf]
    %v139 = vld [vmem:[%s3] sm:$0x1]
    %v141 = vperm.slane %v139, 0
    %vm143 = vcmask 97280
    %v145 = vsel %vm143, %v117, 0
    %v148 = vsel %vm143, %v118, 0
    %vm150 = vcmask 1043456
    %v152 = vsel %vm150, %v138, 0
    %154 = vmatpush.msra.mxu0 0.0
    %155 = vmatpush.msra.mxu0 0.0
    %156 = vmatpush.msra.mxu0 0.0
    %157 = vmatpush.msra.mxu0 0.0
    %158 = vmatpush.msra.mxu0 0.0
    %159 = vmatpush.msra.mxu0 0.0
    %160 = vmatpush.msra.mxu0 0.0
    %161 = vmatpush.msra.mxu0 0.0
    %162 = vmatpush.msra.mxu0 0.0
    %163 = vmatpush.msra.mxu0 0.0
    %164 = vmatpush.msra.mxu0 0.0
    %165 = vmatpush.msra.mxu0 0.0
    %166 = vmatpush.msra.mxu0 0.0
    %167 = vmatpush.msra.mxu0 0.0
    %168 = vmatpush.msra.mxu0 %v152
    %169 = vmatpush.msra.mxu0 %v137
    %170 = vmatmul.f32.gmra.mxu0 %v145
    %v171 = vpop.f32.mrf.mxu0
    %v172 = vadd.f32 %v141, %v171
    %173 = vmatmul.f32.gmra.mxu0 %v148
    %v174 = vpop.f32.mrf.mxu0
    %v175 = vadd.f32 %v141, %v174
    %176 = vdwg.mxu0
    %v178 = vsel %vm143, 0.0, 0
    %v181 = vsel %vm150, %v120, 0
    %183 = vmatpush.msra.mxu0 0.0
    %184 = vmatpush.msra.mxu0 0.0
    %185 = vmatpush.msra.mxu0 0.0
    %186 = vmatpush.msra.mxu0 0.0
    %187 = vmatpush.msra.mxu0 0.0
    %188 = vmatpush.msra.mxu0 0.0
    %189 = vmatpush.msra.mxu0 0.0
    %190 = vmatpush.msra.mxu0 0.0
    %191 = vmatpush.msra.mxu0 0.0
    %192 = vmatpush.msra.mxu0 0.0
    %193 = vmatpush.msra.mxu0 0.0
    %194 = vmatpush.msra.mxu0 0.0
    %195 = vmatpush.msra.mxu0 0.0
    %196 = vmatpush.msra.mxu0 0.0
    %197 = vmatpush.msra.mxu0 %v181
    %198 = vmatpush.msra.mxu0 %v119
    %199 = vmatmul.f32.gmra.mxu0 %v178
    %v200 = vpop.f32.mrf.mxu0
    %v201 = vadd.f32 0.0, %v200
    %202 = vdwg.mxu0
    %v203 = vadd.f32 %v172, %v201
    %v204 = vxor.u32 %v203, 2147483648
    %v205 = vmul.f32 %v204, 1.442695
    %v206 = vpow.pop %v205
    %v207 = vadd.f32 %v206, 1.0
    %v208 = vrcp.pop %v207
    %v209 = vmul.f32 %v207, %v208
    %v210 = vsub.f32 1.0, %v209
    %v211 = vmul.f32 %v208, %v210
    %v212 = vadd.f32 %v208, %v211
    %vm213 = vweird.f32 %v207
    %vm214 = vweird.f32 %v208
    %vm215 = vmor %vm213, %vm214
    %v216 = vsel %vm215, %v208, %v212
    %v217 = vand.u32 2147483647, %v207
    %vm218 = vcmp.eq.f32.partialorder %v217, 8.507059e+37
    %v219 = vand.u32 %v207, 2147483648
    %v220 = vor.u32 1.1754944e-38, %v219
    %v221 = vsel %vm218, %v220, %v216
    %v222 = vmul.f32 1.0, %v221
    %v223 = vtanh.pop %v203
    %v224 = vmul.f32 %v222, 0.0
    %226 = vrot.lane.b32.xlu0 %v223, 92
    %v227 = vpop.permute.xlu0 %226
    %v229 = vmul.f32 %v222, %v227
    %231 = vrot.lane.b32.xlu0 %v229, 12
    %v232 = vpop.permute.xlu0 %231
    %v234 = vadd.f32 %v224, %v232
    %v235 = vtanh.pop %v234
    %237 = vrot.lane.b32.xlu0 %v235, 12
    %v238 = vpop.permute.xlu0 %237
    %v240 = vmul.f32 %v222, %v238
    %242 = vrot.lane.b32.xlu0 %v240, 104
    %v243 = vpop.permute.xlu0 %242
    %v244 = vsel %vm143, %v243, 0
    %246 = vmatpush.msra.mxu0 0.0
    %247 = vmatpush.msra.mxu0 0.0
    %248 = vmatpush.msra.mxu0 0.0
    %249 = vmatpush.msra.mxu0 0.0
    %250 = vmatpush.msra.mxu0 0.0
    %251 = vmatpush.msra.mxu0 0.0
    %252 = vmatpush.msra.mxu0 0.0
    %253 = vmatpush.msra.mxu0 0.0
    %254 = vmatpush.msra.mxu0 0.0
    %255 = vmatpush.msra.mxu0 0.0
    %256 = vmatpush.msra.mxu0 0.0
    %257 = vmatpush.msra.mxu0 0.0
    %258 = vmatpush.msra.mxu0 0.0
    %259 = vmatpush.msra.mxu0 0.0
    %260 = vmatpush.msra.mxu0 %v181
    %261 = vmatpush.msra.mxu0 %v119
    %262 = vmatmul.f32.gmra.mxu0 %v244
    %v263 = vpop.f32.mrf.mxu0
    %v264 = vadd.f32 0.0, %v263
    %265 = vdwg.mxu0
    %v267 = vrot.slane %v264, 6
    %v269 = vadd.f32 %v172, %v267
    %v270 = vxor.u32 %v269, 2147483648
    %v271 = vmul.f32 %v270, 1.442695
    %v272 = vpow.pop %v271
    %v273 = vadd.f32 %v272, 1.0
    %v274 = vrcp.pop %v273
    %v275 = vmul.f32 %v273, %v274
    %v276 = vsub.f32 1.0, %v275
    %v277 = vmul.f32 %v274, %v276
    %v278 = vadd.f32 %v274, %v277
    %vm279 = vweird.f32 %v273
    %vm280 = vweird.f32 %v274
    %vm281 = vmor %vm279, %vm280
    %v282 = vsel %vm281, %v274, %v278
    %v283 = vand.u32 2147483647, %v273
    %vm284 = vcmp.eq.f32.partialorder %v283, 8.507059e+37
    %v285 = vand.u32 %v273, 2147483648
    %v286 = vor.u32 1.1754944e-38, %v285
    %v287 = vsel %vm284, %v286, %v282
    %v288 = vmul.f32 1.0, %v287
    %v289 = vtanh.pop %v269
    %v291 = vrot.slane %v234, 6
    %v293 = vmul.f32 %v288, %v291
    %295 = vrot.lane.b32.xlu0 %v289, 92
    %v296 = vpop.permute.xlu0 %295
    %v298 = vmul.f32 %v288, %v296
    %300 = vrot.lane.b32.xlu0 %v298, 12
    %v301 = vpop.permute.xlu0 %300
    %v303 = vadd.f32 %v293, %v301
    %v304 = vtanh.pop %v303
    %306 = vrot.lane.b32.xlu0 %v304, 12
    %v307 = vpop.permute.xlu0 %306
    %v309 = vmul.f32 %v288, %v307
    %v311 = vsel %vm150, %v126, 0
    %313 = vmatpush.msra.mxu0 0.0
    %314 = vmatpush.msra.mxu0 0.0
    %315 = vmatpush.msra.mxu0 0.0
    %316 = vmatpush.msra.mxu0 0.0
    %317 = vmatpush.msra.mxu0 0.0
    %318 = vmatpush.msra.mxu0 0.0
    %319 = vmatpush.msra.mxu0 0.0
    %320 = vmatpush.msra.mxu0 0.0
    %321 = vmatpush.msra.mxu0 0.0
    %322 = vmatpush.msra.mxu0 0.0
    %323 = vmatpush.msra.mxu0 0.0
    %324 = vmatpush.msra.mxu0 0.0
    %325 = vmatpush.msra.mxu0 0.0
    %326 = vmatpush.msra.mxu0 0.0
    %327 = vmatpush.msra.mxu0 %v311
    %328 = vmatpush.msra.mxu0 %v125
    %329 = vmatmul.f32.gmra.mxu0 %v178
    %v330 = vpop.f32.mrf.mxu0
    %v331 = vadd.f32 0.0, %v330
    %332 = vdwg.mxu0
    %v334 = vsel %vm150, %v123, 0
    %336 = vmatpush.msra.mxu0 0.0
    %337 = vmatpush.msra.mxu0 0.0
    %338 = vmatpush.msra.mxu0 0.0
    %339 = vmatpush.msra.mxu0 0.0
    %340 = vmatpush.msra.mxu0 0.0
    %341 = vmatpush.msra.mxu0 0.0
    %342 = vmatpush.msra.mxu0 0.0
    %343 = vmatpush.msra.mxu0 0.0
    %344 = vmatpush.msra.mxu0 0.0
    %345 = vmatpush.msra.mxu0 0.0
    %346 = vmatpush.msra.mxu0 0.0
    %347 = vmatpush.msra.mxu0 0.0
    %348 = vmatpush.msra.mxu0 0.0
    %349 = vmatpush.msra.mxu0 0.0
    %350 = vmatpush.msra.mxu0 %v334
    %351 = vmatpush.msra.mxu0 %v122
    %352 = vmatmul.f32.gmra.mxu0 %v244
    %v353 = vpop.f32.mrf.mxu0
    %v354 = vadd.f32 %v331, %v353
    %355 = vdwg.mxu0
    %v357 = vperm.slane %v128, 0
    %v359 = vadd.f32 %v354, %v357
    %v360 = vxor.u32 %v359, 2147483648
    %v361 = vmul.f32 %v360, 1.442695
    %v362 = vpow.pop %v361
    %v363 = vadd.f32 %v362, 1.0
    %v364 = vrcp.pop %v363
    %v365 = vmul.f32 %v363, %v364
    %v366 = vsub.f32 1.0, %v365
    %v367 = vmul.f32 %v364, %v366
    %v368 = vadd.f32 %v364, %v367
    %vm369 = vweird.f32 %v363
    %vm370 = vweird.f32 %v364
    %vm371 = vmor %vm369, %vm370
    %v372 = vsel %vm371, %v364, %v368
    %v373 = vand.u32 2147483647, %v363
    %vm374 = vcmp.eq.f32.partialorder %v373, 8.507059e+37
    %v375 = vand.u32 %v363, 2147483648
    %v376 = vor.u32 1.1754944e-38, %v375
    %v377 = vsel %vm374, %v376, %v372
    %v378 = vmul.f32 1.0, %v377
    %v379 = vtanh.pop %v359
    %v380 = vmul.f32 %v378, 0.0
    %382 = vrot.lane.b32.xlu0 %v379, 92
    %v383 = vpop.permute.xlu0 %382
    %v385 = vmul.f32 %v378, %v383
    %387 = vrot.lane.b32.xlu0 %v385, 12
    %v388 = vpop.permute.xlu0 %387
    %v390 = vadd.f32 %v380, %v388
    %v391 = vtanh.pop %v390
    %393 = vrot.lane.b32.xlu0 %v391, 12
    %v394 = vpop.permute.xlu0 %393
    %v396 = vmul.f32 %v378, %v394
    %v398 = vrot.slane %v309, 2
    %399 = vrot.lane.b32.xlu0 %v398, 104
    %v400 = vpop.permute.xlu0 %399
    %v401 = vsel %vm143, %v400, 0
    %403 = vmatpush.msra.mxu0 0.0
    %404 = vmatpush.msra.mxu0 0.0
    %405 = vmatpush.msra.mxu0 0.0
    %406 = vmatpush.msra.mxu0 0.0
    %407 = vmatpush.msra.mxu0 0.0
    %408 = vmatpush.msra.mxu0 0.0
    %409 = vmatpush.msra.mxu0 0.0
    %410 = vmatpush.msra.mxu0 0.0
    %411 = vmatpush.msra.mxu0 0.0
    %412 = vmatpush.msra.mxu0 0.0
    %413 = vmatpush.msra.mxu0 0.0
    %414 = vmatpush.msra.mxu0 0.0
    %415 = vmatpush.msra.mxu0 0.0
    %416 = vmatpush.msra.mxu0 0.0
    %417 = vmatpush.msra.mxu0 %v181
    %418 = vmatpush.msra.mxu0 %v119
    %419 = vmatmul.f32.gmra.mxu0 %v401
    %v420 = vpop.f32.mrf.mxu0
    %v421 = vadd.f32 0.0, %v420
    %422 = vdwg.mxu0
    %v424 = vrot.slane %v421, 4
    %v426 = vadd.f32 %v172, %v424
    %v427 = vxor.u32 %v426, 2147483648
    %v428 = vmul.f32 %v427, 1.442695
    %v429 = vpow.pop %v428
    %v430 = vadd.f32 %v429, 1.0
    %v431 = vrcp.pop %v430
    %v432 = vmul.f32 %v430, %v431
    %v433 = vsub.f32 1.0, %v432
    %v434 = vmul.f32 %v431, %v433
    %v435 = vadd.f32 %v431, %v434
    %vm436 = vweird.f32 %v430
    %vm437 = vweird.f32 %v431
    %vm438 = vmor %vm436, %vm437
    %v439 = vsel %vm438, %v431, %v435
    %v440 = vand.u32 2147483647, %v430
    %vm441 = vcmp.eq.f32.partialorder %v440, 8.507059e+37
    %v442 = vand.u32 %v430, 2147483648
    %v443 = vor.u32 1.1754944e-38, %v442
    %v444 = vsel %vm441, %v443, %v439
    %v445 = vmul.f32 1.0, %v444
    %v446 = vtanh.pop %v426
    %v448 = vrot.slane %v303, 6
    %v450 = vmul.f32 %v445, %v448
    %452 = vrot.lane.b32.xlu0 %v446, 92
    %v453 = vpop.permute.xlu0 %452
    %v455 = vmul.f32 %v445, %v453
    %457 = vrot.lane.b32.xlu0 %v455, 12
    %v458 = vpop.permute.xlu0 %457
    %v460 = vadd.f32 %v450, %v458
    %v461 = vtanh.pop %v460
    %463 = vrot.lane.b32.xlu0 %v461, 12
    %v464 = vpop.permute.xlu0 %463
    %v466 = vmul.f32 %v445, %v464
    %468 = vrot.lane.b32.xlu0 %v396, 104
    %v469 = vpop.permute.xlu0 %468
    %v470 = vsel %vm143, %v469, 0
    %472 = vmatpush.msra.mxu0 0.0
    %473 = vmatpush.msra.mxu0 0.0
    %474 = vmatpush.msra.mxu0 0.0
    %475 = vmatpush.msra.mxu0 0.0
    %476 = vmatpush.msra.mxu0 0.0
    %477 = vmatpush.msra.mxu0 0.0
    %478 = vmatpush.msra.mxu0 0.0
    %479 = vmatpush.msra.mxu0 0.0
    %480 = vmatpush.msra.mxu0 0.0
    %481 = vmatpush.msra.mxu0 0.0
    %482 = vmatpush.msra.mxu0 0.0
    %483 = vmatpush.msra.mxu0 0.0
    %484 = vmatpush.msra.mxu0 0.0
    %485 = vmatpush.msra.mxu0 0.0
    %486 = vmatpush.msra.mxu0 %v311
    %487 = vmatpush.msra.mxu0 %v125
    %488 = vmatmul.f32.gmra.mxu0 %v470
    %v489 = vpop.f32.mrf.mxu0
    %v490 = vadd.f32 0.0, %v489
    %491 = vdwg.mxu0
    %492 = vmatpush.msra.mxu0 0.0
    %493 = vmatpush.msra.mxu0 0.0
    %494 = vmatpush.msra.mxu0 0.0
    %495 = vmatpush.msra.mxu0 0.0
    %496 = vmatpush.msra.mxu0 0.0
    %497 = vmatpush.msra.mxu0 0.0
    %498 = vmatpush.msra.mxu0 0.0
    %499 = vmatpush.msra.mxu0 0.0
    %500 = vmatpush.msra.mxu0 0.0
    %501 = vmatpush.msra.mxu0 0.0
    %502 = vmatpush.msra.mxu0 0.0
    %503 = vmatpush.msra.mxu0 0.0
    %504 = vmatpush.msra.mxu0 0.0
    %505 = vmatpush.msra.mxu0 0.0
    %506 = vmatpush.msra.mxu0 %v334
    %507 = vmatpush.msra.mxu0 %v122
    %508 = vmatmul.f32.gmra.mxu0 %v401
    %v509 = vpop.f32.mrf.mxu0
    %v510 = vadd.f32 %v490, %v509
    %511 = vdwg.mxu0
    %v512 = vadd.f32 %v510, %v357
    %v513 = vxor.u32 %v512, 2147483648
    %v514 = vmul.f32 %v513, 1.442695
    %v515 = vpow.pop %v514
    %v516 = vadd.f32 %v515, 1.0
    %v517 = vrcp.pop %v516
    %v518 = vmul.f32 %v516, %v517
    %v519 = vsub.f32 1.0, %v518
    %v520 = vmul.f32 %v517, %v519
    %v521 = vadd.f32 %v517, %v520
    %vm522 = vweird.f32 %v516
    %vm523 = vweird.f32 %v517
    %vm524 = vmor %vm522, %vm523
    %v525 = vsel %vm524, %v517, %v521
    %v526 = vand.u32 2147483647, %v516
    %vm527 = vcmp.eq.f32.partialorder %v526, 8.507059e+37
    %v528 = vand.u32 %v516, 2147483648
    %v529 = vor.u32 1.1754944e-38, %v528
    %v530 = vsel %vm527, %v529, %v525
    %v531 = vmul.f32 1.0, %v530
    %v532 = vtanh.pop %v512
    %v533 = vmul.f32 %v531, %v390
    %535 = vrot.lane.b32.xlu0 %v532, 92
    %v536 = vpop.permute.xlu0 %535
    %v538 = vmul.f32 %v531, %v536
    %540 = vrot.lane.b32.xlu0 %v538, 12
    %v541 = vpop.permute.xlu0 %540
    %v543 = vadd.f32 %v533, %v541
    %v544 = vtanh.pop %v543
    %546 = vrot.lane.b32.xlu0 %v544, 12
    %v547 = vpop.permute.xlu0 %546
    %v549 = vmul.f32 %v531, %v547
    %v551 = vsel %vm150, %v134, 0
    %553 = vmatpush.msra.mxu0 0.0
    %554 = vmatpush.msra.mxu0 0.0
    %555 = vmatpush.msra.mxu0 0.0
    %556 = vmatpush.msra.mxu0 0.0
    %557 = vmatpush.msra.mxu0 0.0
    %558 = vmatpush.msra.mxu0 0.0
    %559 = vmatpush.msra.mxu0 0.0
    %560 = vmatpush.msra.mxu0 0.0
    %561 = vmatpush.msra.mxu0 0.0
    %562 = vmatpush.msra.mxu0 0.0
    %563 = vmatpush.msra.mxu0 0.0
    %564 = vmatpush.msra.mxu0 0.0
    %565 = vmatpush.msra.mxu0 0.0
    %566 = vmatpush.msra.mxu0 0.0
    %567 = vmatpush.msra.mxu0 %v551
    %568 = vmatpush.msra.mxu0 %v133
    %569 = vmatmul.f32.gmra.mxu0 %v178
    %v570 = vpop.f32.mrf.mxu0
    %v571 = vadd.f32 0.0, %v570
    %572 = vdwg.mxu0
    %v574 = vsel %vm150, %v131, 0
    %576 = vmatpush.msra.mxu0 0.0
    %577 = vmatpush.msra.mxu0 0.0
    %578 = vmatpush.msra.mxu0 0.0
    %579 = vmatpush.msra.mxu0 0.0
    %580 = vmatpush.msra.mxu0 0.0
    %581 = vmatpush.msra.mxu0 0.0
    %582 = vmatpush.msra.mxu0 0.0
    %583 = vmatpush.msra.mxu0 0.0
    %584 = vmatpush.msra.mxu0 0.0
    %585 = vmatpush.msra.mxu0 0.0
    %586 = vmatpush.msra.mxu0 0.0
    %587 = vmatpush.msra.mxu0 0.0
    %588 = vmatpush.msra.mxu0 0.0
    %589 = vmatpush.msra.mxu0 0.0
    %590 = vmatpush.msra.mxu0 %v574
    %591 = vmatpush.msra.mxu0 %v130
    %592 = vmatmul.f32.gmra.mxu0 %v470
    %v593 = vpop.f32.mrf.mxu0
    %v594 = vadd.f32 %v571, %v593
    %595 = vdwg.mxu0
    %v597 = vperm.slane %v136, 0
    %v599 = vadd.f32 %v594, %v597
    %v600 = vxor.u32 %v599, 2147483648
    %v601 = vmul.f32 %v600, 1.442695
    %v602 = vpow.pop %v601
    %v603 = vadd.f32 %v602, 1.0
    %v604 = vrcp.pop %v603
    %v605 = vmul.f32 %v603, %v604
    %v606 = vsub.f32 1.0, %v605
    %v607 = vmul.f32 %v604, %v606
    %v608 = vadd.f32 %v604, %v607
    %vm609 = vweird.f32 %v603
    %vm610 = vweird.f32 %v604
    %vm611 = vmor %vm609, %vm610
    %v612 = vsel %vm611, %v604, %v608
    %v613 = vand.u32 2147483647, %v603
    %vm614 = vcmp.eq.f32.partialorder %v613, 8.507059e+37
    %v615 = vand.u32 %v603, 2147483648
    %v616 = vor.u32 1.1754944e-38, %v615
    %v617 = vsel %vm614, %v616, %v612
    %v618 = vmul.f32 1.0, %v617
    %v619 = vtanh.pop %v599
    %v620 = vmul.f32 %v618, 0.0
    %622 = vrot.lane.b32.xlu0 %v619, 92
    %v623 = vpop.permute.xlu0 %622
    %v625 = vmul.f32 %v618, %v623
    %627 = vrot.lane.b32.xlu0 %v625, 12
    %v628 = vpop.permute.xlu0 %627
    %v630 = vadd.f32 %v620, %v628
    %v631 = vtanh.pop %v630
    %633 = vrot.lane.b32.xlu0 %v631, 12
    %v634 = vpop.permute.xlu0 %633
    %v636 = vmul.f32 %v618, %v634
    %638 = vrot.lane.b32.xlu0 %v636, 104
    %v639 = vpop.permute.xlu0 %638
    %vm641 = vcmask 91136
    %642 = vst.msk [vmem:[#allocation2] sm:$0x3] %vm641, %v639
    %v644 = vrot.slane %v466, 4
    %645 = vrot.lane.b32.xlu0 %v644, 104
    %v646 = vpop.permute.xlu0 %645
    %v647 = vsel %vm143, %v646, 0
    %649 = vmatpush.msra.mxu0 0.0
    %650 = vmatpush.msra.mxu0 0.0
    %651 = vmatpush.msra.mxu0 0.0
    %652 = vmatpush.msra.mxu0 0.0
    %653 = vmatpush.msra.mxu0 0.0
    %654 = vmatpush.msra.mxu0 0.0
    %655 = vmatpush.msra.mxu0 0.0
    %656 = vmatpush.msra.mxu0 0.0
    %657 = vmatpush.msra.mxu0 0.0
    %658 = vmatpush.msra.mxu0 0.0
    %659 = vmatpush.msra.mxu0 0.0
    %660 = vmatpush.msra.mxu0 0.0
    %661 = vmatpush.msra.mxu0 0.0
    %662 = vmatpush.msra.mxu0 0.0
    %663 = vmatpush.msra.mxu0 %v181
    %664 = vmatpush.msra.mxu0 %v119
    %665 = vmatmul.f32.gmra.mxu0 %v647
    %v666 = vpop.f32.mrf.mxu0
    %v667 = vadd.f32 0.0, %v666
    %668 = vdwg.mxu0
    %v670 = vrot.slane %v667, 2
    %v672 = vadd.f32 %v172, %v670
    %v673 = vxor.u32 %v672, 2147483648
    %v674 = vmul.f32 %v673, 1.442695
    %v675 = vpow.pop %v674
    %v676 = vadd.f32 %v675, 1.0
    %v677 = vrcp.pop %v676
    %v678 = vmul.f32 %v676, %v677
    %v679 = vsub.f32 1.0, %v678
    %v680 = vmul.f32 %v677, %v679
    %v681 = vadd.f32 %v677, %v680
    %vm682 = vweird.f32 %v676
    %vm683 = vweird.f32 %v677
    %vm684 = vmor %vm682, %vm683
    %v685 = vsel %vm684, %v677, %v681
    %v686 = vand.u32 2147483647, %v676
    %vm687 = vcmp.eq.f32.partialorder %v686, 8.507059e+37
    %v688 = vand.u32 %v676, 2147483648
    %v689 = vor.u32 1.1754944e-38, %v688
    %v690 = vsel %vm687, %v689, %v685
    %v691 = vmul.f32 1.0, %v690
    %v692 = vtanh.pop %v672
    %v694 = vrot.slane %v460, 6
    %v696 = vmul.f32 %v691, %v694
    %698 = vrot.lane.b32.xlu0 %v692, 92
    %v699 = vpop.permute.xlu0 %698
    %v701 = vmul.f32 %v691, %v699
    %703 = vrot.lane.b32.xlu0 %v701, 12
    %v704 = vpop.permute.xlu0 %703
    %v706 = vadd.f32 %v696, %v704
    %v707 = vtanh.pop %v706
    %709 = vrot.lane.b32.xlu0 %v707, 12
    %v710 = vpop.permute.xlu0 %709
    %v712 = vmul.f32 %v691, %v710
    %714 = vrot.lane.b32.xlu0 %v549, 104
    %v715 = vpop.permute.xlu0 %714
    %v716 = vsel %vm143, %v715, 0
    %718 = vmatpush.msra.mxu0 0.0
    %719 = vmatpush.msra.mxu0 0.0
    %720 = vmatpush.msra.mxu0 0.0
    %721 = vmatpush.msra.mxu0 0.0
    %722 = vmatpush.msra.mxu0 0.0
    %723 = vmatpush.msra.mxu0 0.0
    %724 = vmatpush.msra.mxu0 0.0
    %725 = vmatpush.msra.mxu0 0.0
    %726 = vmatpush.msra.mxu0 0.0
    %727 = vmatpush.msra.mxu0 0.0
    %728 = vmatpush.msra.mxu0 0.0
    %729 = vmatpush.msra.mxu0 0.0
    %730 = vmatpush.msra.mxu0 0.0
    %731 = vmatpush.msra.mxu0 0.0
    %732 = vmatpush.msra.mxu0 %v311
    %733 = vmatpush.msra.mxu0 %v125
    %734 = vmatmul.f32.gmra.mxu0 %v716
    %v735 = vpop.f32.mrf.mxu0
    %v736 = vadd.f32 0.0, %v735
    %737 = vdwg.mxu0
    %738 = vmatpush.msra.mxu0 0.0
    %739 = vmatpush.msra.mxu0 0.0
    %740 = vmatpush.msra.mxu0 0.0
    %741 = vmatpush.msra.mxu0 0.0
    %742 = vmatpush.msra.mxu0 0.0
    %743 = vmatpush.msra.mxu0 0.0
    %744 = vmatpush.msra.mxu0 0.0
    %745 = vmatpush.msra.mxu0 0.0
    %746 = vmatpush.msra.mxu0 0.0
    %747 = vmatpush.msra.mxu0 0.0
    %748 = vmatpush.msra.mxu0 0.0
    %749 = vmatpush.msra.mxu0 0.0
    %750 = vmatpush.msra.mxu0 0.0
    %751 = vmatpush.msra.mxu0 0.0
    %752 = vmatpush.msra.mxu0 %v334
    %753 = vmatpush.msra.mxu0 %v122
    %754 = vmatmul.f32.gmra.mxu0 %v647
    %v755 = vpop.f32.mrf.mxu0
    %v756 = vadd.f32 %v736, %v755
    %757 = vdwg.mxu0
    %v758 = vadd.f32 %v756, %v357
    %v759 = vxor.u32 %v758, 2147483648
    %v760 = vmul.f32 %v759, 1.442695
    %v761 = vpow.pop %v760
    %v762 = vadd.f32 %v761, 1.0
    %v763 = vrcp.pop %v762
    %v764 = vmul.f32 %v762, %v763
    %v765 = vsub.f32 1.0, %v764
    %v766 = vmul.f32 %v763, %v765
    %v767 = vadd.f32 %v763, %v766
    %vm768 = vweird.f32 %v762
    %vm769 = vweird.f32 %v763
    %vm770 = vmor %vm768, %vm769
    %v771 = vsel %vm770, %v763, %v767
    %v772 = vand.u32 2147483647, %v762
    %vm773 = vcmp.eq.f32.partialorder %v772, 8.507059e+37
    %v774 = vand.u32 %v762, 2147483648
    %v775 = vor.u32 1.1754944e-38, %v774
    %v776 = vsel %vm773, %v775, %v771
    %v777 = vmul.f32 1.0, %v776
    %v778 = vtanh.pop %v758
    %v779 = vmul.f32 %v777, %v543
    %781 = vrot.lane.b32.xlu0 %v778, 92
    %v782 = vpop.permute.xlu0 %781
    %v784 = vmul.f32 %v777, %v782
    %786 = vrot.lane.b32.xlu0 %v784, 12
    %v787 = vpop.permute.xlu0 %786
    %v789 = vadd.f32 %v779, %v787
    %v790 = vtanh.pop %v789
    %792 = vrot.lane.b32.xlu0 %v790, 12
    %v793 = vpop.permute.xlu0 %792
    %v795 = vmul.f32 %v777, %v793
    %v796 = vsel %vm143, %v639, 0
    %798 = vmatpush.msra.mxu0 0.0
    %799 = vmatpush.msra.mxu0 0.0
    %800 = vmatpush.msra.mxu0 0.0
    %801 = vmatpush.msra.mxu0 0.0
    %802 = vmatpush.msra.mxu0 0.0
    %803 = vmatpush.msra.mxu0 0.0
    %804 = vmatpush.msra.mxu0 0.0
    %805 = vmatpush.msra.mxu0 0.0
    %806 = vmatpush.msra.mxu0 0.0
    %807 = vmatpush.msra.mxu0 0.0
    %808 = vmatpush.msra.mxu0 0.0
    %809 = vmatpush.msra.mxu0 0.0
    %810 = vmatpush.msra.mxu0 0.0
    %811 = vmatpush.msra.mxu0 0.0
    %812 = vmatpush.msra.mxu0 %v551
    %813 = vmatpush.msra.mxu0 %v133
    %814 = vmatmul.f32.gmra.mxu0 %v796
    %v815 = vpop.f32.mrf.mxu0
    %v816 = vadd.f32 0.0, %v815
    %817 = vdwg.mxu0
    %818 = vmatpush.msra.mxu0 0.0
    %819 = vmatpush.msra.mxu0 0.0
    %820 = vmatpush.msra.mxu0 0.0
    %821 = vmatpush.msra.mxu0 0.0
    %822 = vmatpush.msra.mxu0 0.0
    %823 = vmatpush.msra.mxu0 0.0
    %824 = vmatpush.msra.mxu0 0.0
    %825 = vmatpush.msra.mxu0 0.0
    %826 = vmatpush.msra.mxu0 0.0
    %827 = vmatpush.msra.mxu0 0.0
    %828 = vmatpush.msra.mxu0 0.0
    %829 = vmatpush.msra.mxu0 0.0
    %830 = vmatpush.msra.mxu0 0.0
    %831 = vmatpush.msra.mxu0 0.0
    %832 = vmatpush.msra.mxu0 %v574
    %833 = vmatpush.msra.mxu0 %v130
    %834 = vmatmul.f32.gmra.mxu0 %v716
    %v835 = vpop.f32.mrf.mxu0
    %v836 = vadd.f32 %v816, %v835
    %837 = vdwg.mxu0
    %v838 = vadd.f32 %v836, %v597
    %v839 = vxor.u32 %v838, 2147483648
    %v840 = vmul.f32 %v839, 1.442695
    %v841 = vpow.pop %v840
    %v842 = vadd.f32 %v841, 1.0
    %v843 = vrcp.pop %v842
    %v844 = vmul.f32 %v842, %v843
    %v845 = vsub.f32 1.0, %v844
    %v846 = vmul.f32 %v843, %v845
    %v847 = vadd.f32 %v843, %v846
    %vm848 = vweird.f32 %v842
    %vm849 = vweird.f32 %v843
    %vm850 = vmor %vm848, %vm849
    %v851 = vsel %vm850, %v843, %v847
    %v852 = vand.u32 2147483647, %v842
    %vm853 = vcmp.eq.f32.partialorder %v852, 8.507059e+37
    %v854 = vand.u32 %v842, 2147483648
    %v855 = vor.u32 1.1754944e-38, %v854
    %v856 = vsel %vm853, %v855, %v851
    %v857 = vmul.f32 1.0, %v856
    %v858 = vtanh.pop %v838
    %v859 = vmul.f32 %v857, %v630
    %861 = vrot.lane.b32.xlu0 %v858, 92
    %v862 = vpop.permute.xlu0 %861
    %v864 = vmul.f32 %v857, %v862
    %866 = vrot.lane.b32.xlu0 %v864, 12
    %v867 = vpop.permute.xlu0 %866
    %v869 = vadd.f32 %v859, %v867
    %v870 = vtanh.pop %v869
    %872 = vrot.lane.b32.xlu0 %v870, 12
    %v873 = vpop.permute.xlu0 %872
    %v875 = vmul.f32 %v857, %v873
    %877 = vrot.lane.b32.xlu0 %v875, 104
    %v878 = vpop.permute.xlu0 %877
    %880 = vst.msk [vmem:[#allocation2 + $0x2] sm:$0x3] %vm641, %v878
    %v882 = vrot.slane %v712, 6
    %883 = vrot.lane.b32.xlu0 %v882, 104
    %v884 = vpop.permute.xlu0 %883
    %v885 = vsel %vm143, %v884, 0
    %887 = vmatpush.msra.mxu0 0.0
    %888 = vmatpush.msra.mxu0 0.0
    %889 = vmatpush.msra.mxu0 0.0
    %890 = vmatpush.msra.mxu0 0.0
    %891 = vmatpush.msra.mxu0 0.0
    %892 = vmatpush.msra.mxu0 0.0
    %893 = vmatpush.msra.mxu0 0.0
    %894 = vmatpush.msra.mxu0 0.0
    %895 = vmatpush.msra.mxu0 0.0
    %896 = vmatpush.msra.mxu0 0.0
    %897 = vmatpush.msra.mxu0 0.0
    %898 = vmatpush.msra.mxu0 0.0
    %899 = vmatpush.msra.mxu0 0.0
    %900 = vmatpush.msra.mxu0 0.0
    %901 = vmatpush.msra.mxu0 %v181
    %902 = vmatpush.msra.mxu0 %v119
    %903 = vmatmul.f32.gmra.mxu0 %v885
    %v904 = vpop.f32.mrf.mxu0
    %v905 = vadd.f32 0.0, %v904
    %906 = vdwg.mxu0
    %v907 = vadd.f32 %v175, %v905
    %v908 = vxor.u32 %v907, 2147483648
    %v909 = vmul.f32 %v908, 1.442695
    %v910 = vpow.pop %v909
    %v911 = vadd.f32 %v910, 1.0
    %v912 = vrcp.pop %v911
    %v913 = vmul.f32 %v911, %v912
    %v914 = vsub.f32 1.0, %v913
    %v915 = vmul.f32 %v912, %v914
    %v916 = vadd.f32 %v912, %v915
    %vm917 = vweird.f32 %v911
    %vm918 = vweird.f32 %v912
    %vm919 = vmor %vm917, %vm918
    %v920 = vsel %vm919, %v912, %v916
    %v921 = vand.u32 2147483647, %v911
    %vm922 = vcmp.eq.f32.partialorder %v921, 8.507059e+37
    %v923 = vand.u32 %v911, 2147483648
    %v924 = vor.u32 1.1754944e-38, %v923
    %v925 = vsel %vm922, %v924, %v920
    %v926 = vmul.f32 1.0, %v925
    %v927 = vtanh.pop %v907
    %v929 = vrot.slane %v706, 6
    %v931 = vmul.f32 %v926, %v929
    %933 = vrot.lane.b32.xlu0 %v927, 92
    %v934 = vpop.permute.xlu0 %933
    %v936 = vmul.f32 %v926, %v934
    %938 = vrot.lane.b32.xlu0 %v936, 12
    %v939 = vpop.permute.xlu0 %938
    %v941 = vadd.f32 %v931, %v939
    %v942 = vtanh.pop %v941
    %944 = vrot.lane.b32.xlu0 %v942, 12
    %v945 = vpop.permute.xlu0 %944
    %v947 = vmul.f32 %v926, %v945
    %949 = vrot.lane.b32.xlu0 %v795, 104
    %v950 = vpop.permute.xlu0 %949
    %v951 = vsel %vm143, %v950, 0
    %953 = vmatpush.msra.mxu0 0.0
    %954 = vmatpush.msra.mxu0 0.0
    %955 = vmatpush.msra.mxu0 0.0
    %956 = vmatpush.msra.mxu0 0.0
    %957 = vmatpush.msra.mxu0 0.0
    %958 = vmatpush.msra.mxu0 0.0
    %959 = vmatpush.msra.mxu0 0.0
    %960 = vmatpush.msra.mxu0 0.0
    %961 = vmatpush.msra.mxu0 0.0
    %962 = vmatpush.msra.mxu0 0.0
    %963 = vmatpush.msra.mxu0 0.0
    %964 = vmatpush.msra.mxu0 0.0
    %965 = vmatpush.msra.mxu0 0.0
    %966 = vmatpush.msra.mxu0 0.0
    %967 = vmatpush.msra.mxu0 %v311
    %968 = vmatpush.msra.mxu0 %v125
    %969 = vmatmul.f32.gmra.mxu0 %v951
    %v970 = vpop.f32.mrf.mxu0
    %v971 = vadd.f32 0.0, %v970
    %972 = vdwg.mxu0
    %973 = vmatpush.msra.mxu0 0.0
    %974 = vmatpush.msra.mxu0 0.0
    %975 = vmatpush.msra.mxu0 0.0
    %976 = vmatpush.msra.mxu0 0.0
    %977 = vmatpush.msra.mxu0 0.0
    %978 = vmatpush.msra.mxu0 0.0
    %979 = vmatpush.msra.mxu0 0.0
    %980 = vmatpush.msra.mxu0 0.0
    %981 = vmatpush.msra.mxu0 0.0
    %982 = vmatpush.msra.mxu0 0.0
    %983 = vmatpush.msra.mxu0 0.0
    %984 = vmatpush.msra.mxu0 0.0
    %985 = vmatpush.msra.mxu0 0.0
    %986 = vmatpush.msra.mxu0 0.0
    %987 = vmatpush.msra.mxu0 %v334
    %988 = vmatpush.msra.mxu0 %v122
    %989 = vmatmul.f32.gmra.mxu0 %v885
    %v990 = vpop.f32.mrf.mxu0
    %v991 = vadd.f32 %v971, %v990
    %992 = vdwg.mxu0
    %v993 = vadd.f32 %v991, %v357
    %v994 = vxor.u32 %v993, 2147483648
    %v995 = vmul.f32 %v994, 1.442695
    %v996 = vpow.pop %v995
    %v997 = vadd.f32 %v996, 1.0
    %v998 = vrcp.pop %v997
    %v999 = vmul.f32 %v997, %v998
    %v1000 = vsub.f32 1.0, %v999
    %v1001 = vmul.f32 %v998, %v1000
    %v1002 = vadd.f32 %v998, %v1001
    %vm1003 = vweird.f32 %v997
    %vm1004 = vweird.f32 %v998
    %vm1005 = vmor %vm1003, %vm1004
    %v1006 = vsel %vm1005, %v998, %v1002
    %v1007 = vand.u32 2147483647, %v997
    %vm1008 = vcmp.eq.f32.partialorder %v1007, 8.507059e+37
    %v1009 = vand.u32 %v997, 2147483648
    %v1010 = vor.u32 1.1754944e-38, %v1009
    %v1011 = vsel %vm1008, %v1010, %v1006
    %v1012 = vmul.f32 1.0, %v1011
    %v1013 = vtanh.pop %v993
    %v1014 = vmul.f32 %v1012, %v789
    %1016 = vrot.lane.b32.xlu0 %v1013, 92
    %v1017 = vpop.permute.xlu0 %1016
    %v1019 = vmul.f32 %v1012, %v1017
    %1021 = vrot.lane.b32.xlu0 %v1019, 12
    %v1022 = vpop.permute.xlu0 %1021
    %v1024 = vadd.f32 %v1014, %v1022
    %v1025 = vtanh.pop %v1024
    %1027 = vrot.lane.b32.xlu0 %v1025, 12
    %v1028 = vpop.permute.xlu0 %1027
    %v1030 = vmul.f32 %v1012, %v1028
    %v1031 = vsel %vm143, %v878, 0
    %1033 = vmatpush.msra.mxu0 0.0
    %1034 = vmatpush.msra.mxu0 0.0
    %1035 = vmatpush.msra.mxu0 0.0
    %1036 = vmatpush.msra.mxu0 0.0
    %1037 = vmatpush.msra.mxu0 0.0
    %1038 = vmatpush.msra.mxu0 0.0
    %1039 = vmatpush.msra.mxu0 0.0
    %1040 = vmatpush.msra.mxu0 0.0
    %1041 = vmatpush.msra.mxu0 0.0
    %1042 = vmatpush.msra.mxu0 0.0
    %1043 = vmatpush.msra.mxu0 0.0
    %1044 = vmatpush.msra.mxu0 0.0
    %1045 = vmatpush.msra.mxu0 0.0
    %1046 = vmatpush.msra.mxu0 0.0
    %1047 = vmatpush.msra.mxu0 %v551
    %1048 = vmatpush.msra.mxu0 %v133
    %1049 = vmatmul.f32.gmra.mxu0 %v1031
    %v1050 = vpop.f32.mrf.mxu0
    %v1051 = vadd.f32 0.0, %v1050
    %1052 = vdwg.mxu0
    %1053 = vmatpush.msra.mxu0 0.0
    %1054 = vmatpush.msra.mxu0 0.0
    %1055 = vmatpush.msra.mxu0 0.0
    %1056 = vmatpush.msra.mxu0 0.0
    %1057 = vmatpush.msra.mxu0 0.0
    %1058 = vmatpush.msra.mxu0 0.0
    %1059 = vmatpush.msra.mxu0 0.0
    %1060 = vmatpush.msra.mxu0 0.0
    %1061 = vmatpush.msra.mxu0 0.0
    %1062 = vmatpush.msra.mxu0 0.0
    %1063 = vmatpush.msra.mxu0 0.0
    %1064 = vmatpush.msra.mxu0 0.0
    %1065 = vmatpush.msra.mxu0 0.0
    %1066 = vmatpush.msra.mxu0 0.0
    %1067 = vmatpush.msra.mxu0 %v574
    %1068 = vmatpush.msra.mxu0 %v130
    %1069 = vmatmul.f32.gmra.mxu0 %v951
    %v1070 = vpop.f32.mrf.mxu0
    %v1071 = vadd.f32 %v1051, %v1070
    %1072 = vdwg.mxu0
    %v1073 = vadd.f32 %v1071, %v597
    %v1074 = vxor.u32 %v1073, 2147483648
    %v1075 = vmul.f32 %v1074, 1.442695
    %v1076 = vpow.pop %v1075
    %v1077 = vadd.f32 %v1076, 1.0
    %v1078 = vrcp.pop %v1077
    %v1079 = vmul.f32 %v1077, %v1078
    %v1080 = vsub.f32 1.0, %v1079
    %v1081 = vmul.f32 %v1078, %v1080
    %v1082 = vadd.f32 %v1078, %v1081
    %vm1083 = vweird.f32 %v1077
    %vm1084 = vweird.f32 %v1078
    %vm1085 = vmor %vm1083, %vm1084
    %v1086 = vsel %vm1085, %v1078, %v1082
    %v1087 = vand.u32 2147483647, %v1077
    %vm1088 = vcmp.eq.f32.partialorder %v1087, 8.507059e+37
    %v1089 = vand.u32 %v1077, 2147483648
    %v1090 = vor.u32 1.1754944e-38, %v1089
    %v1091 = vsel %vm1088, %v1090, %v1086
    %v1092 = vmul.f32 1.0, %v1091
    %v1093 = vtanh.pop %v1073
    %v1094 = vmul.f32 %v1092, %v869
    %1096 = vrot.lane.b32.xlu0 %v1093, 92
    %v1097 = vpop.permute.xlu0 %1096
    %v1099 = vmul.f32 %v1092, %v1097
    %1101 = vrot.lane.b32.xlu0 %v1099, 12
    %v1102 = vpop.permute.xlu0 %1101
    %v1104 = vadd.f32 %v1094, %v1102
    %v1105 = vtanh.pop %v1104
    %1107 = vrot.lane.b32.xlu0 %v1105, 12
    %v1108 = vpop.permute.xlu0 %1107
    %v1110 = vmul.f32 %v1092, %v1108
    %1112 = vrot.lane.b32.xlu0 %v1110, 104
    %v1113 = vpop.permute.xlu0 %1112
    %1115 = vst.msk [vmem:[#allocation2 + $0x4] sm:$0x3] %vm641, %v1113
    %1117 = vrot.lane.b32.xlu0 %v947, 104
    %v1118 = vpop.permute.xlu0 %1117
    %v1119 = vsel %vm143, %v1118, 0
    %1121 = vmatpush.msra.mxu0 0.0
    %1122 = vmatpush.msra.mxu0 0.0
    %1123 = vmatpush.msra.mxu0 0.0
    %1124 = vmatpush.msra.mxu0 0.0
    %1125 = vmatpush.msra.mxu0 0.0
    %1126 = vmatpush.msra.mxu0 0.0
    %1127 = vmatpush.msra.mxu0 0.0
    %1128 = vmatpush.msra.mxu0 0.0
    %1129 = vmatpush.msra.mxu0 0.0
    %1130 = vmatpush.msra.mxu0 0.0
    %1131 = vmatpush.msra.mxu0 0.0
    %1132 = vmatpush.msra.mxu0 0.0
    %1133 = vmatpush.msra.mxu0 0.0
    %1134 = vmatpush.msra.mxu0 0.0
    %1135 = vmatpush.msra.mxu0 %v181
    %1136 = vmatpush.msra.mxu0 %v119
    %1137 = vmatmul.f32.gmra.mxu0 %v1119
    %v1138 = vpop.f32.mrf.mxu0
    %v1139 = vadd.f32 0.0, %v1138
    %1140 = vdwg.mxu0
    %v1142 = vrot.slane %v1139, 6
    %v1144 = vadd.f32 %v175, %v1142
    %v1145 = vxor.u32 %v1144, 2147483648
    %v1146 = vmul.f32 %v1145, 1.442695
    %v1147 = vpow.pop %v1146
    %v1148 = vadd.f32 %v1147, 1.0
    %v1149 = vrcp.pop %v1148
    %v1150 = vmul.f32 %v1148, %v1149
    %v1151 = vsub.f32 1.0, %v1150
    %v1152 = vmul.f32 %v1149, %v1151
    %v1153 = vadd.f32 %v1149, %v1152
    %vm1154 = vweird.f32 %v1148
    %vm1155 = vweird.f32 %v1149
    %vm1156 = vmor %vm1154, %vm1155
    %v1157 = vsel %vm1156, %v1149, %v1153
    %v1158 = vand.u32 2147483647, %v1148
    %vm1159 = vcmp.eq.f32.partialorder %v1158, 8.507059e+37
    %v1160 = vand.u32 %v1148, 2147483648
    %v1161 = vor.u32 1.1754944e-38, %v1160
    %v1162 = vsel %vm1159, %v1161, %v1157
    %v1163 = vmul.f32 1.0, %v1162
    %v1164 = vtanh.pop %v1144
    %v1166 = vrot.slane %v941, 6
    %v1168 = vmul.f32 %v1163, %v1166
    %1170 = vrot.lane.b32.xlu0 %v1164, 92
    %v1171 = vpop.permute.xlu0 %1170
    %v1173 = vmul.f32 %v1163, %v1171
    %1175 = vrot.lane.b32.xlu0 %v1173, 12
    %v1176 = vpop.permute.xlu0 %1175
    %v1178 = vadd.f32 %v1168, %v1176
    %v1179 = vtanh.pop %v1178
    %1181 = vrot.lane.b32.xlu0 %v1179, 12
    %v1182 = vpop.permute.xlu0 %1181
    %v1184 = vmul.f32 %v1163, %v1182
    %1186 = vrot.lane.b32.xlu0 %v1030, 104
    %v1187 = vpop.permute.xlu0 %1186
    %v1188 = vsel %vm143, %v1187, 0
    %1190 = vmatpush.msra.mxu0 0.0
    %1191 = vmatpush.msra.mxu0 0.0
    %1192 = vmatpush.msra.mxu0 0.0
    %1193 = vmatpush.msra.mxu0 0.0
    %1194 = vmatpush.msra.mxu0 0.0
    %1195 = vmatpush.msra.mxu0 0.0
    %1196 = vmatpush.msra.mxu0 0.0
    %1197 = vmatpush.msra.mxu0 0.0
    %1198 = vmatpush.msra.mxu0 0.0
    %1199 = vmatpush.msra.mxu0 0.0
    %1200 = vmatpush.msra.mxu0 0.0
    %1201 = vmatpush.msra.mxu0 0.0
    %1202 = vmatpush.msra.mxu0 0.0
    %1203 = vmatpush.msra.mxu0 0.0
    %1204 = vmatpush.msra.mxu0 %v311
    %1205 = vmatpush.msra.mxu0 %v125
    %1206 = vmatmul.f32.gmra.mxu0 %v1188
    %v1207 = vpop.f32.mrf.mxu0
    %v1208 = vadd.f32 0.0, %v1207
    %1209 = vdwg.mxu0
    %1210 = vmatpush.msra.mxu0 0.0
    %1211 = vmatpush.msra.mxu0 0.0
    %1212 = vmatpush.msra.mxu0 0.0
    %1213 = vmatpush.msra.mxu0 0.0
    %1214 = vmatpush.msra.mxu0 0.0
    %1215 = vmatpush.msra.mxu0 0.0
    %1216 = vmatpush.msra.mxu0 0.0
    %1217 = vmatpush.msra.mxu0 0.0
    %1218 = vmatpush.msra.mxu0 0.0
    %1219 = vmatpush.msra.mxu0 0.0
    %1220 = vmatpush.msra.mxu0 0.0
    %1221 = vmatpush.msra.mxu0 0.0
    %1222 = vmatpush.msra.mxu0 0.0
    %1223 = vmatpush.msra.mxu0 0.0
    %1224 = vmatpush.msra.mxu0 %v334
    %1225 = vmatpush.msra.mxu0 %v122
    %1226 = vmatmul.f32.gmra.mxu0 %v1119
    %v1227 = vpop.f32.mrf.mxu0
    %v1228 = vadd.f32 %v1208, %v1227
    %1229 = vdwg.mxu0
    %v1230 = vadd.f32 %v1228, %v357
    %v1231 = vxor.u32 %v1230, 2147483648
    %v1232 = vmul.f32 %v1231, 1.442695
    %v1233 = vpow.pop %v1232
    %v1234 = vadd.f32 %v1233, 1.0
    %v1235 = vrcp.pop %v1234
    %v1236 = vmul.f32 %v1234, %v1235
    %v1237 = vsub.f32 1.0, %v1236
    %v1238 = vmul.f32 %v1235, %v1237
    %v1239 = vadd.f32 %v1235, %v1238
    %vm1240 = vweird.f32 %v1234
    %vm1241 = vweird.f32 %v1235
    %vm1242 = vmor %vm1240, %vm1241
    %v1243 = vsel %vm1242, %v1235, %v1239
    %v1244 = vand.u32 2147483647, %v1234
    %vm1245 = vcmp.eq.f32.partialorder %v1244, 8.507059e+37
    %v1246 = vand.u32 %v1234, 2147483648
    %v1247 = vor.u32 1.1754944e-38, %v1246
    %v1248 = vsel %vm1245, %v1247, %v1243
    %v1249 = vmul.f32 1.0, %v1248
    %v1250 = vtanh.pop %v1230
    %v1251 = vmul.f32 %v1249, %v1024
    %1253 = vrot.lane.b32.xlu0 %v1250, 92
    %v1254 = vpop.permute.xlu0 %1253
    %v1256 = vmul.f32 %v1249, %v1254
    %1258 = vrot.lane.b32.xlu0 %v1256, 12
    %v1259 = vpop.permute.xlu0 %1258
    %v1261 = vadd.f32 %v1251, %v1259
    %v1262 = vtanh.pop %v1261
    %1264 = vrot.lane.b32.xlu0 %v1262, 12
    %v1265 = vpop.permute.xlu0 %1264
    %v1267 = vmul.f32 %v1249, %v1265
    %v1268 = vsel %vm143, %v1113, 0
    %1270 = vmatpush.msra.mxu0 0.0
    %1271 = vmatpush.msra.mxu0 0.0
    %1272 = vmatpush.msra.mxu0 0.0
    %1273 = vmatpush.msra.mxu0 0.0
    %1274 = vmatpush.msra.mxu0 0.0
    %1275 = vmatpush.msra.mxu0 0.0
    %1276 = vmatpush.msra.mxu0 0.0
    %1277 = vmatpush.msra.mxu0 0.0
    %1278 = vmatpush.msra.mxu0 0.0
    %1279 = vmatpush.msra.mxu0 0.0
    %1280 = vmatpush.msra.mxu0 0.0
    %1281 = vmatpush.msra.mxu0 0.0
    %1282 = vmatpush.msra.mxu0 0.0
    %1283 = vmatpush.msra.mxu0 0.0
    %1284 = vmatpush.msra.mxu0 %v551
    %1285 = vmatpush.msra.mxu0 %v133
    %1286 = vmatmul.f32.gmra.mxu0 %v1268
    %v1287 = vpop.f32.mrf.mxu0
    %v1288 = vadd.f32 0.0, %v1287
    %1289 = vdwg.mxu0
    %1290 = vmatpush.msra.mxu0 0.0
    %1291 = vmatpush.msra.mxu0 0.0
    %1292 = vmatpush.msra.mxu0 0.0
    %1293 = vmatpush.msra.mxu0 0.0
    %1294 = vmatpush.msra.mxu0 0.0
    %1295 = vmatpush.msra.mxu0 0.0
    %1296 = vmatpush.msra.mxu0 0.0
    %1297 = vmatpush.msra.mxu0 0.0
    %1298 = vmatpush.msra.mxu0 0.0
    %1299 = vmatpush.msra.mxu0 0.0
    %1300 = vmatpush.msra.mxu0 0.0
    %1301 = vmatpush.msra.mxu0 0.0
    %1302 = vmatpush.msra.mxu0 0.0
    %1303 = vmatpush.msra.mxu0 0.0
    %1304 = vmatpush.msra.mxu0 %v574
    %1305 = vmatpush.msra.mxu0 %v130
    %1306 = vmatmul.f32.gmra.mxu0 %v1188
    %v1307 = vpop.f32.mrf.mxu0
    %v1308 = vadd.f32 %v1288, %v1307
    %1309 = vdwg.mxu0
    %v1310 = vadd.f32 %v1308, %v597
    %v1311 = vxor.u32 %v1310, 2147483648
    %v1312 = vmul.f32 %v1311, 1.442695
    %v1313 = vpow.pop %v1312
    %v1314 = vadd.f32 %v1313, 1.0
    %v1315 = vrcp.pop %v1314
    %v1316 = vmul.f32 %v1314, %v1315
    %v1317 = vsub.f32 1.0, %v1316
    %v1318 = vmul.f32 %v1315, %v1317
    %v1319 = vadd.f32 %v1315, %v1318
    %vm1320 = vweird.f32 %v1314
    %vm1321 = vweird.f32 %v1315
    %vm1322 = vmor %vm1320, %vm1321
    %v1323 = vsel %vm1322, %v1315, %v1319
    %v1324 = vand.u32 2147483647, %v1314
    %vm1325 = vcmp.eq.f32.partialorder %v1324, 8.507059e+37
    %v1326 = vand.u32 %v1314, 2147483648
    %v1327 = vor.u32 1.1754944e-38, %v1326
    %v1328 = vsel %vm1325, %v1327, %v1323
    %v1329 = vmul.f32 1.0, %v1328
    %v1330 = vtanh.pop %v1310
    %v1331 = vmul.f32 %v1329, %v1104
    %1333 = vrot.lane.b32.xlu0 %v1330, 92
    %v1334 = vpop.permute.xlu0 %1333
    %v1336 = vmul.f32 %v1329, %v1334
    %1338 = vrot.lane.b32.xlu0 %v1336, 12
    %v1339 = vpop.permute.xlu0 %1338
    %v1341 = vadd.f32 %v1331, %v1339
    %v1342 = vtanh.pop %v1341
    %1344 = vrot.lane.b32.xlu0 %v1342, 12
    %v1345 = vpop.permute.xlu0 %1344
    %v1347 = vmul.f32 %v1329, %v1345
    %1349 = vrot.lane.b32.xlu0 %v1347, 104
    %v1350 = vpop.permute.xlu0 %1349
    %1352 = vst.msk [vmem:[#allocation2 + $0x6] sm:$0x3] %vm641, %v1350
    %v1354 = vrot.slane %v1184, 2
    %1355 = vrot.lane.b32.xlu0 %v1354, 104
    %v1356 = vpop.permute.xlu0 %1355
    %v1357 = vsel %vm143, %v1356, 0
    %1359 = vmatpush.msra.mxu0 0.0
    %1360 = vmatpush.msra.mxu0 0.0
    %1361 = vmatpush.msra.mxu0 0.0
    %1362 = vmatpush.msra.mxu0 0.0
    %1363 = vmatpush.msra.mxu0 0.0
    %1364 = vmatpush.msra.mxu0 0.0
    %1365 = vmatpush.msra.mxu0 0.0
    %1366 = vmatpush.msra.mxu0 0.0
    %1367 = vmatpush.msra.mxu0 0.0
    %1368 = vmatpush.msra.mxu0 0.0
    %1369 = vmatpush.msra.mxu0 0.0
    %1370 = vmatpush.msra.mxu0 0.0
    %1371 = vmatpush.msra.mxu0 0.0
    %1372 = vmatpush.msra.mxu0 0.0
    %1373 = vmatpush.msra.mxu0 %v181
    %1374 = vmatpush.msra.mxu0 %v119
    %1375 = vmatmul.f32.gmra.mxu0 %v1357
    %v1376 = vpop.f32.mrf.mxu0
    %v1377 = vadd.f32 0.0, %v1376
    %1378 = vdwg.mxu0
    %v1380 = vrot.slane %v1377, 4
    %v1382 = vadd.f32 %v175, %v1380
    %v1383 = vxor.u32 %v1382, 2147483648
    %v1384 = vmul.f32 %v1383, 1.442695
    %v1385 = vpow.pop %v1384
    %v1386 = vadd.f32 %v1385, 1.0
    %v1387 = vrcp.pop %v1386
    %v1388 = vmul.f32 %v1386, %v1387
    %v1389 = vsub.f32 1.0, %v1388
    %v1390 = vmul.f32 %v1387, %v1389
    %v1391 = vadd.f32 %v1387, %v1390
    %vm1392 = vweird.f32 %v1386
    %vm1393 = vweird.f32 %v1387
    %vm1394 = vmor %vm1392, %vm1393
    %v1395 = vsel %vm1394, %v1387, %v1391
    %v1396 = vand.u32 2147483647, %v1386
    %vm1397 = vcmp.eq.f32.partialorder %v1396, 8.507059e+37
    %v1398 = vand.u32 %v1386, 2147483648
    %v1399 = vor.u32 1.1754944e-38, %v1398
    %v1400 = vsel %vm1397, %v1399, %v1395
    %v1401 = vmul.f32 1.0, %v1400
    %v1402 = vtanh.pop %v1382
    %v1404 = vrot.slane %v1178, 6
    %v1406 = vmul.f32 %v1401, %v1404
    %1408 = vrot.lane.b32.xlu0 %v1402, 92
    %v1409 = vpop.permute.xlu0 %1408
    %v1411 = vmul.f32 %v1401, %v1409
    %1413 = vrot.lane.b32.xlu0 %v1411, 12
    %v1414 = vpop.permute.xlu0 %1413
    %v1416 = vadd.f32 %v1406, %v1414
    %v1417 = vtanh.pop %v1416
    %1419 = vrot.lane.b32.xlu0 %v1417, 12
    %v1420 = vpop.permute.xlu0 %1419
    %v1422 = vmul.f32 %v1401, %v1420
    %1424 = vrot.lane.b32.xlu0 %v1267, 104
    %v1425 = vpop.permute.xlu0 %1424
    %v1426 = vsel %vm143, %v1425, 0
    %1428 = vmatpush.msra.mxu0 0.0
    %1429 = vmatpush.msra.mxu0 0.0
    %1430 = vmatpush.msra.mxu0 0.0
    %1431 = vmatpush.msra.mxu0 0.0
    %1432 = vmatpush.msra.mxu0 0.0
    %1433 = vmatpush.msra.mxu0 0.0
    %1434 = vmatpush.msra.mxu0 0.0
    %1435 = vmatpush.msra.mxu0 0.0
    %1436 = vmatpush.msra.mxu0 0.0
    %1437 = vmatpush.msra.mxu0 0.0
    %1438 = vmatpush.msra.mxu0 0.0
    %1439 = vmatpush.msra.mxu0 0.0
    %1440 = vmatpush.msra.mxu0 0.0
    %1441 = vmatpush.msra.mxu0 0.0
    %1442 = vmatpush.msra.mxu0 %v311
    %1443 = vmatpush.msra.mxu0 %v125
    %1444 = vmatmul.f32.gmra.mxu0 %v1426
    %v1445 = vpop.f32.mrf.mxu0
    %v1446 = vadd.f32 0.0, %v1445
    %1447 = vdwg.mxu0
    %1448 = vmatpush.msra.mxu0 0.0
    %1449 = vmatpush.msra.mxu0 0.0
    %1450 = vmatpush.msra.mxu0 0.0
    %1451 = vmatpush.msra.mxu0 0.0
    %1452 = vmatpush.msra.mxu0 0.0
    %1453 = vmatpush.msra.mxu0 0.0
    %1454 = vmatpush.msra.mxu0 0.0
    %1455 = vmatpush.msra.mxu0 0.0
    %1456 = vmatpush.msra.mxu0 0.0
    %1457 = vmatpush.msra.mxu0 0.0
    %1458 = vmatpush.msra.mxu0 0.0
    %1459 = vmatpush.msra.mxu0 0.0
    %1460 = vmatpush.msra.mxu0 0.0
    %1461 = vmatpush.msra.mxu0 0.0
    %1462 = vmatpush.msra.mxu0 %v334
    %1463 = vmatpush.msra.mxu0 %v122
    %1464 = vmatmul.f32.gmra.mxu0 %v1357
    %v1465 = vpop.f32.mrf.mxu0
    %v1466 = vadd.f32 %v1446, %v1465
    %1467 = vdwg.mxu0
    %v1468 = vadd.f32 %v1466, %v357
    %v1469 = vxor.u32 %v1468, 2147483648
    %v1470 = vmul.f32 %v1469, 1.442695
    %v1471 = vpow.pop %v1470
    %v1472 = vadd.f32 %v1471, 1.0
    %v1473 = vrcp.pop %v1472
    %v1474 = vmul.f32 %v1472, %v1473
    %v1475 = vsub.f32 1.0, %v1474
    %v1476 = vmul.f32 %v1473, %v1475
    %v1477 = vadd.f32 %v1473, %v1476
    %vm1478 = vweird.f32 %v1472
    %vm1479 = vweird.f32 %v1473
    %vm1480 = vmor %vm1478, %vm1479
    %v1481 = vsel %vm1480, %v1473, %v1477
    %v1482 = vand.u32 2147483647, %v1472
    %vm1483 = vcmp.eq.f32.partialorder %v1482, 8.507059e+37
    %v1484 = vand.u32 %v1472, 2147483648
    %v1485 = vor.u32 1.1754944e-38, %v1484
    %v1486 = vsel %vm1483, %v1485, %v1481
    %v1487 = vmul.f32 1.0, %v1486
    %v1488 = vtanh.pop %v1468
    %v1489 = vmul.f32 %v1487, %v1261
    %1491 = vrot.lane.b32.xlu0 %v1488, 92
    %v1492 = vpop.permute.xlu0 %1491
    %v1494 = vmul.f32 %v1487, %v1492
    %1496 = vrot.lane.b32.xlu0 %v1494, 12
    %v1497 = vpop.permute.xlu0 %1496
    %v1499 = vadd.f32 %v1489, %v1497
    %v1500 = vtanh.pop %v1499
    %1502 = vrot.lane.b32.xlu0 %v1500, 12
    %v1503 = vpop.permute.xlu0 %1502
    %v1505 = vmul.f32 %v1487, %v1503
    %v1506 = vsel %vm143, %v1350, 0
    %1508 = vmatpush.msra.mxu0 0.0
    %1509 = vmatpush.msra.mxu0 0.0
    %1510 = vmatpush.msra.mxu0 0.0
    %1511 = vmatpush.msra.mxu0 0.0
    %1512 = vmatpush.msra.mxu0 0.0
    %1513 = vmatpush.msra.mxu0 0.0
    %1514 = vmatpush.msra.mxu0 0.0
    %1515 = vmatpush.msra.mxu0 0.0
    %1516 = vmatpush.msra.mxu0 0.0
    %1517 = vmatpush.msra.mxu0 0.0
    %1518 = vmatpush.msra.mxu0 0.0
    %1519 = vmatpush.msra.mxu0 0.0
    %1520 = vmatpush.msra.mxu0 0.0
    %1521 = vmatpush.msra.mxu0 0.0
    %1522 = vmatpush.msra.mxu0 %v551
    %1523 = vmatpush.msra.mxu0 %v133
    %1524 = vmatmul.f32.gmra.mxu0 %v1506
    %v1525 = vpop.f32.mrf.mxu0
    %v1526 = vadd.f32 0.0, %v1525
    %1527 = vdwg.mxu0
    %1528 = vmatpush.msra.mxu0 0.0
    %1529 = vmatpush.msra.mxu0 0.0
    %1530 = vmatpush.msra.mxu0 0.0
    %1531 = vmatpush.msra.mxu0 0.0
    %1532 = vmatpush.msra.mxu0 0.0
    %1533 = vmatpush.msra.mxu0 0.0
    %1534 = vmatpush.msra.mxu0 0.0
    %1535 = vmatpush.msra.mxu0 0.0
    %1536 = vmatpush.msra.mxu0 0.0
    %1537 = vmatpush.msra.mxu0 0.0
    %1538 = vmatpush.msra.mxu0 0.0
    %1539 = vmatpush.msra.mxu0 0.0
    %1540 = vmatpush.msra.mxu0 0.0
    %1541 = vmatpush.msra.mxu0 0.0
    %1542 = vmatpush.msra.mxu0 %v574
    %1543 = vmatpush.msra.mxu0 %v130
    %1544 = vmatmul.f32.gmra.mxu0 %v1426
    %v1545 = vpop.f32.mrf.mxu0
    %v1546 = vadd.f32 %v1526, %v1545
    %1547 = vdwg.mxu0
    %v1548 = vadd.f32 %v1546, %v597
    %v1549 = vxor.u32 %v1548, 2147483648
    %v1550 = vmul.f32 %v1549, 1.442695
    %v1551 = vpow.pop %v1550
    %v1552 = vadd.f32 %v1551, 1.0
    %v1553 = vrcp.pop %v1552
    %v1554 = vmul.f32 %v1552, %v1553
    %v1555 = vsub.f32 1.0, %v1554
    %v1556 = vmul.f32 %v1553, %v1555
    %v1557 = vadd.f32 %v1553, %v1556
    %vm1558 = vweird.f32 %v1552
    %vm1559 = vweird.f32 %v1553
    %vm1560 = vmor %vm1558, %vm1559
    %v1561 = vsel %vm1560, %v1553, %v1557
    %v1562 = vand.u32 2147483647, %v1552
    %vm1563 = vcmp.eq.f32.partialorder %v1562, 8.507059e+37
    %v1564 = vand.u32 %v1552, 2147483648
    %v1565 = vor.u32 1.1754944e-38, %v1564
    %v1566 = vsel %vm1563, %v1565, %v1561
    %v1567 = vmul.f32 1.0, %v1566
    %v1568 = vtanh.pop %v1548
    %v1569 = vmul.f32 %v1567, %v1341
    %1571 = vrot.lane.b32.xlu0 %v1568, 92
    %v1572 = vpop.permute.xlu0 %1571
    %v1574 = vmul.f32 %v1567, %v1572
    %1576 = vrot.lane.b32.xlu0 %v1574, 12
    %v1577 = vpop.permute.xlu0 %1576
    %v1579 = vadd.f32 %v1569, %v1577
    %v1580 = vtanh.pop %v1579
    %1582 = vrot.lane.b32.xlu0 %v1580, 12
    %v1583 = vpop.permute.xlu0 %1582
    %v1585 = vmul.f32 %v1567, %v1583
    %1587 = vrot.lane.b32.xlu0 %v1585, 104
    %v1588 = vpop.permute.xlu0 %1587
    %1590 = vst.msk [vmem:[#allocation2 + $0x8] sm:$0x3] %vm641, %v1588
    %v1592 = vrot.slane %v1422, 4
    %1593 = vrot.lane.b32.xlu0 %v1592, 104
    %v1594 = vpop.permute.xlu0 %1593
    %v1595 = vsel %vm143, %v1594, 0
    %1597 = vmatpush.msra.mxu0 0.0
    %1598 = vmatpush.msra.mxu0 0.0
    %1599 = vmatpush.msra.mxu0 0.0
    %1600 = vmatpush.msra.mxu0 0.0
    %1601 = vmatpush.msra.mxu0 0.0
    %1602 = vmatpush.msra.mxu0 0.0
    %1603 = vmatpush.msra.mxu0 0.0
    %1604 = vmatpush.msra.mxu0 0.0
    %1605 = vmatpush.msra.mxu0 0.0
    %1606 = vmatpush.msra.mxu0 0.0
    %1607 = vmatpush.msra.mxu0 0.0
    %1608 = vmatpush.msra.mxu0 0.0
    %1609 = vmatpush.msra.mxu0 0.0
    %1610 = vmatpush.msra.mxu0 0.0
    %1611 = vmatpush.msra.mxu0 %v181
    %1612 = vmatpush.msra.mxu0 %v119
    %1613 = vmatmul.f32.gmra.mxu0 %v1595
    %v1614 = vpop.f32.mrf.mxu0
    %v1615 = vadd.f32 0.0, %v1614
    %1616 = vdwg.mxu0
    %v1618 = vrot.slane %v1615, 2
    %v1620 = vadd.f32 %v175, %v1618
    %v1621 = vxor.u32 %v1620, 2147483648
    %v1622 = vmul.f32 %v1621, 1.442695
    %v1623 = vpow.pop %v1622
    %v1624 = vadd.f32 %v1623, 1.0
    %v1625 = vrcp.pop %v1624
    %v1626 = vmul.f32 %v1624, %v1625
    %v1627 = vsub.f32 1.0, %v1626
    %v1628 = vmul.f32 %v1625, %v1627
    %v1629 = vadd.f32 %v1625, %v1628
    %vm1630 = vweird.f32 %v1624
    %vm1631 = vweird.f32 %v1625
    %vm1632 = vmor %vm1630, %vm1631
    %v1633 = vsel %vm1632, %v1625, %v1629
    %v1634 = vand.u32 2147483647, %v1624
    %vm1635 = vcmp.eq.f32.partialorder %v1634, 8.507059e+37
    %v1636 = vand.u32 %v1624, 2147483648
    %v1637 = vor.u32 1.1754944e-38, %v1636
    %v1638 = vsel %vm1635, %v1637, %v1633
    %v1639 = vmul.f32 1.0, %v1638
    %v1640 = vtanh.pop %v1620
    %v1642 = vrot.slane %v1416, 6
    %v1644 = vmul.f32 %v1639, %v1642
    %1646 = vrot.lane.b32.xlu0 %v1640, 92
    %v1647 = vpop.permute.xlu0 %1646
    %v1649 = vmul.f32 %v1639, %v1647
    %1651 = vrot.lane.b32.xlu0 %v1649, 12
    %v1652 = vpop.permute.xlu0 %1651
    %v1654 = vadd.f32 %v1644, %v1652
    %v1655 = vtanh.pop %v1654
    %1657 = vrot.lane.b32.xlu0 %v1655, 12
    %v1658 = vpop.permute.xlu0 %1657
    %v1660 = vmul.f32 %v1639, %v1658
    %1662 = vrot.lane.b32.xlu0 %v1505, 104
    %v1663 = vpop.permute.xlu0 %1662
    %v1664 = vsel %vm143, %v1663, 0
    %1666 = vmatpush.msra.mxu0 0.0
    %1667 = vmatpush.msra.mxu0 0.0
    %1668 = vmatpush.msra.mxu0 0.0
    %1669 = vmatpush.msra.mxu0 0.0
    %1670 = vmatpush.msra.mxu0 0.0
    %1671 = vmatpush.msra.mxu0 0.0
    %1672 = vmatpush.msra.mxu0 0.0
    %1673 = vmatpush.msra.mxu0 0.0
    %1674 = vmatpush.msra.mxu0 0.0
    %1675 = vmatpush.msra.mxu0 0.0
    %1676 = vmatpush.msra.mxu0 0.0
    %1677 = vmatpush.msra.mxu0 0.0
    %1678 = vmatpush.msra.mxu0 0.0
    %1679 = vmatpush.msra.mxu0 0.0
    %1680 = vmatpush.msra.mxu0 %v311
    %1681 = vmatpush.msra.mxu0 %v125
    %1682 = vmatmul.f32.gmra.mxu0 %v1664
    %v1683 = vpop.f32.mrf.mxu0
    %v1684 = vadd.f32 0.0, %v1683
    %1685 = vdwg.mxu0
    %1686 = vmatpush.msra.mxu0 0.0
    %1687 = vmatpush.msra.mxu0 0.0
    %1688 = vmatpush.msra.mxu0 0.0
    %1689 = vmatpush.msra.mxu0 0.0
    %1690 = vmatpush.msra.mxu0 0.0
    %1691 = vmatpush.msra.mxu0 0.0
    %1692 = vmatpush.msra.mxu0 0.0
    %1693 = vmatpush.msra.mxu0 0.0
    %1694 = vmatpush.msra.mxu0 0.0
    %1695 = vmatpush.msra.mxu0 0.0
    %1696 = vmatpush.msra.mxu0 0.0
    %1697 = vmatpush.msra.mxu0 0.0
    %1698 = vmatpush.msra.mxu0 0.0
    %1699 = vmatpush.msra.mxu0 0.0
    %1700 = vmatpush.msra.mxu0 %v334
    %1701 = vmatpush.msra.mxu0 %v122
    %1702 = vmatmul.f32.gmra.mxu0 %v1595
    %v1703 = vpop.f32.mrf.mxu0
    %v1704 = vadd.f32 %v1684, %v1703
    %1705 = vdwg.mxu0
    %v1706 = vadd.f32 %v1704, %v357
    %v1707 = vxor.u32 %v1706, 2147483648
    %v1708 = vmul.f32 %v1707, 1.442695
    %v1709 = vpow.pop %v1708
    %v1710 = vadd.f32 %v1709, 1.0
    %v1711 = vrcp.pop %v1710
    %v1712 = vmul.f32 %v1710, %v1711
    %v1713 = vsub.f32 1.0, %v1712
    %v1714 = vmul.f32 %v1711, %v1713
    %v1715 = vadd.f32 %v1711, %v1714
    %vm1716 = vweird.f32 %v1710
    %vm1717 = vweird.f32 %v1711
    %vm1718 = vmor %vm1716, %vm1717
    %v1719 = vsel %vm1718, %v1711, %v1715
    %v1720 = vand.u32 2147483647, %v1710
    %vm1721 = vcmp.eq.f32.partialorder %v1720, 8.507059e+37
    %v1722 = vand.u32 %v1710, 2147483648
    %v1723 = vor.u32 1.1754944e-38, %v1722
    %v1724 = vsel %vm1721, %v1723, %v1719
    %v1725 = vmul.f32 1.0, %v1724
    %v1726 = vtanh.pop %v1706
    %v1727 = vmul.f32 %v1725, %v1499
    %1729 = vrot.lane.b32.xlu0 %v1726, 92
    %v1730 = vpop.permute.xlu0 %1729
    %v1732 = vmul.f32 %v1725, %v1730
    %1734 = vrot.lane.b32.xlu0 %v1732, 12
    %v1735 = vpop.permute.xlu0 %1734
    %v1737 = vadd.f32 %v1727, %v1735
    %v1738 = vtanh.pop %v1737
    %1740 = vrot.lane.b32.xlu0 %v1738, 12
    %v1741 = vpop.permute.xlu0 %1740
    %v1743 = vmul.f32 %v1725, %v1741
    %v1744 = vsel %vm143, %v1588, 0
    %1746 = vmatpush.msra.mxu0 0.0
    %1747 = vmatpush.msra.mxu0 0.0
    %1748 = vmatpush.msra.mxu0 0.0
    %1749 = vmatpush.msra.mxu0 0.0
    %1750 = vmatpush.msra.mxu0 0.0
    %1751 = vmatpush.msra.mxu0 0.0
    %1752 = vmatpush.msra.mxu0 0.0
    %1753 = vmatpush.msra.mxu0 0.0
    %1754 = vmatpush.msra.mxu0 0.0
    %1755 = vmatpush.msra.mxu0 0.0
    %1756 = vmatpush.msra.mxu0 0.0
    %1757 = vmatpush.msra.mxu0 0.0
    %1758 = vmatpush.msra.mxu0 0.0
    %1759 = vmatpush.msra.mxu0 0.0
    %1760 = vmatpush.msra.mxu0 %v551
    %1761 = vmatpush.msra.mxu0 %v133
    %1762 = vmatmul.f32.gmra.mxu0 %v1744
    %v1763 = vpop.f32.mrf.mxu0
    %v1764 = vadd.f32 0.0, %v1763
    %1765 = vdwg.mxu0
    %1766 = vmatpush.msra.mxu0 0.0
    %1767 = vmatpush.msra.mxu0 0.0
    %1768 = vmatpush.msra.mxu0 0.0
    %1769 = vmatpush.msra.mxu0 0.0
    %1770 = vmatpush.msra.mxu0 0.0
    %1771 = vmatpush.msra.mxu0 0.0
    %1772 = vmatpush.msra.mxu0 0.0
    %1773 = vmatpush.msra.mxu0 0.0
    %1774 = vmatpush.msra.mxu0 0.0
    %1775 = vmatpush.msra.mxu0 0.0
    %1776 = vmatpush.msra.mxu0 0.0
    %1777 = vmatpush.msra.mxu0 0.0
    %1778 = vmatpush.msra.mxu0 0.0
    %1779 = vmatpush.msra.mxu0 0.0
    %1780 = vmatpush.msra.mxu0 %v574
    %1781 = vmatpush.msra.mxu0 %v130
    %1782 = vmatmul.f32.gmra.mxu0 %v1664
    %v1783 = vpop.f32.mrf.mxu0
    %v1784 = vadd.f32 %v1764, %v1783
    %1785 = vdwg.mxu0
    %v1786 = vadd.f32 %v1784, %v597
    %v1787 = vxor.u32 %v1786, 2147483648
    %v1788 = vmul.f32 %v1787, 1.442695
    %v1789 = vpow.pop %v1788
    %v1790 = vadd.f32 %v1789, 1.0
    %v1791 = vrcp.pop %v1790
    %v1792 = vmul.f32 %v1790, %v1791
    %v1793 = vsub.f32 1.0, %v1792
    %v1794 = vmul.f32 %v1791, %v1793
    %v1795 = vadd.f32 %v1791, %v1794
    %vm1796 = vweird.f32 %v1790
    %vm1797 = vweird.f32 %v1791
    %vm1798 = vmor %vm1796, %vm1797
    %v1799 = vsel %vm1798, %v1791, %v1795
    %v1800 = vand.u32 2147483647, %v1790
    %vm1801 = vcmp.eq.f32.partialorder %v1800, 8.507059e+37
    %v1802 = vand.u32 %v1790, 2147483648
    %v1803 = vor.u32 1.1754944e-38, %v1802
    %v1804 = vsel %vm1801, %v1803, %v1799
    %v1805 = vmul.f32 1.0, %v1804
    %v1806 = vtanh.pop %v1786
    %v1807 = vmul.f32 %v1805, %v1579
    %1809 = vrot.lane.b32.xlu0 %v1806, 92
    %v1810 = vpop.permute.xlu0 %1809
    %v1812 = vmul.f32 %v1805, %v1810
    %1814 = vrot.lane.b32.xlu0 %v1812, 12
    %v1815 = vpop.permute.xlu0 %1814
    %v1817 = vadd.f32 %v1807, %v1815
    %v1818 = vtanh.pop %v1817
    %1820 = vrot.lane.b32.xlu0 %v1818, 12
    %v1821 = vpop.permute.xlu0 %1820
    %v1823 = vmul.f32 %v1805, %v1821
    %1825 = vrot.lane.b32.xlu0 %v1823, 104
    %v1826 = vpop.permute.xlu0 %1825
    %1828 = vst.msk [vmem:[#allocation2 + $0xa] sm:$0x3] %vm641, %v1826
    %1830 = vrot.lane.b32.xlu0 %v1743, 104
    %v1831 = vpop.permute.xlu0 %1830
    %v1832 = vsel %vm143, %v1831, 0
    %1834 = vmatpush.msra.mxu0 0.0
    %1835 = vmatpush.msra.mxu0 0.0
    %1836 = vmatpush.msra.mxu0 0.0
    %1837 = vmatpush.msra.mxu0 0.0
    %1838 = vmatpush.msra.mxu0 0.0
    %1839 = vmatpush.msra.mxu0 0.0
    %1840 = vmatpush.msra.mxu0 0.0
    %1841 = vmatpush.msra.mxu0 0.0
    %1842 = vmatpush.msra.mxu0 0.0
    %1843 = vmatpush.msra.mxu0 0.0
    %1844 = vmatpush.msra.mxu0 0.0
    %1845 = vmatpush.msra.mxu0 0.0
    %1846 = vmatpush.msra.mxu0 0.0
    %1847 = vmatpush.msra.mxu0 0.0
    %1848 = vmatpush.msra.mxu0 %v311
    %1849 = vmatpush.msra.mxu0 %v125
    %1850 = vmatmul.f32.gmra.mxu0 %v1832
    %v1851 = vpop.f32.mrf.mxu0
    %v1852 = vadd.f32 0.0, %v1851
    %1853 = vdwg.mxu0
    %v1855 = vrot.slane %v1660, 6
    %1856 = vrot.lane.b32.xlu0 %v1855, 104
    %v1857 = vpop.permute.xlu0 %1856
    %v1858 = vsel %vm143, %v1857, 0
    %1860 = vmatpush.msra.mxu0 0.0
    %1861 = vmatpush.msra.mxu0 0.0
    %1862 = vmatpush.msra.mxu0 0.0
    %1863 = vmatpush.msra.mxu0 0.0
    %1864 = vmatpush.msra.mxu0 0.0
    %1865 = vmatpush.msra.mxu0 0.0
    %1866 = vmatpush.msra.mxu0 0.0
    %1867 = vmatpush.msra.mxu0 0.0
    %1868 = vmatpush.msra.mxu0 0.0
    %1869 = vmatpush.msra.mxu0 0.0
    %1870 = vmatpush.msra.mxu0 0.0
    %1871 = vmatpush.msra.mxu0 0.0
    %1872 = vmatpush.msra.mxu0 0.0
    %1873 = vmatpush.msra.mxu0 0.0
    %1874 = vmatpush.msra.mxu0 %v334
    %1875 = vmatpush.msra.mxu0 %v122
    %1876 = vmatmul.f32.gmra.mxu0 %v1858
    %v1877 = vpop.f32.mrf.mxu0
    %v1878 = vadd.f32 %v1852, %v1877
    %1879 = vdwg.mxu0
    %v1880 = vadd.f32 %v1878, %v357
    %v1881 = vxor.u32 %v1880, 2147483648
    %v1882 = vmul.f32 %v1881, 1.442695
    %v1883 = vpow.pop %v1882
    %v1884 = vadd.f32 %v1883, 1.0
    %v1885 = vrcp.pop %v1884
    %v1886 = vmul.f32 %v1884, %v1885
    %v1887 = vsub.f32 1.0, %v1886
    %v1888 = vmul.f32 %v1885, %v1887
    %v1889 = vadd.f32 %v1885, %v1888
    %vm1890 = vweird.f32 %v1884
    %vm1891 = vweird.f32 %v1885
    %vm1892 = vmor %vm1890, %vm1891
    %v1893 = vsel %vm1892, %v1885, %v1889
    %v1894 = vand.u32 2147483647, %v1884
    %vm1895 = vcmp.eq.f32.partialorder %v1894, 8.507059e+37
    %v1896 = vand.u32 %v1884, 2147483648
    %v1897 = vor.u32 1.1754944e-38, %v1896
    %v1898 = vsel %vm1895, %v1897, %v1893
    %v1899 = vmul.f32 1.0, %v1898
    %v1900 = vtanh.pop %v1880
    %v1901 = vmul.f32 %v1899, %v1737
    %1903 = vrot.lane.b32.xlu0 %v1900, 92
    %v1904 = vpop.permute.xlu0 %1903
    %v1906 = vmul.f32 %v1899, %v1904
    %1908 = vrot.lane.b32.xlu0 %v1906, 12
    %v1909 = vpop.permute.xlu0 %1908
    %v1911 = vadd.f32 %v1901, %v1909
    %v1912 = vtanh.pop %v1911
    %1914 = vrot.lane.b32.xlu0 %v1912, 12
    %v1915 = vpop.permute.xlu0 %1914
    %v1917 = vmul.f32 %v1899, %v1915
    %v1918 = vsel %vm143, %v1826, 0
    %1920 = vmatpush.msra.mxu0 0.0
    %1921 = vmatpush.msra.mxu0 0.0
    %1922 = vmatpush.msra.mxu0 0.0
    %1923 = vmatpush.msra.mxu0 0.0
    %1924 = vmatpush.msra.mxu0 0.0
    %1925 = vmatpush.msra.mxu0 0.0
    %1926 = vmatpush.msra.mxu0 0.0
    %1927 = vmatpush.msra.mxu0 0.0
    %1928 = vmatpush.msra.mxu0 0.0
    %1929 = vmatpush.msra.mxu0 0.0
    %1930 = vmatpush.msra.mxu0 0.0
    %1931 = vmatpush.msra.mxu0 0.0
    %1932 = vmatpush.msra.mxu0 0.0
    %1933 = vmatpush.msra.mxu0 0.0
    %1934 = vmatpush.msra.mxu0 %v551
    %1935 = vmatpush.msra.mxu0 %v133
    %1936 = vmatmul.f32.gmra.mxu0 %v1918
    %v1937 = vpop.f32.mrf.mxu0
    %v1938 = vadd.f32 0.0, %v1937
    %1939 = vdwg.mxu0
    %1940 = vmatpush.msra.mxu0 0.0
    %1941 = vmatpush.msra.mxu0 0.0
    %1942 = vmatpush.msra.mxu0 0.0
    %1943 = vmatpush.msra.mxu0 0.0
    %1944 = vmatpush.msra.mxu0 0.0
    %1945 = vmatpush.msra.mxu0 0.0
    %1946 = vmatpush.msra.mxu0 0.0
    %1947 = vmatpush.msra.mxu0 0.0
    %1948 = vmatpush.msra.mxu0 0.0
    %1949 = vmatpush.msra.mxu0 0.0
    %1950 = vmatpush.msra.mxu0 0.0
    %1951 = vmatpush.msra.mxu0 0.0
    %1952 = vmatpush.msra.mxu0 0.0
    %1953 = vmatpush.msra.mxu0 0.0
    %1954 = vmatpush.msra.mxu0 %v574
    %1955 = vmatpush.msra.mxu0 %v130
    %1956 = vmatmul.f32.gmra.mxu0 %v1832
    %v1957 = vpop.f32.mrf.mxu0
    %v1958 = vadd.f32 %v1938, %v1957
    %1959 = vdwg.mxu0
    %v1960 = vadd.f32 %v1958, %v597
    %v1961 = vxor.u32 %v1960, 2147483648
    %v1962 = vmul.f32 %v1961, 1.442695
    %v1963 = vpow.pop %v1962
    %v1964 = vadd.f32 %v1963, 1.0
    %v1965 = vrcp.pop %v1964
    %v1966 = vmul.f32 %v1964, %v1965
    %v1967 = vsub.f32 1.0, %v1966
    %v1968 = vmul.f32 %v1965, %v1967
    %v1969 = vadd.f32 %v1965, %v1968
    %vm1970 = vweird.f32 %v1964
    %vm1971 = vweird.f32 %v1965
    %vm1972 = vmor %vm1970, %vm1971
    %v1973 = vsel %vm1972, %v1965, %v1969
    %v1974 = vand.u32 2147483647, %v1964
    %vm1975 = vcmp.eq.f32.partialorder %v1974, 8.507059e+37
    %v1976 = vand.u32 %v1964, 2147483648
    %v1977 = vor.u32 1.1754944e-38, %v1976
    %v1978 = vsel %vm1975, %v1977, %v1973
    %v1979 = vmul.f32 1.0, %v1978
    %v1980 = vtanh.pop %v1960
    %v1981 = vmul.f32 %v1979, %v1817
    %1983 = vrot.lane.b32.xlu0 %v1980, 92
    %v1984 = vpop.permute.xlu0 %1983
    %v1986 = vmul.f32 %v1979, %v1984
    %1988 = vrot.lane.b32.xlu0 %v1986, 12
    %v1989 = vpop.permute.xlu0 %1988
    %v1991 = vadd.f32 %v1981, %v1989
    %v1992 = vtanh.pop %v1991
    %1994 = vrot.lane.b32.xlu0 %v1992, 12
    %v1995 = vpop.permute.xlu0 %1994
    %v1997 = vmul.f32 %v1979, %v1995
    %1999 = vrot.lane.b32.xlu0 %v1997, 104
    %v2000 = vpop.permute.xlu0 %1999
    %2002 = vst.msk [vmem:[#allocation2 + $0xc] sm:$0x3] %vm641, %v2000
    %v2003 = vsel %vm143, %v2000, 0
    %2005 = vmatpush.msra.mxu0 0.0
    %2006 = vmatpush.msra.mxu0 0.0
    %2007 = vmatpush.msra.mxu0 0.0
    %2008 = vmatpush.msra.mxu0 0.0
    %2009 = vmatpush.msra.mxu0 0.0
    %2010 = vmatpush.msra.mxu0 0.0
    %2011 = vmatpush.msra.mxu0 0.0
    %2012 = vmatpush.msra.mxu0 0.0
    %2013 = vmatpush.msra.mxu0 0.0
    %2014 = vmatpush.msra.mxu0 0.0
    %2015 = vmatpush.msra.mxu0 0.0
    %2016 = vmatpush.msra.mxu0 0.0
    %2017 = vmatpush.msra.mxu0 0.0
    %2018 = vmatpush.msra.mxu0 0.0
    %2019 = vmatpush.msra.mxu0 %v551
    %2020 = vmatpush.msra.mxu0 %v133
    %2021 = vmatmul.f32.gmra.mxu0 %v2003
    %v2022 = vpop.f32.mrf.mxu0
    %v2023 = vadd.f32 0.0, %v2022
    %2024 = vdwg.mxu0
    %2026 = vrot.lane.b32.xlu0 %v1917, 104
    %v2027 = vpop.permute.xlu0 %2026
    %v2028 = vsel %vm143, %v2027, 0
    %2030 = vmatpush.msra.mxu0 0.0
    %2031 = vmatpush.msra.mxu0 0.0
    %2032 = vmatpush.msra.mxu0 0.0
    %2033 = vmatpush.msra.mxu0 0.0
    %2034 = vmatpush.msra.mxu0 0.0
    %2035 = vmatpush.msra.mxu0 0.0
    %2036 = vmatpush.msra.mxu0 0.0
    %2037 = vmatpush.msra.mxu0 0.0
    %2038 = vmatpush.msra.mxu0 0.0
    %2039 = vmatpush.msra.mxu0 0.0
    %2040 = vmatpush.msra.mxu0 0.0
    %2041 = vmatpush.msra.mxu0 0.0
    %2042 = vmatpush.msra.mxu0 0.0
    %2043 = vmatpush.msra.mxu0 0.0
    %2044 = vmatpush.msra.mxu0 %v574
    %2045 = vmatpush.msra.mxu0 %v130
    %2046 = vmatmul.f32.gmra.mxu0 %v2028
    %v2047 = vpop.f32.mrf.mxu0
    %v2048 = vadd.f32 %v2023, %v2047
    %2049 = vdwg.mxu0
    %v2050 = vadd.f32 %v2048, %v597
    %v2051 = vxor.u32 %v2050, 2147483648
    %v2052 = vmul.f32 %v2051, 1.442695
    %v2053 = vpow.pop %v2052
    %v2054 = vadd.f32 %v2053, 1.0
    %v2055 = vrcp.pop %v2054
    %v2056 = vmul.f32 %v2054, %v2055
    %v2057 = vsub.f32 1.0, %v2056
    %v2058 = vmul.f32 %v2055, %v2057
    %v2059 = vadd.f32 %v2055, %v2058
    %vm2060 = vweird.f32 %v2054
    %vm2061 = vweird.f32 %v2055
    %vm2062 = vmor %vm2060, %vm2061
    %v2063 = vsel %vm2062, %v2055, %v2059
    %v2064 = vand.u32 2147483647, %v2054
    %vm2065 = vcmp.eq.f32.partialorder %v2064, 8.507059e+37
    %v2066 = vand.u32 %v2054, 2147483648
    %v2067 = vor.u32 1.1754944e-38, %v2066
    %v2068 = vsel %vm2065, %v2067, %v2063
    %v2069 = vmul.f32 1.0, %v2068
    %v2070 = vtanh.pop %v2050
    %v2071 = vmul.f32 %v2069, %v1991
    %2073 = vrot.lane.b32.xlu0 %v2070, 92
    %v2074 = vpop.permute.xlu0 %2073
    %v2076 = vmul.f32 %v2069, %v2074
    %2078 = vrot.lane.b32.xlu0 %v2076, 12
    %v2079 = vpop.permute.xlu0 %2078
    %v2081 = vadd.f32 %v2071, %v2079
    %v2082 = vtanh.pop %v2081
    %2084 = vrot.lane.b32.xlu0 %v2082, 12
    %v2085 = vpop.permute.xlu0 %2084
    %v2087 = vmul.f32 %v2069, %v2085
    %2089 = vrot.lane.b32.xlu0 %v2087, 104
    %v2090 = vpop.permute.xlu0 %2089
    %2092 = vst.msk [vmem:[#allocation2 + $0xe] sm:$0x3] %vm641, %v2090
    %v2093 = vld [vmem:[#allocation2] sm:$0xff]
    %v2094 = vld [vmem:[#allocation2 + $0x8] sm:$0xff]
    %v2095 = vld [vmem:[#allocation9] sm:$0xff]
    %v2096 = vld [vmem:[#allocation9 + $0x8] sm:$0xff]
    %v2097 = vld [vmem:[%s4] sm:$0xff]
    %v2098 = vld [vmem:[%s4 + $0x8] sm:$0xf]
    %v2099 = vld [vmem:[%s5] sm:$0x1]
    %v2101 = vperm.slane %v2099, 0
    %v2104 = vsel %vm143, %v2093, 0
    %v2107 = vsel %vm143, %v2094, 0
    %v2110 = vsel %vm150, %v2098, 0
    %2112 = vmatpush.msra.mxu0 0.0
    %2113 = vmatpush.msra.mxu0 0.0
    %2114 = vmatpush.msra.mxu0 0.0
    %2115 = vmatpush.msra.mxu0 0.0
    %2116 = vmatpush.msra.mxu0 0.0
    %2117 = vmatpush.msra.mxu0 0.0
    %2118 = vmatpush.msra.mxu0 0.0
    %2119 = vmatpush.msra.mxu0 0.0
    %2120 = vmatpush.msra.mxu0 0.0
    %2121 = vmatpush.msra.mxu0 0.0
    %2122 = vmatpush.msra.mxu0 0.0
    %2123 = vmatpush.msra.mxu0 0.0
    %2124 = vmatpush.msra.mxu0 0.0
    %2125 = vmatpush.msra.mxu0 0.0
    %2126 = vmatpush.msra.mxu0 %v2110
    %2127 = vmatpush.msra.mxu0 %v2097
    %2128 = vmatmul.f32.gmra.mxu0 %v2104
    %v2129 = vpop.f32.mrf.mxu0
    %v2130 = vadd.f32 %v2101, %v2129
    %2131 = vmatmul.f32.gmra.mxu0 %v2107
    %v2132 = vpop.f32.mrf.mxu0
    %v2133 = vadd.f32 %v2101, %v2132
    %2134 = vdwg.mxu0
    %v2135 = vld [vmem:[%s6] sm:$0x1]
    %v2136 = vld [vmem:[%s7] sm:$0x1]
    %vm2137 = vcmask 130048
    %v2139 = vsel %vm2137, %v2095, 0
    %v2142 = vsel %vm2137, %v2096, 0
    %2144 = vmatpush.msra.mxu0 0.0
    %2145 = vmatpush.msra.mxu0 0.0
    %2146 = vmatpush.msra.mxu0 0.0
    %2147 = vmatpush.msra.mxu0 0.0
    %2148 = vmatpush.msra.mxu0 0.0
    %2149 = vmatpush.msra.mxu0 0.0
    %2150 = vmatpush.msra.mxu0 0.0
    %2151 = vmatpush.msra.mxu0 0.0
    %2152 = vmatpush.msra.mxu0 0.0
    %2153 = vmatpush.msra.mxu0 0.0
    %2154 = vmatpush.msra.mxu0 0.0
    %2155 = vmatpush.msra.mxu0 0.0
    %2156 = vmatpush.msra.mxu0 0.0
    %2157 = vmatpush.msra.mxu0 0.0
    %2158 = vmatpush.msra.mxu0 %v2133
    %2159 = vmatpush.msra.mxu0 %v2130
    %2160 = vmatmul.f32.gmra.mxu0 %v2139
    %v2161 = vpop.f32.mrf.mxu0
    %v2162 = vadd.f32 0.0, %v2161
    %2163 = vmatmul.f32.gmra.mxu0 %v2142
    %v2164 = vpop.f32.mrf.mxu0
    %v2165 = vadd.f32 0.0, %v2164
    %2166 = vdwg.mxu0
    %v2167 = vsub.f32 %v2130, %v2162
    %v2168 = vsub.f32 %v2133, %v2165
    %v2169 = vmul.f32 %v2167, %v2167
    %v2170 = vmul.f32 %v2168, %v2168
    %2171 = vmatpush.msra.mxu0 0.0
    %2172 = vmatpush.msra.mxu0 0.0
    %2173 = vmatpush.msra.mxu0 0.0
    %2174 = vmatpush.msra.mxu0 0.0
    %2175 = vmatpush.msra.mxu0 0.0
    %2176 = vmatpush.msra.mxu0 0.0
    %2177 = vmatpush.msra.mxu0 0.0
    %2178 = vmatpush.msra.mxu0 0.0
    %2179 = vmatpush.msra.mxu0 0.0
    %2180 = vmatpush.msra.mxu0 0.0
    %2181 = vmatpush.msra.mxu0 0.0
    %2182 = vmatpush.msra.mxu0 0.0
    %2183 = vmatpush.msra.mxu0 0.0
    %2184 = vmatpush.msra.mxu0 0.0
    %2185 = vmatpush.msra.mxu0 %v2170
    %2186 = vmatpush.msra.mxu0 %v2169
    %2187 = vmatmul.f32.gmra.mxu0 %v2139
    %v2188 = vpop.f32.mrf.mxu0
    %v2189 = vadd.f32 1e-05, %v2188
    %2190 = vmatmul.f32.gmra.mxu0 %v2142
    %v2191 = vpop.f32.mrf.mxu0
    %v2192 = vadd.f32 1e-05, %v2191
    %2193 = vdwg.mxu0
    %v2194 = vrsqrt.pop %v2189
    %v2195 = vmul.f32 %v2194, %v2189
    %v2196 = vmul.f32 %v2195, %v2194
    %v2197 = vmul.f32 0.5, %v2196
    %v2198 = vsub.f32 1.5, %v2197
    %v2199 = vmul.f32 %v2194, %v2198
    %vm2200 = vweird.f32 %v2189
    %vm2201 = vweird.f32 %v2194
    %vm2202 = vmor %vm2200, %vm2201
    %v2203 = vsel %vm2202, %v2194, %v2199
    %v2204 = vrsqrt.pop %v2192
    %v2205 = vmul.f32 %v2204, %v2192
    %v2206 = vmul.f32 %v2205, %v2204
    %v2207 = vmul.f32 0.5, %v2206
    %v2208 = vsub.f32 1.5, %v2207
    %v2209 = vmul.f32 %v2204, %v2208
    %vm2210 = vweird.f32 %v2192
    %vm2211 = vweird.f32 %v2204
    %vm2212 = vmor %vm2210, %vm2211
    %v2213 = vsel %vm2212, %v2204, %v2209
    %v2214 = vmul.f32 %v2167, %v2203
    %v2215 = vmul.f32 %v2168, %v2213
    %v2217 = vperm.slane %v2135, 0
    %v2219 = vmul.f32 %v2214, %v2217
    %v2220 = vmul.f32 %v2215, %v2217
    %v2222 = vperm.slane %v2136, 0
    %v2224 = vadd.f32 %v2219, %v2222
    %v2225 = vadd.f32 %v2220, %v2222
    %v2226 = vmax.f32 %v2224, 0.0
    %v2227 = vmax.f32 %v2225, 0.0
    %v2228 = vld [vmem:[#allocation8] sm:$0xff]
    %v2229 = vld [vmem:[#allocation8 + $0x8] sm:$0xff]
    %v2230 = vld [vmem:[#allocation8 + $0x10] sm:$0xff]
    %v2231 = vld [vmem:[#allocation8 + $0x18] sm:$0xff]
    %v2232 = vld [vmem:[#allocation8 + $0x20] sm:$0xff]
    %v2233 = vld [vmem:[#allocation8 + $0x28] sm:$0xff]
    %v2234 = vld [vmem:[#allocation8 + $0x30] sm:$0xff]
    %v2235 = vld [vmem:[#allocation8 + $0x38] sm:$0xff]
    %v2236 = vld [vmem:[%s9] sm:$0x1]
    %v2238 = vperm.slane %v2236, 0
    %vm2240 = vcmask 523264
    %v2242 = vsel %vm2240, %v2226, 0
    %v2245 = vsel %vm2240, %v2227, 0
    %2247 = vmatpush.msra.mxu0 0.0
    %2248 = vmatpush.msra.mxu0 0.0
    %2249 = vmatpush.msra.mxu0 0.0
    %2250 = vmatpush.msra.mxu0 0.0
    %2251 = vmatpush.msra.mxu0 0.0
    %2252 = vmatpush.msra.mxu0 0.0
    %2253 = vmatpush.msra.mxu0 0.0
    %2254 = vmatpush.msra.mxu0 0.0
    %2255 = vmatpush.msra.mxu0 %v2235
    %2256 = vmatpush.msra.mxu0 %v2234
    %2257 = vmatpush.msra.mxu0 %v2233
    %2258 = vmatpush.msra.mxu0 %v2232
    %2259 = vmatpush.msra.mxu0 %v2231
    %2260 = vmatpush.msra.mxu0 %v2230
    %2261 = vmatpush.msra.mxu0 %v2229
    %2262 = vmatpush.msra.mxu0 %v2228
    %2263 = vmatmul.f32.gmra.mxu0 %v2242
    %v2264 = vpop.f32.mrf.mxu0
    %v2265 = vadd.f32 %v2238, %v2264
    %2266 = vmatmul.f32.gmra.mxu0 %v2245
    %v2267 = vpop.f32.mrf.mxu0
    %v2268 = vadd.f32 %v2238, %v2267
    %2269 = vdwg.mxu0
    %v2270 = vld [vmem:[%s10] sm:$0x1]
    %v2271 = vld [vmem:[%s11] sm:$0x1]
    %2272 = vmatpush.msra.mxu0 0.0
    %2273 = vmatpush.msra.mxu0 0.0
    %2274 = vmatpush.msra.mxu0 0.0
    %2275 = vmatpush.msra.mxu0 0.0
    %2276 = vmatpush.msra.mxu0 0.0
    %2277 = vmatpush.msra.mxu0 0.0
    %2278 = vmatpush.msra.mxu0 0.0
    %2279 = vmatpush.msra.mxu0 0.0
    %2280 = vmatpush.msra.mxu0 0.0
    %2281 = vmatpush.msra.mxu0 0.0
    %2282 = vmatpush.msra.mxu0 0.0
    %2283 = vmatpush.msra.mxu0 0.0
    %2284 = vmatpush.msra.mxu0 0.0
    %2285 = vmatpush.msra.mxu0 0.0
    %2286 = vmatpush.msra.mxu0 %v2268
    %2287 = vmatpush.msra.mxu0 %v2265
    %2288 = vmatmul.f32.gmra.mxu0 %v2139
    %v2289 = vpop.f32.mrf.mxu0
    %v2290 = vadd.f32 0.0, %v2289
    %2291 = vmatmul.f32.gmra.mxu0 %v2142
    %v2292 = vpop.f32.mrf.mxu0
    %v2293 = vadd.f32 0.0, %v2292
    %2294 = vdwg.mxu0
    %v2295 = vsub.f32 %v2265, %v2290
    %v2296 = vsub.f32 %v2268, %v2293
    %v2297 = vmul.f32 %v2295, %v2295
    %v2298 = vmul.f32 %v2296, %v2296
    %2299 = vmatpush.msra.mxu0 0.0
    %2300 = vmatpush.msra.mxu0 0.0
    %2301 = vmatpush.msra.mxu0 0.0
    %2302 = vmatpush.msra.mxu0 0.0
    %2303 = vmatpush.msra.mxu0 0.0
    %2304 = vmatpush.msra.mxu0 0.0
    %2305 = vmatpush.msra.mxu0 0.0
    %2306 = vmatpush.msra.mxu0 0.0
    %2307 = vmatpush.msra.mxu0 0.0
    %2308 = vmatpush.msra.mxu0 0.0
    %2309 = vmatpush.msra.mxu0 0.0
    %2310 = vmatpush.msra.mxu0 0.0
    %2311 = vmatpush.msra.mxu0 0.0
    %2312 = vmatpush.msra.mxu0 0.0
    %2313 = vmatpush.msra.mxu0 %v2298
    %2314 = vmatpush.msra.mxu0 %v2297
    %2315 = vmatmul.f32.gmra.mxu0 %v2139
    %v2316 = vpop.f32.mrf.mxu0
    %v2317 = vadd.f32 1e-05, %v2316
    %2318 = vmatmul.f32.gmra.mxu0 %v2142
    %v2319 = vpop.f32.mrf.mxu0
    %v2320 = vadd.f32 1e-05, %v2319
    %2321 = vdwg.mxu0
    %v2322 = vrsqrt.pop %v2317
    %v2323 = vmul.f32 %v2322, %v2317
    %v2324 = vmul.f32 %v2323, %v2322
    %v2325 = vmul.f32 0.5, %v2324
    %v2326 = vsub.f32 1.5, %v2325
    %v2327 = vmul.f32 %v2322, %v2326
    %vm2328 = vweird.f32 %v2317
    %vm2329 = vweird.f32 %v2322
    %vm2330 = vmor %vm2328, %vm2329
    %v2331 = vsel %vm2330, %v2322, %v2327
    %v2332 = vrsqrt.pop %v2320
    %v2333 = vmul.f32 %v2332, %v2320
    %v2334 = vmul.f32 %v2333, %v2332
    %v2335 = vmul.f32 0.5, %v2334
    %v2336 = vsub.f32 1.5, %v2335
    %v2337 = vmul.f32 %v2332, %v2336
    %vm2338 = vweird.f32 %v2320
    %vm2339 = vweird.f32 %v2332
    %vm2340 = vmor %vm2338, %vm2339
    %v2341 = vsel %vm2340, %v2332, %v2337
    %v2342 = vmul.f32 %v2295, %v2331
    %v2343 = vmul.f32 %v2296, %v2341
    %v2345 = vperm.slane %v2270, 0
    %v2347 = vmul.f32 %v2342, %v2345
    %v2348 = vmul.f32 %v2343, %v2345
    %v2350 = vperm.slane %v2271, 0
    %v2352 = vadd.f32 %v2347, %v2350
    %v2353 = vadd.f32 %v2348, %v2350
    %v2354 = vmax.f32 %v2352, 0.0
    %v2355 = vmax.f32 %v2353, 0.0
    %v2356 = vld [vmem:[%s12] sm:$0xff]
    %v2357 = vld [vmem:[%s12 + $0x8] sm:$0xff]
    %v2358 = vld [vmem:[%s12 + $0x10] sm:$0xff]
    %v2359 = vld [vmem:[%s12 + $0x18] sm:$0xff]
    %v2360 = vld [vmem:[%s12 + $0x20] sm:$0xff]
    %v2361 = vld [vmem:[%s12 + $0x28] sm:$0xff]
    %v2362 = vld [vmem:[%s12 + $0x30] sm:$0xff]
    %v2363 = vld [vmem:[%s12 + $0x38] sm:$0xff]
    %v2364 = vld [vmem:[%s12 + $0x40] sm:$0xff]
    %v2365 = vld [vmem:[%s12 + $0x48] sm:$0xff]
    %v2366 = vld [vmem:[%s12 + $0x50] sm:$0xff]
    %v2367 = vld [vmem:[%s12 + $0x58] sm:$0xff]
    %v2368 = vld [vmem:[%s12 + $0x60] sm:$0xff]
    %v2369 = vld [vmem:[%s12 + $0x68] sm:$0xff]
    %v2370 = vld [vmem:[%s12 + $0x70] sm:$0xff]
    %v2371 = vld [vmem:[%s12 + $0x78] sm:$0xff]
    %v2372 = vld [vmem:[%s13] sm:$0x1]
    %v2374 = vperm.slane %v2372, 0
    %2376 = vmatpush.msra.mxu0 %v2371
    %2377 = vmatpush.msra.mxu0 %v2370
    %2378 = vmatpush.msra.mxu0 %v2369
    %2379 = vmatpush.msra.mxu0 %v2368
    %2380 = vmatpush.msra.mxu0 %v2367
    %2381 = vmatpush.msra.mxu0 %v2366
    %2382 = vmatpush.msra.mxu0 %v2365
    %2383 = vmatpush.msra.mxu0 %v2364
    %2384 = vmatpush.msra.mxu0 %v2363
    %2385 = vmatpush.msra.mxu0 %v2362
    %2386 = vmatpush.msra.mxu0 %v2361
    %2387 = vmatpush.msra.mxu0 %v2360
    %2388 = vmatpush.msra.mxu0 %v2359
    %2389 = vmatpush.msra.mxu0 %v2358
    %2390 = vmatpush.msra.mxu0 %v2357
    %2391 = vmatpush.msra.mxu0 %v2356
    %2392 = vmatmul.f32.gmra.mxu0 %v2354
    %v2393 = vpop.f32.mrf.mxu0
    %v2394 = vadd.f32 %v2374, %v2393
    %2395 = vmatmul.f32.gmra.mxu0 %v2355
    %v2396 = vpop.f32.mrf.mxu0
    %v2397 = vadd.f32 %v2374, %v2396
    %2398 = vdwg.mxu0
    %v2399 = vld [vmem:[%s14] sm:$0xff]
    %v2400 = vld [vmem:[%s14 + $0x8] sm:$0xff]
    %v2401 = vld [vmem:[%s14 + $0x10] sm:$0xff]
    %v2402 = vld [vmem:[%s14 + $0x18] sm:$0xff]
    %v2403 = vld [vmem:[%s14 + $0x20] sm:$0xff]
    %v2404 = vld [vmem:[%s14 + $0x28] sm:$0xff]
    %v2405 = vld [vmem:[%s14 + $0x30] sm:$0xf]
    %v2406 = vld [vmem:[%s14 + $0x38] sm:$0xf]
    %v2407 = vld [vmem:[%s14 + $0x40] sm:$0xf]
    %v2408 = vld [vmem:[%s14 + $0x48] sm:$0xf]
    %v2409 = vld [vmem:[%s14 + $0x50] sm:$0xf]
    %v2410 = vld [vmem:[%s14 + $0x58] sm:$0xf]
    %v2412 = vsel %vm150, %v2405, 0
    %v2415 = vsel %vm150, %v2406, 0
    %v2418 = vsel %vm150, %v2407, 0
    %v2421 = vsel %vm150, %v2408, 0
    %v2424 = vsel %vm150, %v2409, 0
    %v2427 = vsel %vm150, %v2410, 0
    %2429 = vmatpush.msra.mxu0 0.0
    %2430 = vmatpush.msra.mxu0 0.0
    %2431 = vmatpush.msra.mxu0 0.0
    %2432 = vmatpush.msra.mxu0 0.0
    %2433 = vmatpush.msra.mxu0 0.0
    %2434 = vmatpush.msra.mxu0 0.0
    %2435 = vmatpush.msra.mxu0 0.0
    %2436 = vmatpush.msra.mxu0 0.0
    %2437 = vmatpush.msra.mxu0 0.0
    %2438 = vmatpush.msra.mxu0 0.0
    %2439 = vmatpush.msra.mxu0 0.0
    %2440 = vmatpush.msra.mxu0 0.0
    %2441 = vmatpush.msra.mxu0 0.0
    %2442 = vmatpush.msra.mxu0 0.0
    %2443 = vmatpush.msra.mxu0 %v2412
    %2444 = vmatpush.msra.mxu0 %v2399
    %2445 = vmatmul.f32.gmra.mxu0 %v145
    %v2446 = vpop.f32.mrf.mxu0
    %v2447 = vadd.f32 0.0, %v2446
    %2448 = vmatmul.f32.gmra.mxu0 %v148
    %v2449 = vpop.f32.mrf.mxu0
    %v2450 = vadd.f32 0.0, %v2449
    %2451 = vdwg.mxu0
    %2452 = vmatpush.msra.mxu0 0.0
    %2453 = vmatpush.msra.mxu0 0.0
    %2454 = vmatpush.msra.mxu0 0.0
    %2455 = vmatpush.msra.mxu0 0.0
    %2456 = vmatpush.msra.mxu0 0.0
    %2457 = vmatpush.msra.mxu0 0.0
    %2458 = vmatpush.msra.mxu0 0.0
    %2459 = vmatpush.msra.mxu0 0.0
    %2460 = vmatpush.msra.mxu0 0.0
    %2461 = vmatpush.msra.mxu0 0.0
    %2462 = vmatpush.msra.mxu0 0.0
    %2463 = vmatpush.msra.mxu0 0.0
    %2464 = vmatpush.msra.mxu0 0.0
    %2465 = vmatpush.msra.mxu0 0.0
    %2466 = vmatpush.msra.mxu0 %v2415
    %2467 = vmatpush.msra.mxu0 %v2400
    %2468 = vmatmul.f32.gmra.mxu0 %v145
    %v2469 = vpop.f32.mrf.mxu0
    %v2470 = vadd.f32 0.0, %v2469
    %2471 = vmatmul.f32.gmra.mxu0 %v148
    %v2472 = vpop.f32.mrf.mxu0
    %v2473 = vadd.f32 0.0, %v2472
    %2474 = vdwg.mxu0
    %2475 = vmatpush.msra.mxu0 0.0
    %2476 = vmatpush.msra.mxu0 0.0
    %2477 = vmatpush.msra.mxu0 0.0
    %2478 = vmatpush.msra.mxu0 0.0
    %2479 = vmatpush.msra.mxu0 0.0
    %2480 = vmatpush.msra.mxu0 0.0
    %2481 = vmatpush.msra.mxu0 0.0
    %2482 = vmatpush.msra.mxu0 0.0
    %2483 = vmatpush.msra.mxu0 0.0
    %2484 = vmatpush.msra.mxu0 0.0
    %2485 = vmatpush.msra.mxu0 0.0
    %2486 = vmatpush.msra.mxu0 0.0
    %2487 = vmatpush.msra.mxu0 0.0
    %2488 = vmatpush.msra.mxu0 0.0
    %2489 = vmatpush.msra.mxu0 %v2418
    %2490 = vmatpush.msra.mxu0 %v2401
    %2491 = vmatmul.f32.gmra.mxu0 %v145
    %v2492 = vpop.f32.mrf.mxu0
    %v2493 = vadd.f32 0.0, %v2492
    %2494 = vmatmul.f32.gmra.mxu0 %v148
    %v2495 = vpop.f32.mrf.mxu0
    %v2496 = vadd.f32 0.0, %v2495
    %2497 = vdwg.mxu0
    %2498 = vmatpush.msra.mxu0 0.0
    %2499 = vmatpush.msra.mxu0 0.0
    %2500 = vmatpush.msra.mxu0 0.0
    %2501 = vmatpush.msra.mxu0 0.0
    %2502 = vmatpush.msra.mxu0 0.0
    %2503 = vmatpush.msra.mxu0 0.0
    %2504 = vmatpush.msra.mxu0 0.0
    %2505 = vmatpush.msra.mxu0 0.0
    %2506 = vmatpush.msra.mxu0 0.0
    %2507 = vmatpush.msra.mxu0 0.0
    %2508 = vmatpush.msra.mxu0 0.0
    %2509 = vmatpush.msra.mxu0 0.0
    %2510 = vmatpush.msra.mxu0 0.0
    %2511 = vmatpush.msra.mxu0 0.0
    %2512 = vmatpush.msra.mxu0 %v2421
    %2513 = vmatpush.msra.mxu0 %v2402
    %2514 = vmatmul.f32.gmra.mxu0 %v145
    %v2515 = vpop.f32.mrf.mxu0
    %v2516 = vadd.f32 0.0, %v2515
    %2517 = vmatmul.f32.gmra.mxu0 %v148
    %v2518 = vpop.f32.mrf.mxu0
    %v2519 = vadd.f32 0.0, %v2518
    %2520 = vdwg.mxu0
    %2521 = vmatpush.msra.mxu0 0.0
    %2522 = vmatpush.msra.mxu0 0.0
    %2523 = vmatpush.msra.mxu0 0.0
    %2524 = vmatpush.msra.mxu0 0.0
    %2525 = vmatpush.msra.mxu0 0.0
    %2526 = vmatpush.msra.mxu0 0.0
    %2527 = vmatpush.msra.mxu0 0.0
    %2528 = vmatpush.msra.mxu0 0.0
    %2529 = vmatpush.msra.mxu0 0.0
    %2530 = vmatpush.msra.mxu0 0.0
    %2531 = vmatpush.msra.mxu0 0.0
    %2532 = vmatpush.msra.mxu0 0.0
    %2533 = vmatpush.msra.mxu0 0.0
    %2534 = vmatpush.msra.mxu0 0.0
    %2535 = vmatpush.msra.mxu0 %v2424
    %2536 = vmatpush.msra.mxu0 %v2403
    %2537 = vmatmul.f32.gmra.mxu0 %v145
    %v2538 = vpop.f32.mrf.mxu0
    %v2539 = vadd.f32 0.0, %v2538
    %2540 = vmatmul.f32.gmra.mxu0 %v148
    %v2541 = vpop.f32.mrf.mxu0
    %v2542 = vadd.f32 0.0, %v2541
    %2543 = vdwg.mxu0
    %2544 = vmatpush.msra.mxu0 0.0
    %2545 = vmatpush.msra.mxu0 0.0
    %2546 = vmatpush.msra.mxu0 0.0
    %2547 = vmatpush.msra.mxu0 0.0
    %2548 = vmatpush.msra.mxu0 0.0
    %2549 = vmatpush.msra.mxu0 0.0
    %2550 = vmatpush.msra.mxu0 0.0
    %2551 = vmatpush.msra.mxu0 0.0
    %2552 = vmatpush.msra.mxu0 0.0
    %2553 = vmatpush.msra.mxu0 0.0
    %2554 = vmatpush.msra.mxu0 0.0
    %2555 = vmatpush.msra.mxu0 0.0
    %2556 = vmatpush.msra.mxu0 0.0
    %2557 = vmatpush.msra.mxu0 0.0
    %2558 = vmatpush.msra.mxu0 %v2427
    %2559 = vmatpush.msra.mxu0 %v2404
    %2560 = vmatmul.f32.gmra.mxu0 %v145
    %v2561 = vpop.f32.mrf.mxu0
    %v2562 = vadd.f32 0.0, %v2561
    %2563 = vmatmul.f32.gmra.mxu0 %v148
    %v2564 = vpop.f32.mrf.mxu0
    %v2565 = vadd.f32 0.0, %v2564
    %2566 = vdwg.mxu0
    %2568 = vset.pattern.permute.xlu0 0
    %2569 = vperm.xlu0 %2568, %v2394
    %v2570 = vpop.permute.xlu0 %2569
    %2573 = vset.pattern.permute.xlu0 0
    %2574 = vperm.xlu0 %2573, %v2397
    %v2575 = vpop.permute.xlu0 %2574
    %v2577 = vmul.f32 %v2570, %v2447
    %v2578 = vmul.f32 %v2575, %v2450
    %v2579 = vadd.f32 %v117, %v2577
    %v2580 = vadd.f32 %v118, %v2578
    %2581 = vset.pattern.permute.xlu0 1
    %2582 = vperm.xlu0 %2581, %v2394
    %v2583 = vpop.permute.xlu0 %2582
    %2585 = vset.pattern.permute.xlu0 1
    %2586 = vperm.xlu0 %2585, %v2397
    %v2587 = vpop.permute.xlu0 %2586
    %v2589 = vmul.f32 %v2583, %v2470
    %v2590 = vmul.f32 %v2587, %v2473
    %v2591 = vadd.f32 %v2579, %v2589
    %v2592 = vadd.f32 %v2580, %v2590
    %2593 = vset.pattern.permute.xlu0 2
    %2594 = vperm.xlu0 %2593, %v2394
    %v2595 = vpop.permute.xlu0 %2594
    %2597 = vset.pattern.permute.xlu0 2
    %2598 = vperm.xlu0 %2597, %v2397
    %v2599 = vpop.permute.xlu0 %2598
    %v2601 = vmul.f32 %v2595, %v2493
    %v2602 = vmul.f32 %v2599, %v2496
    %v2603 = vadd.f32 %v2591, %v2601
    %v2604 = vadd.f32 %v2592, %v2602
    %2605 = vset.pattern.permute.xlu0 3
    %2606 = vperm.xlu0 %2605, %v2394
    %v2607 = vpop.permute.xlu0 %2606
    %2609 = vset.pattern.permute.xlu0 3
    %2610 = vperm.xlu0 %2609, %v2397
    %v2611 = vpop.permute.xlu0 %2610
    %v2613 = vmul.f32 %v2607, %v2516
    %v2614 = vmul.f32 %v2611, %v2519
    %v2615 = vadd.f32 %v2603, %v2613
    %v2616 = vadd.f32 %v2604, %v2614
    %2617 = vset.pattern.permute.xlu0 4
    %2618 = vperm.xlu0 %2617, %v2394
    %v2619 = vpop.permute.xlu0 %2618
    %2621 = vset.pattern.permute.xlu0 4
    %2622 = vperm.xlu0 %2621, %v2397
    %v2623 = vpop.permute.xlu0 %2622
    %v2625 = vmul.f32 %v2619, %v2539
    %v2626 = vmul.f32 %v2623, %v2542
    %v2627 = vadd.f32 %v2615, %v2625
    %v2628 = vadd.f32 %v2616, %v2626
    %2629 = vset.pattern.permute.xlu0 5
    %2630 = vperm.xlu0 %2629, %v2394
    %v2631 = vpop.permute.xlu0 %2630
    %2633 = vset.pattern.permute.xlu0 5
    %2634 = vperm.xlu0 %2633, %v2397
    %v2635 = vpop.permute.xlu0 %2634
    %v2637 = vmul.f32 %v2631, %v2562
    %v2638 = vmul.f32 %v2635, %v2565
    %v2639 = vadd.f32 %v2627, %v2637
    %v2640 = vadd.f32 %v2628, %v2638
    %2641 = vst.msk [vmem:[#allocation11] sm:$0xff] %vm143, %v2639
    %2642 = vst.msk [vmem:[#allocation11 + $0x8] sm:$0xff] %vm143, %v2640
    // Predicated region
    $region82: #{tpu_custom_call.1} parent=1 // pred_check
      _
    $region83: #{tpu_custom_call.1} parent=1 // pred_check_branch
      %2644 = sbr.rel (0) target = $region85
    $region84: #{tpu_custom_call.1} parent=1 // pred_region
      %2646 = vsyncadd [#allocation5], 0
      %s2647 = sshll.u32 [#allocation11], 4
      %s2648 = int_to_ptr.vmem [resolvable:$true] %s2647
      %s2649 = sshll.u32 %s16, 4
      %s2650 = int_to_ptr.hbm [resolvable:$true] %s2649
      %2655 = dma.vmem_to_hbm [thread:$0]  %s2648, 256, %s2650, [#allocation5], 128, 128, 8
    $region85: #{tpu_custom_call.1} parent=1 // pred_fallthru
      _
    // Predicated region
    $region86: #{tpu_custom_call.1} parent=1 // pred_check
      _
    $region87: #{tpu_custom_call.1} parent=1 // pred_check_branch
      %2657 = sbr.rel (0) target = $region89
    $region88: #{tpu_custom_call.1} parent=1 // pred_region
      %2659 = dma.done [#allocation5], 256
    $region89: #{tpu_custom_call.1} parent=1 // pred_fallthru
      _
    %2660 = vsyncpa [#allocation4], 1
    %2661 = vsyncpa [#allocation7], 1
    %2662 = vsyncpa [#allocation10], 1
    %2663 = vsyncpa [#allocation5], 1

</llo_original>
